<compile_context>
chip_gen: v7x
topology: tpu7x:2x2x1
jax: 0.10.0
libtpu: 0.0.40
codegen_flags: <defaults>
</compile_context>

<pallas_src>
import math
import functools
import numpy as np

import jax
import jax.numpy as jnp
from jax.experimental import pallas as pl
from jax.experimental.pallas import tpu as pltpu


VMEM_LIMIT = 32 * 1024 * 1024  # explicit scoped-VMEM budget (safe on v5e/v6e/v7x)


def _row_tile(m, target=512):
    """Largest row tile <= target that divides m (multiple of 8), else full m."""
    if m <= target:
        return m
    t = target - (target % 8)
    while t >= 8:
        if m % t == 0:
            return t
        t -= 8
    return m


# ----------------------------------------------------------------------------
# Kernel 1: fused LayerNorm#1 + shifted-window attention (one window / step)
# ----------------------------------------------------------------------------

def _swattn_kernel(x_ref, g1_ref, b1_ref, wqkv_ref, bqkv_ref, wproj_ref,
                   bproj_ref, bias_ref, o_ref, attn_scratch, *, heads, ws, scale):
    C = x_ref.shape[-1]
    hd = C // heads

    # Gather the (ws, ws, C) window into a (Ws, C) token matrix.
    xw = jnp.concatenate([x_ref[r] for r in range(ws)], axis=0)        # (Ws, C)

    # LayerNormProxy #1 (per-token LN over channels), f32 statistics.
    mu = jnp.mean(xw, axis=-1, keepdims=True)
    xc = xw - mu
    var = jnp.mean(xc * xc, axis=-1, keepdims=True)
    xn = xc * jax.lax.rsqrt(var + 1e-5) * g1_ref[...] + b1_ref[...]

    # QKV projection (bf16 MXU, f32 accumulation).
    qkv = jnp.dot(xn.astype(jnp.bfloat16), wqkv_ref[...],
                  preferred_element_type=jnp.float32) + bqkv_ref[...]  # (Ws, 3C)
    q = qkv[:, :C] * scale
    k = qkv[:, C:2 * C]
    v = qkv[:, 2 * C:]

    # Per-head attention; head outputs written into a VMEM scratch slab
    # (no lane concatenate), then a single output projection.
    for h in range(heads):                                             # static
        qh = q[:, h * hd:(h + 1) * hd].astype(jnp.bfloat16)
        kh = k[:, h * hd:(h + 1) * hd].astype(jnp.bfloat16)
        vh = v[:, h * hd:(h + 1) * hd].astype(jnp.bfloat16)
        s = jax.lax.dot_general(qh, kh, (((1,), (1,)), ((), ())),
                                preferred_element_type=jnp.float32)    # (Ws, Ws)
        s = s + bias_ref[h]                        # rel-pos bias + shift mask
        s = s - jnp.max(s, axis=-1, keepdims=True)
        p = jnp.exp(s)
        p = p / jnp.sum(p, axis=-1, keepdims=True)
        attn_scratch[:, h * hd:(h + 1) * hd] = jnp.dot(
            p.astype(jnp.bfloat16), vh, preferred_element_type=jnp.float32)

    o = jnp.dot(attn_scratch[...].astype(jnp.bfloat16), wproj_ref[...],
                preferred_element_type=jnp.float32) + bproj_ref[...]   # (Ws, C)

    # Scatter back to the (ws, ws, C) output window.
    for r in range(ws):
        o_ref[r] = o[r * ws:(r + 1) * ws, :]


def window_attention(x_win, bias6, ln_g, ln_b, wqkv, bqkv, wproj, bproj, heads):
    """x_win: (B, r1, ws, r2, ws, C) free reshape of the rolled NHWC tensor."""
    B, r1, ws, r2, _, C = x_win.shape
    Ws = ws * ws
    scale = float((C // heads) ** -0.5)
    kernel = functools.partial(_swattn_kernel, heads=heads, ws=ws, scale=scale)
    win_spec = pl.BlockSpec((None, None, ws, None, ws, C),
                            lambda b, i, j: (b, i, 0, j, 0, 0))
    # TODO(synk): for production sizes, batch several windows per grid step so
    # the QKV matmul M-dim fills a 256-row MXU pass.
    return pl.pallas_call(
        kernel,
        out_shape=jax.ShapeDtypeStruct((B, r1, ws, r2, ws, C), jnp.float32),
        grid=(B, r1, r2),
        in_specs=[
            win_spec,
            pl.BlockSpec((1, C), lambda b, i, j: (0, 0)),
            pl.BlockSpec((1, C), lambda b, i, j: (0, 0)),
            pl.BlockSpec((C, 3 * C), lambda b, i, j: (0, 0)),
            pl.BlockSpec((1, 3 * C), lambda b, i, j: (0, 0)),
            pl.BlockSpec((C, C), lambda b, i, j: (0, 0)),
            pl.BlockSpec((1, C), lambda b, i, j: (0, 0)),
            pl.BlockSpec((None, None, heads, Ws, Ws),
                         lambda b, i, j: (i, j, 0, 0, 0)),
        ],
        out_specs=win_spec,
        scratch_shapes=[pltpu.VMEM((Ws, C), jnp.float32)],
        compiler_params=pltpu.CompilerParams(
            dimension_semantics=("parallel", "parallel", "parallel"),
            vmem_limit_bytes=VMEM_LIMIT),
    )(x_win, ln_g.reshape(1, C), ln_b.reshape(1, C),
      wqkv, bqkv.reshape(1, -1), wproj, bproj.reshape(1, -1), bias6)


# ----------------------------------------------------------------------------
# Kernel 2: LayerNormProxy#2 computed directly on the NCHW (B, C, N) layout
# ----------------------------------------------------------------------------

def _ln_channel_kernel(x_ref, g_ref, b_ref, o_ref):
    x = x_ref[...]                                        # (C, TN)
    mu = jnp.mean(x, axis=0, keepdims=True)
    xc = x - mu
    var = jnp.mean(xc * xc, axis=0, keepdims=True)
    o_ref[...] = xc * jax.lax.rsqrt(var + 1e-5) * g_ref[...] + b_ref[...]


def layernorm_nchw(x_bcn, gamma, beta):
    B, C, N = x_bcn.shape
    tn = N
    if N % 128 == 0:
        for cand in (512, 384, 256, 128):
            if N % cand == 0:
                tn = cand
                break
    return pl.pallas_call(
        _ln_channel_kernel,
        out_shape=jax.ShapeDtypeStruct((B, C, N), jnp.float32),
        grid=(B, N // tn),
        in_specs=[
            pl.BlockSpec((None, C, tn), lambda b, n: (b, 0, n)),
            pl.BlockSpec((C, 1), lambda b, n: (0, 0)),
            pl.BlockSpec((C, 1), lambda b, n: (0, 0)),
        ],
        out_specs=pl.BlockSpec((None, C, tn), lambda b, n: (b, 0, n)),
        compiler_params=pltpu.CompilerParams(
            dimension_semantics=("parallel", "parallel"),
            vmem_limit_bytes=VMEM_LIMIT),
    )(x_bcn, gamma.reshape(C, 1), beta.reshape(C, 1))


# ----------------------------------------------------------------------------
# Kernel 3: fc1 (row-tiled matmul, bf16 MXU, f32 accumulation)
# ----------------------------------------------------------------------------

def _fc1_kernel(x_ref, w_ref, b_ref, o_ref):
    o_ref[...] = jnp.dot(x_ref[...].astype(jnp.bfloat16), w_ref[...],
                         preferred_element_type=jnp.float32) + b_ref[...]


def ffn_fc1(x2d, w_bf16, b):
    M, K = x2d.shape
    Nout = w_bf16.shape[1]
    tm = _row_tile(M)
    return pl.pallas_call(
        _fc1_kernel,
        out_shape=jax.ShapeDtypeStruct((M, Nout), jnp.float32),
        grid=(M // tm,),
        in_specs=[
            pl.BlockSpec((tm, K), lambda i: (i, 0)),
            pl.BlockSpec((K, Nout), lambda i: (0, 0)),
            pl.BlockSpec((1, Nout), lambda i: (0, 0)),
        ],
        out_specs=pl.BlockSpec((tm, Nout), lambda i: (i, 0)),
        compiler_params=pltpu.CompilerParams(
            dimension_semantics=("parallel",), vmem_limit_bytes=VMEM_LIMIT),
    )(x2d, w_bf16, b.reshape(1, Nout))


# ----------------------------------------------------------------------------
# Kernel 4: depthwise 3x3 conv + bias + skip add ("dwconv(fc1(x)) + fc1(x)")
# ----------------------------------------------------------------------------

def _dwconv_skip_kernel(x_ref, w_ref, b_ref, o_ref, xp_ref):
    H, W, C = o_ref.shape
    # Zero-padding done in a VMEM scratch (removes the wrapper-side jnp.pad pass).
    xp_ref[...] = jnp.zeros_like(xp_ref)
    xp_ref[1:H + 1, 1:W + 1, :] = x_ref[...]
    w = w_ref[...]                                        # (3, 3, C)
    acc = x_ref[...]                                      # '+ fc1(x)' skip term
    for dh in range(3):
        for dw in range(3):
            acc = acc + xp_ref[dh:dh + H, dw:dw + W, :] * w[dh, dw]
    o_ref[...] = acc + b_ref[...]


def dwconv_skip(img, w, b):
    """img: (B, H, W, C2). Returns depthwise3x3(img) + bias + img."""
    B, H, W, C = img.shape
    # TODO(synk): for large H, tile over rows with a 2-row halo via manual DMA
    # (overlapping blocks are not expressible with plain BlockSpecs).
    return pl.pallas_call(
        _dwconv_skip_kernel,
        out_shape=jax.ShapeDtypeStruct((B, H, W, C), jnp.float32),
        grid=(B,),
        in_specs=[
            pl.BlockSpec((None, H, W, C), lambda b: (b, 0, 0, 0)),
            pl.BlockSpec((3, 3, C), lambda b: (0, 0, 0)),
            pl.BlockSpec((1, C), lambda b: (0, 0)),
        ],
        out_specs=pl.BlockSpec((None, H, W, C), lambda b: (b, 0, 0, 0)),
        scratch_shapes=[pltpu.VMEM((H + 2, W + 2, C), jnp.float32)],
        compiler_params=pltpu.CompilerParams(
            dimension_semantics=("parallel",), vmem_limit_bytes=VMEM_LIMIT),
    )(img, w, b.reshape(1, C))


# ----------------------------------------------------------------------------
# Kernel 5: LayerNorm(c2) + GELU + fc2 + final residual add (row-tiled)
# ----------------------------------------------------------------------------

def _gelu_erf(x):
    # Exact-erf GELU via Abramowitz-Stegun 7.1.26 approximation (|err| < 1.5e-7).
    # TODO(synk): replace with native erf if/when guaranteed to lower in Mosaic.
    z = x * 0.7071067811865476
    az = jnp.abs(z)
    t = 1.0 / (1.0 + 0.3275911 * az)
    poly = t * (0.254829592 + t * (-0.284496736 + t * (1.421413741
               + t * (-1.453152027 + t * 1.061405429))))
    erf_abs = 1.0 - poly * jnp.exp(-az * az)
    erf = jnp.where(z < 0, -erf_abs, erf_abs)
    return 0.5 * x * (1.0 + erf)


def _ffn_out_kernel(z_ref, g_ref, b_ref, w_ref, bias_ref, res_ref, o_ref):
    z = z_ref[...]                                        # (TM, C2)
    mu = jnp.mean(z, axis=-1, keepdims=True)
    zc = z - mu
    var = jnp.mean(zc * zc, axis=-1, keepdims=True)
    h = zc * jax.lax.rsqrt(var + 1e-5) * g_ref[...] + b_ref[...]
    g = _gelu_erf(h)
    o_ref[...] = (jnp.dot(g.astype(jnp.bfloat16), w_ref[...],
                          preferred_element_type=jnp.float32)
                  + bias_ref[...] + res_ref[...])


def ffn_ln_gelu_fc2(z2d, res2d, n_g, n_b, w_bf16, b):
    M, C2 = z2d.shape
    Nout = w_bf16.shape[1]
    tm = _row_tile(M)
    return pl.pallas_call(
        _ffn_out_kernel,
        out_shape=jax.ShapeDtypeStruct((M, Nout), jnp.float32),
        grid=(M // tm,),
        in_specs=[
            pl.BlockSpec((tm, C2), lambda i: (i, 0)),
            pl.BlockSpec((1, C2), lambda i: (0, 0)),
            pl.BlockSpec((1, C2), lambda i: (0, 0)),
            pl.BlockSpec((C2, Nout), lambda i: (0, 0)),
            pl.BlockSpec((1, Nout), lambda i: (0, 0)),
            pl.BlockSpec((tm, Nout), lambda i: (i, 0)),
        ],
        out_specs=pl.BlockSpec((tm, Nout), lambda i: (i, 0)),
        compiler_params=pltpu.CompilerParams(
            dimension_semantics=("parallel",), vmem_limit_bytes=VMEM_LIMIT),
    )(z2d, n_g.reshape(1, C2), n_b.reshape(1, C2), w_bf16, b.reshape(1, Nout),
      res2d)


# ----------------------------------------------------------------------------
# Constant / parameter construction (glue)
# ----------------------------------------------------------------------------

def build_bias_mask(rel_table, window_size, shift_size, H, W, heads):
    """Combined (relative-position bias + swin shift mask): (nW, heads, Ws, Ws)."""
    Wh = Ww = window_size
    Ws = Wh * Ww

    coords = np.stack(np.meshgrid(np.arange(Wh), np.arange(Ww), indexing="ij"))
    cf = coords.reshape(2, -1)
    rel = (cf[:, :, None] - cf[:, None, :]).transpose(1, 2, 0).astype(np.int64)
    rel[:, :, 0] += Wh - 1
    rel[:, :, 1] += Ww - 1
    rel[:, :, 0] *= 2 * Ww - 1
    rpi = rel.sum(-1)                                               # (Ws, Ws)
    rel_bias = rel_table[rpi.reshape(-1)].reshape(Ws, Ws, heads)
    rel_bias = jnp.transpose(rel_bias, (2, 0, 1))                   # (heads, Ws, Ws)

    img_mask = np.zeros((H, W), np.float32)
    h_slices = (slice(0, -Wh), slice(-Wh, -shift_size), slice(-shift_size, None))
    w_slices = (slice(0, -Ww), slice(-Ww, -shift_size), slice(-shift_size, None))
    cnt = 0
    for hs in h_slices:
        for ws_ in w_slices:
            img_mask[hs, ws_] = cnt
            cnt += 1
    r1, r2 = H // Wh, W // Ww
    mw = img_mask.reshape(r1, Wh, r2, Ww).transpose(0, 2, 1, 3).reshape(r1 * r2, Ws)
    am = mw[:, None, :] - mw[:, :, None]
    am = np.where(am != 0, -100.0, 0.0).astype(np.float32)          # (nW, Ws, Ws)

    return rel_bias[None, :, :, :] + jnp.asarray(am)[:, None, :, :]


def init_params(key, dim, heads, window_size, c2):
    ks = jax.random.split(key, 18)
    n = lambda k, s, sc: sc * jax.random.normal(k, s, jnp.float32)
    return {
        "ln1_g": 1.0 + n(ks[0], (dim,), 0.05), "ln1_b": n(ks[1], (dim,), 0.05),
        "wqkv": n(ks[2], (dim, 3 * dim), 0.1), "bqkv": n(ks[3], (3 * dim,), 0.05),
        "wproj": n(ks[4], (dim, dim), 0.1), "bproj": n(ks[5], (dim,), 0.05),
        "rel_table": n(ks[6], ((2 * window_size - 1) ** 2, heads), 0.02),
        "ln2_g": 1.0 + n(ks[7], (dim,), 0.05), "ln2_b": n(ks[8], (dim,), 0.05),
        "fc1_w": n(ks[9], (dim, c2), 0.1), "fc1_b": n(ks[10], (c2,), 0.05),
        "dw_w": n(ks[11], (3, 3, c2), 0.1), "dw_b": n(ks[12], (c2,), 0.05),
        "n1_g": 1.0 + n(ks[13], (c2,), 0.05), "n1_b": n(ks[14], (c2,), 0.05),
        "fc2_w": n(ks[15], (c2, dim), 0.1), "fc2_b": n(ks[16], (dim,), 0.05),
    }


# ----------------------------------------------------------------------------
# Forward pass (thin glue around the fused Pallas kernels)
# ----------------------------------------------------------------------------

def sw_mixffn_block_forward(x, params, bias_mask, *, heads, window_size, shift_size):
    B, C, H, W = x.shape
    assert C % heads == 0 and H % window_size == 0 and W % window_size == 0
    assert 0 < shift_size < window_size
    ws = window_size
    Ws = ws * ws
    r1, r2 = H // ws, W // ws
    N = H * W
    C2 = params["fc1_w"].shape[1]

    # bf16 weight copies for the MXU matmuls (accumulation stays f32).
    wqkv = params["wqkv"].astype(jnp.bfloat16)
    wproj = params["wproj"].astype(jnp.bfloat16)
    fc1_w = params["fc1_w"].astype(jnp.bfloat16)
    fc2_w = params["fc2_w"].astype(jnp.bfloat16)

    # ---- fused LN1 + ShiftWindowAttention -----------------------------------
    s = shift_size
    x_nhwc = jnp.transpose(x, (0, 2, 3, 1))
    x_shift = jnp.roll(x_nhwc, shift=(-s, -s), axis=(1, 2))
    x_win = x_shift.reshape(B, r1, ws, r2, ws, C)            # free reshape
    bias6 = bias_mask.reshape(r1, r2, heads, Ws, Ws)         # free reshape
    attn_win = window_attention(x_win, bias6, params["ln1_g"], params["ln1_b"],
                                wqkv, params["bqkv"], wproj, params["bproj"],
                                heads)
    attn_shift = attn_win.reshape(B, H, W, C)                # free reshape
    attn = jnp.roll(attn_shift, shift=(s, s), axis=(1, 2))
    x1n = jnp.transpose(attn, (0, 3, 1, 2)) + x              # residual 1 (NCHW)

    # ---- LayerNormProxy #2 directly on the NCHW layout ----------------------
    t_norm = layernorm_nchw(x1n.reshape(B, C, N), params["ln2_g"], params["ln2_b"])

    # `.view(B, N, C)` of a contiguous NCHW tensor == free row-major reshape.
    t = t_norm.reshape(B * N, C)

    # ---- MixFFN_skip: fc2( gelu( LN1( dwconv(fc1(t)) + fc1(t) ) ) ) ----------
    u = ffn_fc1(t, fc1_w, params["fc1_b"])                   # (B*N, C2)
    z = dwconv_skip(u.reshape(B, H, W, C2), params["dw_w"], params["dw_b"])
    res_tok = x1n.reshape(B * N, C)                          # free (raw view of x_res)
    out_tok = ffn_ln_gelu_fc2(z.reshape(B * N, C2), res_tok,
                              params["n1_g"], params["n1_b"], fc2_w,
                              params["fc2_b"])               # (B*N, C)

    # ---- `.view` back to NCHW (free) — residual 2 was added in-kernel --------
    return out_tok.reshape(B, C, H, W)


# ----------------------------------------------------------------------------

if __name__ == "__main__":
    B, dim, Hsz = 2, 16, 8
    heads, window_size = 4, 4
    shift_size = math.ceil(window_size / 2)
    c2 = 4 * dim                                             # token_mlp='mix_skip'

    key = jax.random.PRNGKey(0)
    kx, kp = jax.random.split(key)
    x = jax.random.normal(kx, (B, dim, Hsz, Hsz), jnp.float32)   # NCHW, like PyTorch
    params = init_params(kp, dim, heads, window_size, c2)
    bias_mask = build_bias_mask(params["rel_table"], window_size, shift_size,
                                Hsz, Hsz, heads)

    fwd = jax.jit(functools.partial(sw_mixffn_block_forward, heads=heads,
                                    window_size=window_size,
                                    shift_size=shift_size))
    out = jax.block_until_ready(fwd(x, params, bias_mask))
    assert out.shape == x.shape
    assert bool(jnp.all(jnp.isfinite(out)))
    print("KERNEL_OK")
</pallas_src>

<mosaic_0001>
module attributes {stable_mosaic.version = 11 : i64} {
  func.func @_swattn_kernel(%arg0: i32, %arg1: i32, %arg2: i32, %arg3: memref<1x1x4x1x4x16xf32, #tpu.memory_space<vmem>>, %arg4: memref<1x16xf32, #tpu.memory_space<vmem>>, %arg5: memref<1x16xf32, #tpu.memory_space<vmem>>, %arg6: memref<16x48xbf16, #tpu.memory_space<vmem>>, %arg7: memref<1x48xf32, #tpu.memory_space<vmem>>, %arg8: memref<16x16xbf16, #tpu.memory_space<vmem>>, %arg9: memref<1x16xf32, #tpu.memory_space<vmem>>, %arg10: memref<1x1x4x16x16xf32, #tpu.memory_space<vmem>>, %arg11: memref<1x1x4x1x4x16xf32, #tpu.memory_space<vmem>>, %arg12: memref<16x16xf32, #tpu.memory_space<vmem>>) attributes {dimension_semantics = [#tpu.dimension_semantics<parallel>, #tpu.dimension_semantics<parallel>, #tpu.dimension_semantics<parallel>], iteration_bounds = array<i64: 2, 2, 2>, scalar_prefetch = 0 : i64, scratch_operands = 1 : i64, tpu.core_type = #tpu.core_type<tc>, window_params = [{transform_indices = @transform_0, window_bounds = array<i64: 1, 1, 4, 1, 4, 16>}, {pipeline_mode = #tpu.pipeline_mode<synchronous>, transform_indices = @transform_1, window_bounds = array<i64: 1, 16>}, {pipeline_mode = #tpu.pipeline_mode<synchronous>, transform_indices = @transform_2, window_bounds = array<i64: 1, 16>}, {pipeline_mode = #tpu.pipeline_mode<synchronous>, transform_indices = @transform_3, window_bounds = array<i64: 16, 48>}, {pipeline_mode = #tpu.pipeline_mode<synchronous>, transform_indices = @transform_4, window_bounds = array<i64: 1, 48>}, {pipeline_mode = #tpu.pipeline_mode<synchronous>, transform_indices = @transform_5, window_bounds = array<i64: 16, 16>}, {pipeline_mode = #tpu.pipeline_mode<synchronous>, transform_indices = @transform_6, window_bounds = array<i64: 1, 16>}, {transform_indices = @transform_7, window_bounds = array<i64: 1, 1, 4, 16, 16>}, {transform_indices = @transform_8, window_bounds = array<i64: 1, 1, 4, 1, 4, 16>}]} {
    %c0 = arith.constant 0 : index
    %c0_0 = arith.constant 0 : index
    %c0_1 = arith.constant 0 : index
    %c0_2 = arith.constant 0 : index
    %c0_3 = arith.constant 0 : index
    %c0_4 = arith.constant 0 : index
    %0 = vector.load %arg3[%c0, %c0_0, %c0_1, %c0_2, %c0_3, %c0_4] : memref<1x1x4x1x4x16xf32, #tpu.memory_space<vmem>>, vector<1x1x1x1x4x16xf32>
    %1 = vector.shape_cast %0 : vector<1x1x1x1x4x16xf32> to vector<4x16xf32>
    %c0_5 = arith.constant 0 : index
    %c0_6 = arith.constant 0 : index
    %c1 = arith.constant 1 : index
    %c0_7 = arith.constant 0 : index
    %c0_8 = arith.constant 0 : index
    %c0_9 = arith.constant 0 : index
    %2 = vector.load %arg3[%c0_5, %c0_6, %c1, %c0_7, %c0_8, %c0_9] : memref<1x1x4x1x4x16xf32, #tpu.memory_space<vmem>>, vector<1x1x1x1x4x16xf32>
    %3 = vector.shape_cast %2 : vector<1x1x1x1x4x16xf32> to vector<4x16xf32>
    %c0_10 = arith.constant 0 : index
    %c0_11 = arith.constant 0 : index
    %c2 = arith.constant 2 : index
    %c0_12 = arith.constant 0 : index
    %c0_13 = arith.constant 0 : index
    %c0_14 = arith.constant 0 : index
    %4 = vector.load %arg3[%c0_10, %c0_11, %c2, %c0_12, %c0_13, %c0_14] : memref<1x1x4x1x4x16xf32, #tpu.memory_space<vmem>>, vector<1x1x1x1x4x16xf32>
    %5 = vector.shape_cast %4 : vector<1x1x1x1x4x16xf32> to vector<4x16xf32>
    %c0_15 = arith.constant 0 : index
    %c0_16 = arith.constant 0 : index
    %c3 = arith.constant 3 : index
    %c0_17 = arith.constant 0 : index
    %c0_18 = arith.constant 0 : index
    %c0_19 = arith.constant 0 : index
    %6 = vector.load %arg3[%c0_15, %c0_16, %c3, %c0_17, %c0_18, %c0_19] : memref<1x1x4x1x4x16xf32, #tpu.memory_space<vmem>>, vector<1x1x1x1x4x16xf32>
    %7 = vector.shape_cast %6 : vector<1x1x1x1x4x16xf32> to vector<4x16xf32>
    %8 = tpu.concatenate %1, %3, %5, %7 in 0 : vector<4x16xf32>, vector<4x16xf32>, vector<4x16xf32>, vector<4x16xf32> -> vector<16x16xf32>
    %cst = arith.constant dense<0.000000e+00> : vector<16xf32>
    %9 = vector.multi_reduction <add>, %8, %cst [1] : vector<16x16xf32> to vector<16xf32>
    %10 = vector.shape_cast %9 : vector<16xf32> to vector<16x1xf32>
    %cst_20 = arith.constant 1.600000e+01 : f32
    %11 = vector.broadcast %cst_20 : f32 to vector<16x1xf32>
    %12 = arith.divf %10, %11 : vector<16x1xf32>
    %13 = vector.broadcast %12 : vector<16x1xf32> to vector<16x16xf32>
    %14 = arith.subf %8, %13 : vector<16x16xf32>
    %15 = arith.mulf %14, %14 : vector<16x16xf32>
    %cst_21 = arith.constant dense<0.000000e+00> : vector<16xf32>
    %16 = vector.multi_reduction <add>, %15, %cst_21 [1] : vector<16x16xf32> to vector<16xf32>
    %17 = vector.shape_cast %16 : vector<16xf32> to vector<16x1xf32>
    %cst_22 = arith.constant 1.600000e+01 : f32
    %18 = vector.broadcast %cst_22 : f32 to vector<16x1xf32>
    %19 = arith.divf %17, %18 : vector<16x1xf32>
    %cst_23 = arith.constant 9.99999974E-6 : f32
    %20 = vector.broadcast %cst_23 : f32 to vector<16x1xf32>
    %21 = arith.addf %19, %20 : vector<16x1xf32>
    %22 = math.rsqrt %21 : vector<16x1xf32>
    %23 = vector.broadcast %22 : vector<16x1xf32> to vector<16x16xf32>
    %24 = arith.mulf %14, %23 : vector<16x16xf32>
    %c0_24 = arith.constant 0 : index
    %c0_25 = arith.constant 0 : index
    %25 = vector.load %arg4[%c0_24, %c0_25] : memref<1x16xf32, #tpu.memory_space<vmem>>, vector<1x16xf32>
    %26 = vector.broadcast %25 : vector<1x16xf32> to vector<16x16xf32>
    %27 = arith.mulf %24, %26 : vector<16x16xf32>
    %c0_26 = arith.constant 0 : index
    %c0_27 = arith.constant 0 : index
    %28 = vector.load %arg5[%c0_26, %c0_27] : memref<1x16xf32, #tpu.memory_space<vmem>>, vector<1x16xf32>
    %29 = vector.broadcast %28 : vector<1x16xf32> to vector<16x16xf32>
    %30 = arith.addf %27, %29 : vector<16x16xf32>
    %31 = arith.truncf %30 : vector<16x16xf32> to vector<16x16xbf16>
    %c0_28 = arith.constant 0 : index
    %c0_29 = arith.constant 0 : index
    %32 = vector.load %arg6[%c0_28, %c0_29] : memref<16x48xbf16, #tpu.memory_space<vmem>>, vector<16x48xbf16>
    %cst_30 = arith.constant dense<0.000000e+00> : vector<16x48xf32>
    %33 = tpu.matmul %31, %32, %cst_30 {dimension_numbers = #tpu.dot_dimension_numbers<[1], [0], [0], [1], [0, 0, 1, 1], [], []>} : vector<16x16xbf16>, vector<16x48xbf16>, vector<16x48xf32> -> vector<16x48xf32>
    %c0_31 = arith.constant 0 : index
    %c0_32 = arith.constant 0 : index
    %34 = vector.load %arg7[%c0_31, %c0_32] : memref<1x48xf32, #tpu.memory_space<vmem>>, vector<1x48xf32>
    %35 = vector.broadcast %34 : vector<1x48xf32> to vector<16x48xf32>
    %36 = arith.addf %33, %35 : vector<16x48xf32>
    %37 = vector.extract_strided_slice %36 {offsets = [0, 0], sizes = [16, 16], strides = [1, 1]} : vector<16x48xf32> to vector<16x16xf32>
    %cst_33 = arith.constant 5.000000e-01 : f32
    %38 = vector.broadcast %cst_33 : f32 to vector<16x16xf32>
    %39 = arith.mulf %37, %38 : vector<16x16xf32>
    %40 = vector.extract_strided_slice %36 {offsets = [0, 16], sizes = [16, 16], strides = [1, 1]} : vector<16x48xf32> to vector<16x16xf32>
    %41 = vector.extract_strided_slice %36 {offsets = [0, 32], sizes = [16, 16], strides = [1, 1]} : vector<16x48xf32> to vector<16x16xf32>
    %42 = vector.extract_strided_slice %39 {offsets = [0, 0], sizes = [16, 4], strides = [1, 1]} : vector<16x16xf32> to vector<16x4xf32>
    %43 = arith.truncf %42 : vector<16x4xf32> to vector<16x4xbf16>
    %44 = vector.extract_strided_slice %40 {offsets = [0, 0], sizes = [16, 4], strides = [1, 1]} : vector<16x16xf32> to vector<16x4xf32>
    %45 = arith.truncf %44 : vector<16x4xf32> to vector<16x4xbf16>
    %46 = vector.extract_strided_slice %41 {offsets = [0, 0], sizes = [16, 4], strides = [1, 1]} : vector<16x16xf32> to vector<16x4xf32>
    %47 = arith.truncf %46 : vector<16x4xf32> to vector<16x4xbf16>
    %cst_34 = arith.constant dense<0.000000e+00> : vector<16x16xf32>
    %48 = tpu.matmul %43, %45, %cst_34 {dimension_numbers = #tpu.dot_dimension_numbers<[1], [1], [0], [0], [0, 0, 1, 0], [], []>} : vector<16x4xbf16>, vector<16x4xbf16>, vector<16x16xf32> -> vector<16x16xf32>
    %c0_35 = arith.constant 0 : index
    %c0_36 = arith.constant 0 : index
    %c0_37 = arith.constant 0 : index
    %c0_38 = arith.constant 0 : index
    %c0_39 = arith.constant 0 : index
    %49 = vector.load %arg10[%c0_35, %c0_36, %c0_37, %c0_38, %c0_39] : memref<1x1x4x16x16xf32, #tpu.memory_space<vmem>>, vector<1x1x1x16x16xf32>
    %50 = vector.shape_cast %49 : vector<1x1x1x16x16xf32> to vector<16x16xf32>
    %51 = arith.addf %48, %50 : vector<16x16xf32>
    %cst_40 = arith.constant dense<0xFF800000> : vector<16xf32>
    %52 = vector.multi_reduction <maximumf>, %51, %cst_40 [1] : vector<16x16xf32> to vector<16xf32>
    %53 = vector.shape_cast %52 : vector<16xf32> to vector<16x1xf32>
    %54 = vector.broadcast %53 : vector<16x1xf32> to vector<16x16xf32>
    %55 = arith.subf %51, %54 : vector<16x16xf32>
    %56 = math.exp %55 : vector<16x16xf32>
    %cst_41 = arith.constant dense<0.000000e+00> : vector<16xf32>
    %57 = vector.multi_reduction <add>, %56, %cst_41 [1] : vector<16x16xf32> to vector<16xf32>
    %58 = vector.shape_cast %57 : vector<16xf32> to vector<16x1xf32>
    %59 = vector.broadcast %58 : vector<16x1xf32> to vector<16x16xf32>
    %60 = arith.divf %56, %59 : vector<16x16xf32>
    %61 = arith.truncf %60 : vector<16x16xf32> to vector<16x16xbf16>
    %cst_42 = arith.constant dense<0.000000e+00> : vector<16x4xf32>
    %62 = tpu.matmul %61, %47, %cst_42 {dimension_numbers = #tpu.dot_dimension_numbers<[1], [0], [0], [1], [0, 0, 1, 1], [], []>} : vector<16x16xbf16>, vector<16x4xbf16>, vector<16x4xf32> -> vector<16x4xf32>
    %c0_43 = arith.constant 0 : index
    %c0_44 = arith.constant 0 : index
    %63 = vector.load %arg12[%c0_43, %c0_44] : memref<16x16xf32, #tpu.memory_space<vmem>>, vector<16x4xf32>
    tpu.vector_store %arg12[%c0_43, %c0_44], %62 {strides = array<i32>} : memref<16x16xf32, #tpu.memory_space<vmem>>, vector<16x4xf32>,
    %64 = vector.extract_strided_slice %39 {offsets = [0, 4], sizes = [16, 4], strides = [1, 1]} : vector<16x16xf32> to vector<16x4xf32>
    %65 = arith.truncf %64 : vector<16x4xf32> to vector<16x4xbf16>
    %66 = vector.extract_strided_slice %40 {offsets = [0, 4], sizes = [16, 4], strides = [1, 1]} : vector<16x16xf32> to vector<16x4xf32>
    %67 = arith.truncf %66 : vector<16x4xf32> to vector<16x4xbf16>
    %68 = vector.extract_strided_slice %41 {offsets = [0, 4], sizes = [16, 4], strides = [1, 1]} : vector<16x16xf32> to vector<16x4xf32>
    %69 = arith.truncf %68 : vector<16x4xf32> to vector<16x4xbf16>
    %cst_45 = arith.constant dense<0.000000e+00> : vector<16x16xf32>
    %70 = tpu.matmul %65, %67, %cst_45 {dimension_numbers = #tpu.dot_dimension_numbers<[1], [1], [0], [0], [0, 0, 1, 0], [], []>} : vector<16x4xbf16>, vector<16x4xbf16>, vector<16x16xf32> -> vector<16x16xf32>
    %c0_46 = arith.constant 0 : index
    %c0_47 = arith.constant 0 : index
    %c1_48 = arith.constant 1 : index
    %c0_49 = arith.constant 0 : index
    %c0_50 = arith.constant 0 : index
    %71 = vector.load %arg10[%c0_46, %c0_47, %c1_48, %c0_49, %c0_50] : memref<1x1x4x16x16xf32, #tpu.memory_space<vmem>>, vector<1x1x1x16x16xf32>
    %72 = vector.shape_cast %71 : vector<1x1x1x16x16xf32> to vector<16x16xf32>
    %73 = arith.addf %70, %72 : vector<16x16xf32>
    %cst_51 = arith.constant dense<0xFF800000> : vector<16xf32>
    %74 = vector.multi_reduction <maximumf>, %73, %cst_51 [1] : vector<16x16xf32> to vector<16xf32>
    %75 = vector.shape_cast %74 : vector<16xf32> to vector<16x1xf32>
    %76 = vector.broadcast %75 : vector<16x1xf32> to vector<16x16xf32>
    %77 = arith.subf %73, %76 : vector<16x16xf32>
    %78 = math.exp %77 : vector<16x16xf32>
    %cst_52 = arith.constant dense<0.000000e+00> : vector<16xf32>
    %79 = vector.multi_reduction <add>, %78, %cst_52 [1] : vector<16x16xf32> to vector<16xf32>
    %80 = vector.shape_cast %79 : vector<16xf32> to vector<16x1xf32>
    %81 = vector.broadcast %80 : vector<16x1xf32> to vector<16x16xf32>
    %82 = arith.divf %78, %81 : vector<16x16xf32>
    %83 = arith.truncf %82 : vector<16x16xf32> to vector<16x16xbf16>
    %cst_53 = arith.constant dense<0.000000e+00> : vector<16x4xf32>
    %84 = tpu.matmul %83, %69, %cst_53 {dimension_numbers = #tpu.dot_dimension_numbers<[1], [0], [0], [1], [0, 0, 1, 1], [], []>} : vector<16x16xbf16>, vector<16x4xbf16>, vector<16x4xf32> -> vector<16x4xf32>
    %c0_54 = arith.constant 0 : index
    %c4 = arith.constant 4 : index
    %85 = vector.load %arg12[%c0_54, %c4] : memref<16x16xf32, #tpu.memory_space<vmem>>, vector<16x4xf32>
    tpu.vector_store %arg12[%c0_54, %c4], %84 {strides = array<i32>} : memref<16x16xf32, #tpu.memory_space<vmem>>, vector<16x4xf32>,
    %86 = vector.extract_strided_slice %39 {offsets = [0, 8], sizes = [16, 4], strides = [1, 1]} : vector<16x16xf32> to vector<16x4xf32>
    %87 = arith.truncf %86 : vector<16x4xf32> to vector<16x4xbf16>
    %88 = vector.extract_strided_slice %40 {offsets = [0, 8], sizes = [16, 4], strides = [1, 1]} : vector<16x16xf32> to vector<16x4xf32>
    %89 = arith.truncf %88 : vector<16x4xf32> to vector<16x4xbf16>
    %90 = vector.extract_strided_slice %41 {offsets = [0, 8], sizes = [16, 4], strides = [1, 1]} : vector<16x16xf32> to vector<16x4xf32>
    %91 = arith.truncf %90 : vector<16x4xf32> to vector<16x4xbf16>
    %cst_55 = arith.constant dense<0.000000e+00> : vector<16x16xf32>
    %92 = tpu.matmul %87, %89, %cst_55 {dimension_numbers = #tpu.dot_dimension_numbers<[1], [1], [0], [0], [0, 0, 1, 0], [], []>} : vector<16x4xbf16>, vector<16x4xbf16>, vector<16x16xf32> -> vector<16x16xf32>
    %c0_56 = arith.constant 0 : index
    %c0_57 = arith.constant 0 : index
    %c2_58 = arith.constant 2 : index
    %c0_59 = arith.constant 0 : index
    %c0_60 = arith.constant 0 : index
    %93 = vector.load %arg10[%c0_56, %c0_57, %c2_58, %c0_59, %c0_60] : memref<1x1x4x16x16xf32, #tpu.memory_space<vmem>>, vector<1x1x1x16x16xf32>
    %94 = vector.shape_cast %93 : vector<1x1x1x16x16xf32> to vector<16x16xf32>
    %95 = arith.addf %92, %94 : vector<16x16xf32>
    %cst_61 = arith.constant dense<0xFF800000> : vector<16xf32>
    %96 = vector.multi_reduction <maximumf>, %95, %cst_61 [1] : vector<16x16xf32> to vector<16xf32>
    %97 = vector.shape_cast %96 : vector<16xf32> to vector<16x1xf32>
    %98 = vector.broadcast %97 : vector<16x1xf32> to vector<16x16xf32>
    %99 = arith.subf %95, %98 : vector<16x16xf32>
    %100 = math.exp %99 : vector<16x16xf32>
    %cst_62 = arith.constant dense<0.000000e+00> : vector<16xf32>
    %101 = vector.multi_reduction <add>, %100, %cst_62 [1] : vector<16x16xf32> to vector<16xf32>
    %102 = vector.shape_cast %101 : vector<16xf32> to vector<16x1xf32>
    %103 = vector.broadcast %102 : vector<16x1xf32> to vector<16x16xf32>
    %104 = arith.divf %100, %103 : vector<16x16xf32>
    %105 = arith.truncf %104 : vector<16x16xf32> to vector<16x16xbf16>
    %cst_63 = arith.constant dense<0.000000e+00> : vector<16x4xf32>
    %106 = tpu.matmul %105, %91, %cst_63 {dimension_numbers = #tpu.dot_dimension_numbers<[1], [0], [0], [1], [0, 0, 1, 1], [], []>} : vector<16x16xbf16>, vector<16x4xbf16>, vector<16x4xf32> -> vector<16x4xf32>
    %c0_64 = arith.constant 0 : index
    %c8 = arith.constant 8 : index
    %107 = vector.load %arg12[%c0_64, %c8] : memref<16x16xf32, #tpu.memory_space<vmem>>, vector<16x4xf32>
    tpu.vector_store %arg12[%c0_64, %c8], %106 {strides = array<i32>} : memref<16x16xf32, #tpu.memory_space<vmem>>, vector<16x4xf32>,
    %108 = vector.extract_strided_slice %39 {offsets = [0, 12], sizes = [16, 4], strides = [1, 1]} : vector<16x16xf32> to vector<16x4xf32>
    %109 = arith.truncf %108 : vector<16x4xf32> to vector<16x4xbf16>
    %110 = vector.extract_strided_slice %40 {offsets = [0, 12], sizes = [16, 4], strides = [1, 1]} : vector<16x16xf32> to vector<16x4xf32>
    %111 = arith.truncf %110 : vector<16x4xf32> to vector<16x4xbf16>
    %112 = vector.extract_strided_slice %41 {offsets = [0, 12], sizes = [16, 4], strides = [1, 1]} : vector<16x16xf32> to vector<16x4xf32>
    %113 = arith.truncf %112 : vector<16x4xf32> to vector<16x4xbf16>
    %cst_65 = arith.constant dense<0.000000e+00> : vector<16x16xf32>
    %114 = tpu.matmul %109, %111, %cst_65 {dimension_numbers = #tpu.dot_dimension_numbers<[1], [1], [0], [0], [0, 0, 1, 0], [], []>} : vector<16x4xbf16>, vector<16x4xbf16>, vector<16x16xf32> -> vector<16x16xf32>
    %c0_66 = arith.constant 0 : index
    %c0_67 = arith.constant 0 : index
    %c3_68 = arith.constant 3 : index
    %c0_69 = arith.constant 0 : index
    %c0_70 = arith.constant 0 : index
    %115 = vector.load %arg10[%c0_66, %c0_67, %c3_68, %c0_69, %c0_70] : memref<1x1x4x16x16xf32, #tpu.memory_space<vmem>>, vector<1x1x1x16x16xf32>
    %116 = vector.shape_cast %115 : vector<1x1x1x16x16xf32> to vector<16x16xf32>
    %117 = arith.addf %114, %116 : vector<16x16xf32>
    %cst_71 = arith.constant dense<0xFF800000> : vector<16xf32>
    %118 = vector.multi_reduction <maximumf>, %117, %cst_71 [1] : vector<16x16xf32> to vector<16xf32>
    %119 = vector.shape_cast %118 : vector<16xf32> to vector<16x1xf32>
    %120 = vector.broadcast %119 : vector<16x1xf32> to vector<16x16xf32>
    %121 = arith.subf %117, %120 : vector<16x16xf32>
    %122 = math.exp %121 : vector<16x16xf32>
    %cst_72 = arith.constant dense<0.000000e+00> : vector<16xf32>
    %123 = vector.multi_reduction <add>, %122, %cst_72 [1] : vector<16x16xf32> to vector<16xf32>
    %124 = vector.shape_cast %123 : vector<16xf32> to vector<16x1xf32>
    %125 = vector.broadcast %124 : vector<16x1xf32> to vector<16x16xf32>
    %126 = arith.divf %122, %125 : vector<16x16xf32>
    %127 = arith.truncf %126 : vector<16x16xf32> to vector<16x16xbf16>
    %cst_73 = arith.constant dense<0.000000e+00> : vector<16x4xf32>
    %128 = tpu.matmul %127, %113, %cst_73 {dimension_numbers = #tpu.dot_dimension_numbers<[1], [0], [0], [1], [0, 0, 1, 1], [], []>} : vector<16x16xbf16>, vector<16x4xbf16>, vector<16x4xf32> -> vector<16x4xf32>
    %c0_74 = arith.constant 0 : index
    %c12 = arith.constant 12 : index
    %129 = vector.load %arg12[%c0_74, %c12] : memref<16x16xf32, #tpu.memory_space<vmem>>, vector<16x4xf32>
    tpu.vector_store %arg12[%c0_74, %c12], %128 {strides = array<i32>} : memref<16x16xf32, #tpu.memory_space<vmem>>, vector<16x4xf32>,
    %c0_75 = arith.constant 0 : index
    %c0_76 = arith.constant 0 : index
    %130 = vector.load %arg12[%c0_75, %c0_76] : memref<16x16xf32, #tpu.memory_space<vmem>>, vector<16x16xf32>
    %131 = arith.truncf %130 : vector<16x16xf32> to vector<16x16xbf16>
    %c0_77 = arith.constant 0 : index
    %c0_78 = arith.constant 0 : index
    %132 = vector.load %arg8[%c0_77, %c0_78] : memref<16x16xbf16, #tpu.memory_space<vmem>>, vector<16x16xbf16>
    %cst_79 = arith.constant dense<0.000000e+00> : vector<16x16xf32>
    %133 = tpu.matmul %131, %132, %cst_79 {dimension_numbers = #tpu.dot_dimension_numbers<[1], [0], [0], [1], [0, 0, 1, 1], [], []>} : vector<16x16xbf16>, vector<16x16xbf16>, vector<16x16xf32> -> vector<16x16xf32>
    %c0_80 = arith.constant 0 : index
    %c0_81 = arith.constant 0 : index
    %134 = vector.load %arg9[%c0_80, %c0_81] : memref<1x16xf32, #tpu.memory_space<vmem>>, vector<1x16xf32>
    %135 = vector.broadcast %134 : vector<1x16xf32> to vector<16x16xf32>
    %136 = arith.addf %133, %135 : vector<16x16xf32>
    %137 = vector.extract_strided_slice %136 {offsets = [0, 0], sizes = [4, 16], strides = [1, 1]} : vector<16x16xf32> to vector<4x16xf32>
    %c0_82 = arith.constant 0 : index
    %c0_83 = arith.constant 0 : index
    %c0_84 = arith.constant 0 : index
    %c0_85 = arith.constant 0 : index
    %c0_86 = arith.constant 0 : index
    %c0_87 = arith.constant 0 : index
    %138 = vector.load %arg11[%c0_82, %c0_83, %c0_84, %c0_85, %c0_86, %c0_87] : memref<1x1x4x1x4x16xf32, #tpu.memory_space<vmem>>, vector<1x1x1x1x4x16xf32>
    %139 = vector.shape_cast %138 : vector<1x1x1x1x4x16xf32> to vector<4x16xf32>
    %140 = vector.shape_cast %137 : vector<4x16xf32> to vector<1x1x1x1x4x16xf32>
    tpu.vector_store %arg11[%c0_82, %c0_83, %c0_84, %c0_85, %c0_86, %c0_87], %140 {strides = array<i32>} : memref<1x1x4x1x4x16xf32, #tpu.memory_space<vmem>>, vector<1x1x1x1x4x16xf32>,
    %141 = vector.extract_strided_slice %136 {offsets = [4, 0], sizes = [4, 16], strides = [1, 1]} : vector<16x16xf32> to vector<4x16xf32>
    %c0_88 = arith.constant 0 : index
    %c0_89 = arith.constant 0 : index
    %c1_90 = arith.constant 1 : index
    %c0_91 = arith.constant 0 : index
    %c0_92 = arith.constant 0 : index
    %c0_93 = arith.constant 0 : index
    %142 = vector.load %arg11[%c0_88, %c0_89, %c1_90, %c0_91, %c0_92, %c0_93] : memref<1x1x4x1x4x16xf32, #tpu.memory_space<vmem>>, vector<1x1x1x1x4x16xf32>
    %143 = vector.shape_cast %142 : vector<1x1x1x1x4x16xf32> to vector<4x16xf32>
    %144 = vector.shape_cast %141 : vector<4x16xf32> to vector<1x1x1x1x4x16xf32>
    tpu.vector_store %arg11[%c0_88, %c0_89, %c1_90, %c0_91, %c0_92, %c0_93], %144 {strides = array<i32>} : memref<1x1x4x1x4x16xf32, #tpu.memory_space<vmem>>, vector<1x1x1x1x4x16xf32>,
    %145 = vector.extract_strided_slice %136 {offsets = [8, 0], sizes = [4, 16], strides = [1, 1]} : vector<16x16xf32> to vector<4x16xf32>
    %c0_94 = arith.constant 0 : index
    %c0_95 = arith.constant 0 : index
    %c2_96 = arith.constant 2 : index
    %c0_97 = arith.constant 0 : index
    %c0_98 = arith.constant 0 : index
    %c0_99 = arith.constant 0 : index
    %146 = vector.load %arg11[%c0_94, %c0_95, %c2_96, %c0_97, %c0_98, %c0_99] : memref<1x1x4x1x4x16xf32, #tpu.memory_space<vmem>>, vector<1x1x1x1x4x16xf32>
    %147 = vector.shape_cast %146 : vector<1x1x1x1x4x16xf32> to vector<4x16xf32>
    %148 = vector.shape_cast %145 : vector<4x16xf32> to vector<1x1x1x1x4x16xf32>
    tpu.vector_store %arg11[%c0_94, %c0_95, %c2_96, %c0_97, %c0_98, %c0_99], %148 {strides = array<i32>} : memref<1x1x4x1x4x16xf32, #tpu.memory_space<vmem>>, vector<1x1x1x1x4x16xf32>,
    %149 = vector.extract_strided_slice %136 {offsets = [12, 0], sizes = [4, 16], strides = [1, 1]} : vector<16x16xf32> to vector<4x16xf32>
    %c0_100 = arith.constant 0 : index
    %c0_101 = arith.constant 0 : index
    %c3_102 = arith.constant 3 : index
    %c0_103 = arith.constant 0 : index
    %c0_104 = arith.constant 0 : index
    %c0_105 = arith.constant 0 : index
    %150 = vector.load %arg11[%c0_100, %c0_101, %c3_102, %c0_103, %c0_104, %c0_105] : memref<1x1x4x1x4x16xf32, #tpu.memory_space<vmem>>, vector<1x1x1x1x4x16xf32>
    %151 = vector.shape_cast %150 : vector<1x1x1x1x4x16xf32> to vector<4x16xf32>
    %152 = vector.shape_cast %149 : vector<4x16xf32> to vector<1x1x1x1x4x16xf32>
    tpu.vector_store %arg11[%c0_100, %c0_101, %c3_102, %c0_103, %c0_104, %c0_105], %152 {strides = array<i32>} : memref<1x1x4x1x4x16xf32, #tpu.memory_space<vmem>>, vector<1x1x1x1x4x16xf32>,
    return
  }
  func.func @transform_0(%arg0: i32, %arg1: i32, %arg2: i32) -> (i32, i32, i32, i32, i32, i32) {
    %c0_i32 = arith.constant 0 : i32
    %c0_i32_0 = arith.constant 0 : i32
    %c0_i32_1 = arith.constant 0 : i32
    %c0_i32_2 = arith.constant 0 : i32
    return %arg0, %arg1, %c0_i32, %arg2, %c0_i32_0, %c0_i32_1 : i32, i32, i32, i32, i32, i32
  }
  func.func @transform_1(%arg0: i32, %arg1: i32, %arg2: i32) -> (i32, i32) {
    %c0_i32 = arith.constant 0 : i32
    %c0_i32_0 = arith.constant 0 : i32
    %c0_i32_1 = arith.constant 0 : i32
    return %c0_i32, %c0_i32_0 : i32, i32
  }
  func.func @transform_2(%arg0: i32, %arg1: i32, %arg2: i32) -> (i32, i32) {
    %c0_i32 = arith.constant 0 : i32
    %c0_i32_0 = arith.constant 0 : i32
    %c0_i32_1 = arith.constant 0 : i32
    return %c0_i32, %c0_i32_0 : i32, i32
  }
  func.func @transform_3(%arg0: i32, %arg1: i32, %arg2: i32) -> (i32, i32) {
    %c0_i32 = arith.constant 0 : i32
    %c0_i32_0 = arith.constant 0 : i32
    %c0_i32_1 = arith.constant 0 : i32
    return %c0_i32, %c0_i32_0 : i32, i32
  }
  func.func @transform_4(%arg0: i32, %arg1: i32, %arg2: i32) -> (i32, i32) {
    %c0_i32 = arith.constant 0 : i32
    %c0_i32_0 = arith.constant 0 : i32
    %c0_i32_1 = arith.constant 0 : i32
    return %c0_i32, %c0_i32_0 : i32, i32
  }
  func.func @transform_5(%arg0: i32, %arg1: i32, %arg2: i32) -> (i32, i32) {
    %c0_i32 = arith.constant 0 : i32
    %c0_i32_0 = arith.constant 0 : i32
    %c0_i32_1 = arith.constant 0 : i32
    return %c0_i32, %c0_i32_0 : i32, i32
  }
  func.func @transform_6(%arg0: i32, %arg1: i32, %arg2: i32) -> (i32, i32) {
    %c0_i32 = arith.constant 0 : i32
    %c0_i32_0 = arith.constant 0 : i32
    %c0_i32_1 = arith.constant 0 : i32
    return %c0_i32, %c0_i32_0 : i32, i32
  }
  func.func @transform_7(%arg0: i32, %arg1: i32, %arg2: i32) -> (i32, i32, i32, i32, i32) {
    %c0_i32 = arith.constant 0 : i32
    %c0_i32_0 = arith.constant 0 : i32
    %c0_i32_1 = arith.constant 0 : i32
    %c0_i32_2 = arith.constant 0 : i32
    return %arg1, %arg2, %c0_i32, %c0_i32_0, %c0_i32_1 : i32, i32, i32, i32, i32
  }
  func.func @transform_8(%arg0: i32, %arg1: i32, %arg2: i32) -> (i32, i32, i32, i32, i32, i32) {
    %c0_i32 = arith.constant 0 : i32
    %c0_i32_0 = arith.constant 0 : i32
    %c0_i32_1 = arith.constant 0 : i32
    %c0_i32_2 = arith.constant 0 : i32
    return %arg0, %arg1, %c0_i32, %arg2, %c0_i32_0, %c0_i32_1 : i32, i32, i32, i32, i32, i32
  }
}

module attributes {stable_mosaic.version = 11 : i64} {
  func.func @_fc1_kernel(%arg0: i32, %arg1: memref<128x16xf32, #tpu.memory_space<vmem>>, %arg2: memref<16x64xbf16, #tpu.memory_space<vmem>>, %arg3: memref<1x64xf32, #tpu.memory_space<vmem>>, %arg4: memref<128x64xf32, #tpu.memory_space<vmem>>) attributes {dimension_semantics = [#tpu.dimension_semantics<parallel>], iteration_bounds = array<i64: 1>, scalar_prefetch = 0 : i64, scratch_operands = 0 : i64, tpu.core_type = #tpu.core_type<tc>, window_params = [{transform_indices = @transform_0, window_bounds = array<i64: 128, 16>}, {pipeline_mode = #tpu.pipeline_mode<synchronous>, transform_indices = @transform_1, window_bounds = array<i64: 16, 64>}, {pipeline_mode = #tpu.pipeline_mode<synchronous>, transform_indices = @transform_2, window_bounds = array<i64: 1, 64>}, {transform_indices = @transform_3, window_bounds = array<i64: 128, 64>}]} {
    %c0 = arith.constant 0 : index
    %c0_0 = arith.constant 0 : index
    %0 = vector.load %arg1[%c0, %c0_0] : memref<128x16xf32, #tpu.memory_space<vmem>>, vector<128x16xf32>
    %1 = arith.truncf %0 : vector<128x16xf32> to vector<128x16xbf16>
    %c0_1 = arith.constant 0 : index
    %c0_2 = arith.constant 0 : index
    %2 = vector.load %arg2[%c0_1, %c0_2] : memref<16x64xbf16, #tpu.memory_space<vmem>>, vector<16x64xbf16>
    %cst = arith.constant dense<0.000000e+00> : vector<128x64xf32>
    %3 = tpu.matmul %1, %2, %cst {dimension_numbers = #tpu.dot_dimension_numbers<[1], [0], [0], [1], [0, 0, 1, 1], [], []>} : vector<128x16xbf16>, vector<16x64xbf16>, vector<128x64xf32> -> vector<128x64xf32>
    %c0_3 = arith.constant 0 : index
    %c0_4 = arith.constant 0 : index
    %4 = vector.load %arg3[%c0_3, %c0_4] : memref<1x64xf32, #tpu.memory_space<vmem>>, vector<1x64xf32>
    %5 = vector.broadcast %4 : vector<1x64xf32> to vector<128x64xf32>
    %6 = arith.addf %3, %5 : vector<128x64xf32>
    %c0_5 = arith.constant 0 : index
    %c0_6 = arith.constant 0 : index
    %7 = vector.load %arg4[%c0_5, %c0_6] : memref<128x64xf32, #tpu.memory_space<vmem>>, vector<128x64xf32>
    tpu.vector_store %arg4[%c0_5, %c0_6], %6 {strides = array<i32>} : memref<128x64xf32, #tpu.memory_space<vmem>>, vector<128x64xf32>,
    return
  }
  func.func @transform_0(%arg0: i32) -> (i32, i32) {
    %c0_i32 = arith.constant 0 : i32
    %c0_i32_0 = arith.constant 0 : i32
    return %arg0, %c0_i32 : i32, i32
  }
  func.func @transform_1(%arg0: i32) -> (i32, i32) {
    %c0_i32 = arith.constant 0 : i32
    %c0_i32_0 = arith.constant 0 : i32
    %c0_i32_1 = arith.constant 0 : i32
    return %c0_i32, %c0_i32_0 : i32, i32
  }
  func.func @transform_2(%arg0: i32) -> (i32, i32) {
    %c0_i32 = arith.constant 0 : i32
    %c0_i32_0 = arith.constant 0 : i32
    %c0_i32_1 = arith.constant 0 : i32
    return %c0_i32, %c0_i32_0 : i32, i32
  }
  func.func @transform_3(%arg0: i32) -> (i32, i32) {
    %c0_i32 = arith.constant 0 : i32
    %c0_i32_0 = arith.constant 0 : i32
    return %arg0, %c0_i32 : i32, i32
  }
}

module attributes {stable_mosaic.version = 11 : i64} {
  func.func @_ln_channel_kernel(%arg0: i32, %arg1: i32, %arg2: memref<1x16x64xf32, #tpu.memory_space<vmem>>, %arg3: memref<16x1xf32, #tpu.memory_space<vmem>>, %arg4: memref<16x1xf32, #tpu.memory_space<vmem>>, %arg5: memref<1x16x64xf32, #tpu.memory_space<vmem>>) attributes {dimension_semantics = [#tpu.dimension_semantics<parallel>, #tpu.dimension_semantics<parallel>], iteration_bounds = array<i64: 2, 1>, scalar_prefetch = 0 : i64, scratch_operands = 0 : i64, tpu.core_type = #tpu.core_type<tc>, window_params = [{transform_indices = @transform_0, window_bounds = array<i64: 1, 16, 64>}, {pipeline_mode = #tpu.pipeline_mode<synchronous>, transform_indices = @transform_1, window_bounds = array<i64: 16, 1>}, {pipeline_mode = #tpu.pipeline_mode<synchronous>, transform_indices = @transform_2, window_bounds = array<i64: 16, 1>}, {transform_indices = @transform_3, window_bounds = array<i64: 1, 16, 64>}]} {
    %c0 = arith.constant 0 : index
    %c0_0 = arith.constant 0 : index
    %c0_1 = arith.constant 0 : index
    %0 = vector.load %arg2[%c0, %c0_0, %c0_1] : memref<1x16x64xf32, #tpu.memory_space<vmem>>, vector<1x16x64xf32>
    %1 = vector.shape_cast %0 : vector<1x16x64xf32> to vector<16x64xf32>
    %cst = arith.constant dense<0.000000e+00> : vector<64xf32>
    %2 = vector.multi_reduction <add>, %1, %cst [0] : vector<16x64xf32> to vector<64xf32>
    %3 = vector.shape_cast %2 : vector<64xf32> to vector<1x64xf32>
    %cst_2 = arith.constant 1.600000e+01 : f32
    %4 = vector.broadcast %cst_2 : f32 to vector<1x64xf32>
    %5 = arith.divf %3, %4 : vector<1x64xf32>
    %6 = vector.broadcast %5 : vector<1x64xf32> to vector<16x64xf32>
    %7 = arith.subf %1, %6 : vector<16x64xf32>
    %8 = arith.mulf %7, %7 : vector<16x64xf32>
    %cst_3 = arith.constant dense<0.000000e+00> : vector<64xf32>
    %9 = vector.multi_reduction <add>, %8, %cst_3 [0] : vector<16x64xf32> to vector<64xf32>
    %10 = vector.shape_cast %9 : vector<64xf32> to vector<1x64xf32>
    %cst_4 = arith.constant 1.600000e+01 : f32
    %11 = vector.broadcast %cst_4 : f32 to vector<1x64xf32>
    %12 = arith.divf %10, %11 : vector<1x64xf32>
    %cst_5 = arith.constant 9.99999974E-6 : f32
    %13 = vector.broadcast %cst_5 : f32 to vector<1x64xf32>
    %14 = arith.addf %12, %13 : vector<1x64xf32>
    %15 = math.rsqrt %14 : vector<1x64xf32>
    %16 = vector.broadcast %15 : vector<1x64xf32> to vector<16x64xf32>
    %17 = arith.mulf %7, %16 : vector<16x64xf32>
    %c0_6 = arith.constant 0 : index
    %c0_7 = arith.constant 0 : index
    %18 = vector.load %arg3[%c0_6, %c0_7] : memref<16x1xf32, #tpu.memory_space<vmem>>, vector<16x1xf32>
    %19 = vector.broadcast %18 : vector<16x1xf32> to vector<16x64xf32>
    %20 = arith.mulf %17, %19 : vector<16x64xf32>
    %c0_8 = arith.constant 0 : index
    %c0_9 = arith.constant 0 : index
    %21 = vector.load %arg4[%c0_8, %c0_9] : memref<16x1xf32, #tpu.memory_space<vmem>>, vector<16x1xf32>
    %22 = vector.broadcast %21 : vector<16x1xf32> to vector<16x64xf32>
    %23 = arith.addf %20, %22 : vector<16x64xf32>
    %c0_10 = arith.constant 0 : index
    %c0_11 = arith.constant 0 : index
    %c0_12 = arith.constant 0 : index
    %24 = vector.load %arg5[%c0_10, %c0_11, %c0_12] : memref<1x16x64xf32, #tpu.memory_space<vmem>>, vector<1x16x64xf32>
    %25 = vector.shape_cast %24 : vector<1x16x64xf32> to vector<16x64xf32>
    %26 = vector.shape_cast %23 : vector<16x64xf32> to vector<1x16x64xf32>
    tpu.vector_store %arg5[%c0_10, %c0_11, %c0_12], %26 {strides = array<i32>} : memref<1x16x64xf32, #tpu.memory_space<vmem>>, vector<1x16x64xf32>,
    return
  }
  func.func @transform_0(%arg0: i32, %arg1: i32) -> (i32, i32, i32) {
    %c0_i32 = arith.constant 0 : i32
    %c0_i32_0 = arith.constant 0 : i32
    return %arg0, %c0_i32, %arg1 : i32, i32, i32
  }
  func.func @transform_1(%arg0: i32, %arg1: i32) -> (i32, i32) {
    %c0_i32 = arith.constant 0 : i32
    %c0_i32_0 = arith.constant 0 : i32
    %c0_i32_1 = arith.constant 0 : i32
    return %c0_i32, %c0_i32_0 : i32, i32
  }
  func.func @transform_2(%arg0: i32, %arg1: i32) -> (i32, i32) {
    %c0_i32 = arith.constant 0 : i32
    %c0_i32_0 = arith.constant 0 : i32
    %c0_i32_1 = arith.constant 0 : i32
    return %c0_i32, %c0_i32_0 : i32, i32
  }
  func.func @transform_3(%arg0: i32, %arg1: i32) -> (i32, i32, i32) {
    %c0_i32 = arith.constant 0 : i32
    %c0_i32_0 = arith.constant 0 : i32
    return %arg0, %c0_i32, %arg1 : i32, i32, i32
  }
}

module attributes {stable_mosaic.version = 11 : i64} {
  func.func @_dwconv_skip_kernel(%arg0: i32, %arg1: memref<1x8x8x64xf32, #tpu.memory_space<vmem>>, %arg2: memref<3x3x64xf32, #tpu.memory_space<vmem>>, %arg3: memref<1x64xf32, #tpu.memory_space<vmem>>, %arg4: memref<1x8x8x64xf32, #tpu.memory_space<vmem>>, %arg5: memref<10x10x64xf32, #tpu.memory_space<vmem>>) attributes {dimension_semantics = [#tpu.dimension_semantics<parallel>], iteration_bounds = array<i64: 2>, scalar_prefetch = 0 : i64, scratch_operands = 1 : i64, tpu.core_type = #tpu.core_type<tc>, window_params = [{transform_indices = @transform_0, window_bounds = array<i64: 1, 8, 8, 64>}, {pipeline_mode = #tpu.pipeline_mode<synchronous>, transform_indices = @transform_1, window_bounds = array<i64: 3, 3, 64>}, {pipeline_mode = #tpu.pipeline_mode<synchronous>, transform_indices = @transform_2, window_bounds = array<i64: 1, 64>}, {transform_indices = @transform_3, window_bounds = array<i64: 1, 8, 8, 64>}]} {
    %cst = arith.constant 0.000000e+00 : f32
    %0 = vector.broadcast %cst : f32 to vector<10x10x64xf32>
    %c0 = arith.constant 0 : index
    %c0_0 = arith.constant 0 : index
    %c0_1 = arith.constant 0 : index
    %1 = vector.load %arg5[%c0, %c0_0, %c0_1] : memref<10x10x64xf32, #tpu.memory_space<vmem>>, vector<10x10x64xf32>
    tpu.vector_store %arg5[%c0, %c0_0, %c0_1], %0 {strides = array<i32>} : memref<10x10x64xf32, #tpu.memory_space<vmem>>, vector<10x10x64xf32>,
    %c0_2 = arith.constant 0 : index
    %c0_3 = arith.constant 0 : index
    %c0_4 = arith.constant 0 : index
    %c0_5 = arith.constant 0 : index
    %2 = vector.load %arg1[%c0_2, %c0_3, %c0_4, %c0_5] : memref<1x8x8x64xf32, #tpu.memory_space<vmem>>, vector<1x8x8x64xf32>
    %3 = vector.shape_cast %2 : vector<1x8x8x64xf32> to vector<8x8x64xf32>
    %c1 = arith.constant 1 : index
    %c1_6 = arith.constant 1 : index
    %c0_7 = arith.constant 0 : index
    %4 = vector.load %arg5[%c1, %c1_6, %c0_7] : memref<10x10x64xf32, #tpu.memory_space<vmem>>, vector<8x8x64xf32>
    tpu.vector_store %arg5[%c1, %c1_6, %c0_7], %3 {strides = array<i32>} : memref<10x10x64xf32, #tpu.memory_space<vmem>>, vector<8x8x64xf32>,
    %c0_8 = arith.constant 0 : index
    %c0_9 = arith.constant 0 : index
    %c0_10 = arith.constant 0 : index
    %5 = vector.load %arg2[%c0_8, %c0_9, %c0_10] : memref<3x3x64xf32, #tpu.memory_space<vmem>>, vector<3x3x64xf32>
    %c0_11 = arith.constant 0 : index
    %c0_12 = arith.constant 0 : index
    %c0_13 = arith.constant 0 : index
    %c0_14 = arith.constant 0 : index
    %6 = vector.load %arg1[%c0_11, %c0_12, %c0_13, %c0_14] : memref<1x8x8x64xf32, #tpu.memory_space<vmem>>, vector<1x8x8x64xf32>
    %7 = vector.shape_cast %6 : vector<1x8x8x64xf32> to vector<8x8x64xf32>
    %c0_15 = arith.constant 0 : index
    %c0_16 = arith.constant 0 : index
    %c0_17 = arith.constant 0 : index
    %8 = vector.load %arg5[%c0_15, %c0_16, %c0_17] : memref<10x10x64xf32, #tpu.memory_space<vmem>>, vector<8x8x64xf32>
    %9 = vector.extract_strided_slice %5 {offsets = [0, 0, 0], sizes = [1, 1, 64], strides = [1, 1, 1]} : vector<3x3x64xf32> to vector<1x1x64xf32>
    %10 = vector.shape_cast %9 : vector<1x1x64xf32> to vector<64xf32>
    %11 = vector.shape_cast %10 : vector<64xf32> to vector<1x1x64xf32>
    %12 = vector.broadcast %11 : vector<1x1x64xf32> to vector<8x8x64xf32>
    %13 = arith.mulf %8, %12 : vector<8x8x64xf32>
    %14 = arith.addf %7, %13 : vector<8x8x64xf32>
    %c0_18 = arith.constant 0 : index
    %c1_19 = arith.constant 1 : index
    %c0_20 = arith.constant 0 : index
    %15 = vector.load %arg5[%c0_18, %c1_19, %c0_20] : memref<10x10x64xf32, #tpu.memory_space<vmem>>, vector<8x8x64xf32>
    %16 = vector.extract_strided_slice %5 {offsets = [0, 1, 0], sizes = [1, 1, 64], strides = [1, 1, 1]} : vector<3x3x64xf32> to vector<1x1x64xf32>
    %17 = vector.shape_cast %16 : vector<1x1x64xf32> to vector<64xf32>
    %18 = vector.shape_cast %17 : vector<64xf32> to vector<1x1x64xf32>
    %19 = vector.broadcast %18 : vector<1x1x64xf32> to vector<8x8x64xf32>
    %20 = arith.mulf %15, %19 : vector<8x8x64xf32>
    %21 = arith.addf %14, %20 : vector<8x8x64xf32>
    %c0_21 = arith.constant 0 : index
    %c2 = arith.constant 2 : index
    %c0_22 = arith.constant 0 : index
    %22 = vector.load %arg5[%c0_21, %c2, %c0_22] : memref<10x10x64xf32, #tpu.memory_space<vmem>>, vector<8x8x64xf32>
    %23 = vector.extract_strided_slice %5 {offsets = [0, 2, 0], sizes = [1, 1, 64], strides = [1, 1, 1]} : vector<3x3x64xf32> to vector<1x1x64xf32>
    %24 = vector.shape_cast %23 : vector<1x1x64xf32> to vector<64xf32>
    %25 = vector.shape_cast %24 : vector<64xf32> to vector<1x1x64xf32>
    %26 = vector.broadcast %25 : vector<1x1x64xf32> to vector<8x8x64xf32>
    %27 = arith.mulf %22, %26 : vector<8x8x64xf32>
    %28 = arith.addf %21, %27 : vector<8x8x64xf32>
    %c1_23 = arith.constant 1 : index
    %c0_24 = arith.constant 0 : index
    %c0_25 = arith.constant 0 : index
    %29 = vector.load %arg5[%c1_23, %c0_24, %c0_25] : memref<10x10x64xf32, #tpu.memory_space<vmem>>, vector<8x8x64xf32>
    %30 = vector.extract_strided_slice %5 {offsets = [1, 0, 0], sizes = [1, 1, 64], strides = [1, 1, 1]} : vector<3x3x64xf32> to vector<1x1x64xf32>
    %31 = vector.shape_cast %30 : vector<1x1x64xf32> to vector<64xf32>
    %32 = vector.shape_cast %31 : vector<64xf32> to vector<1x1x64xf32>
    %33 = vector.broadcast %32 : vector<1x1x64xf32> to vector<8x8x64xf32>
    %34 = arith.mulf %29, %33 : vector<8x8x64xf32>
    %35 = arith.addf %28, %34 : vector<8x8x64xf32>
    %c1_26 = arith.constant 1 : index
    %c1_27 = arith.constant 1 : index
    %c0_28 = arith.constant 0 : index
    %36 = vector.load %arg5[%c1_26, %c1_27, %c0_28] : memref<10x10x64xf32, #tpu.memory_space<vmem>>, vector<8x8x64xf32>
    %37 = vector.extract_strided_slice %5 {offsets = [1, 1, 0], sizes = [1, 1, 64], strides = [1, 1, 1]} : vector<3x3x64xf32> to vector<1x1x64xf32>
    %38 = vector.shape_cast %37 : vector<1x1x64xf32> to vector<64xf32>
    %39 = vector.shape_cast %38 : vector<64xf32> to vector<1x1x64xf32>
    %40 = vector.broadcast %39 : vector<1x1x64xf32> to vector<8x8x64xf32>
    %41 = arith.mulf %36, %40 : vector<8x8x64xf32>
    %42 = arith.addf %35, %41 : vector<8x8x64xf32>
    %c1_29 = arith.constant 1 : index
    %c2_30 = arith.constant 2 : index
    %c0_31 = arith.constant 0 : index
    %43 = vector.load %arg5[%c1_29, %c2_30, %c0_31] : memref<10x10x64xf32, #tpu.memory_space<vmem>>, vector<8x8x64xf32>
    %44 = vector.extract_strided_slice %5 {offsets = [1, 2, 0], sizes = [1, 1, 64], strides = [1, 1, 1]} : vector<3x3x64xf32> to vector<1x1x64xf32>
    %45 = vector.shape_cast %44 : vector<1x1x64xf32> to vector<64xf32>
    %46 = vector.shape_cast %45 : vector<64xf32> to vector<1x1x64xf32>
    %47 = vector.broadcast %46 : vector<1x1x64xf32> to vector<8x8x64xf32>
    %48 = arith.mulf %43, %47 : vector<8x8x64xf32>
    %49 = arith.addf %42, %48 : vector<8x8x64xf32>
    %c2_32 = arith.constant 2 : index
    %c0_33 = arith.constant 0 : index
    %c0_34 = arith.constant 0 : index
    %50 = vector.load %arg5[%c2_32, %c0_33, %c0_34] : memref<10x10x64xf32, #tpu.memory_space<vmem>>, vector<8x8x64xf32>
    %51 = vector.extract_strided_slice %5 {offsets = [2, 0, 0], sizes = [1, 1, 64], strides = [1, 1, 1]} : vector<3x3x64xf32> to vector<1x1x64xf32>
    %52 = vector.shape_cast %51 : vector<1x1x64xf32> to vector<64xf32>
    %53 = vector.shape_cast %52 : vector<64xf32> to vector<1x1x64xf32>
    %54 = vector.broadcast %53 : vector<1x1x64xf32> to vector<8x8x64xf32>
    %55 = arith.mulf %50, %54 : vector<8x8x64xf32>
    %56 = arith.addf %49, %55 : vector<8x8x64xf32>
    %c2_35 = arith.constant 2 : index
    %c1_36 = arith.constant 1 : index
    %c0_37 = arith.constant 0 : index
    %57 = vector.load %arg5[%c2_35, %c1_36, %c0_37] : memref<10x10x64xf32, #tpu.memory_space<vmem>>, vector<8x8x64xf32>
    %58 = vector.extract_strided_slice %5 {offsets = [2, 1, 0], sizes = [1, 1, 64], strides = [1, 1, 1]} : vector<3x3x64xf32> to vector<1x1x64xf32>
    %59 = vector.shape_cast %58 : vector<1x1x64xf32> to vector<64xf32>
    %60 = vector.shape_cast %59 : vector<64xf32> to vector<1x1x64xf32>
    %61 = vector.broadcast %60 : vector<1x1x64xf32> to vector<8x8x64xf32>
    %62 = arith.mulf %57, %61 : vector<8x8x64xf32>
    %63 = arith.addf %56, %62 : vector<8x8x64xf32>
    %c2_38 = arith.constant 2 : index
    %c2_39 = arith.constant 2 : index
    %c0_40 = arith.constant 0 : index
    %64 = vector.load %arg5[%c2_38, %c2_39, %c0_40] : memref<10x10x64xf32, #tpu.memory_space<vmem>>, vector<8x8x64xf32>
    %65 = vector.extract_strided_slice %5 {offsets = [2, 2, 0], sizes = [1, 1, 64], strides = [1, 1, 1]} : vector<3x3x64xf32> to vector<1x1x64xf32>
    %66 = vector.shape_cast %65 : vector<1x1x64xf32> to vector<64xf32>
    %67 = vector.shape_cast %66 : vector<64xf32> to vector<1x1x64xf32>
    %68 = vector.broadcast %67 : vector<1x1x64xf32> to vector<8x8x64xf32>
    %69 = arith.mulf %64, %68 : vector<8x8x64xf32>
    %70 = arith.addf %63, %69 : vector<8x8x64xf32>
    %c0_41 = arith.constant 0 : index
    %c0_42 = arith.constant 0 : index
    %71 = vector.load %arg3[%c0_41, %c0_42] : memref<1x64xf32, #tpu.memory_space<vmem>>, vector<1x64xf32>
    %72 = vector.shape_cast %71 : vector<1x64xf32> to vector<1x1x64xf32>
    %73 = vector.broadcast %72 : vector<1x1x64xf32> to vector<8x8x64xf32>
    %74 = arith.addf %70, %73 : vector<8x8x64xf32>
    %c0_43 = arith.constant 0 : index
    %c0_44 = arith.constant 0 : index
    %c0_45 = arith.constant 0 : index
    %c0_46 = arith.constant 0 : index
    %75 = vector.load %arg4[%c0_43, %c0_44, %c0_45, %c0_46] : memref<1x8x8x64xf32, #tpu.memory_space<vmem>>, vector<1x8x8x64xf32>
    %76 = vector.shape_cast %75 : vector<1x8x8x64xf32> to vector<8x8x64xf32>
    %77 = vector.shape_cast %74 : vector<8x8x64xf32> to vector<1x8x8x64xf32>
    tpu.vector_store %arg4[%c0_43, %c0_44, %c0_45, %c0_46], %77 {strides = array<i32>} : memref<1x8x8x64xf32, #tpu.memory_space<vmem>>, vector<1x8x8x64xf32>,
    return
  }
  func.func @transform_0(%arg0: i32) -> (i32, i32, i32, i32) {
    %c0_i32 = arith.constant 0 : i32
    %c0_i32_0 = arith.constant 0 : i32
    %c0_i32_1 = arith.constant 0 : i32
    %c0_i32_2 = arith.constant 0 : i32
    return %arg0, %c0_i32, %c0_i32_0, %c0_i32_1 : i32, i32, i32, i32
  }
  func.func @transform_1(%arg0: i32) -> (i32, i32, i32) {
    %c0_i32 = arith.constant 0 : i32
    %c0_i32_0 = arith.constant 0 : i32
    %c0_i32_1 = arith.constant 0 : i32
    %c0_i32_2 = arith.constant 0 : i32
    return %c0_i32, %c0_i32_0, %c0_i32_1 : i32, i32, i32
  }
  func.func @transform_2(%arg0: i32) -> (i32, i32) {
    %c0_i32 = arith.constant 0 : i32
    %c0_i32_0 = arith.constant 0 : i32
    %c0_i32_1 = arith.constant 0 : i32
    return %c0_i32, %c0_i32_0 : i32, i32
  }
  func.func @transform_3(%arg0: i32) -> (i32, i32, i32, i32) {
    %c0_i32 = arith.constant 0 : i32
    %c0_i32_0 = arith.constant 0 : i32
    %c0_i32_1 = arith.constant 0 : i32
    %c0_i32_2 = arith.constant 0 : i32
    return %arg0, %c0_i32, %c0_i32_0, %c0_i32_1 : i32, i32, i32, i32
  }
}

module attributes {stable_mosaic.version = 11 : i64} {
  func.func @_ffn_out_kernel(%arg0: i32, %arg1: memref<128x64xf32, #tpu.memory_space<vmem>>, %arg2: memref<1x64xf32, #tpu.memory_space<vmem>>, %arg3: memref<1x64xf32, #tpu.memory_space<vmem>>, %arg4: memref<64x16xbf16, #tpu.memory_space<vmem>>, %arg5: memref<1x16xf32, #tpu.memory_space<vmem>>, %arg6: memref<128x16xf32, #tpu.memory_space<vmem>>, %arg7: memref<128x16xf32, #tpu.memory_space<vmem>>) attributes {dimension_semantics = [#tpu.dimension_semantics<parallel>], iteration_bounds = array<i64: 1>, scalar_prefetch = 0 : i64, scratch_operands = 0 : i64, tpu.core_type = #tpu.core_type<tc>, window_params = [{transform_indices = @transform_0, window_bounds = array<i64: 128, 64>}, {pipeline_mode = #tpu.pipeline_mode<synchronous>, transform_indices = @transform_1, window_bounds = array<i64: 1, 64>}, {pipeline_mode = #tpu.pipeline_mode<synchronous>, transform_indices = @transform_2, window_bounds = array<i64: 1, 64>}, {pipeline_mode = #tpu.pipeline_mode<synchronous>, transform_indices = @transform_3, window_bounds = array<i64: 64, 16>}, {pipeline_mode = #tpu.pipeline_mode<synchronous>, transform_indices = @transform_4, window_bounds = array<i64: 1, 16>}, {transform_indices = @transform_5, window_bounds = array<i64: 128, 16>}, {transform_indices = @transform_6, window_bounds = array<i64: 128, 16>}]} {
    %c0 = arith.constant 0 : index
    %c0_0 = arith.constant 0 : index
    %0 = vector.load %arg1[%c0, %c0_0] : memref<128x64xf32, #tpu.memory_space<vmem>>, vector<128x64xf32>
    %cst = arith.constant dense<0.000000e+00> : vector<128xf32>
    %1 = vector.multi_reduction <add>, %0, %cst [1] : vector<128x64xf32> to vector<128xf32>
    %2 = vector.shape_cast %1 : vector<128xf32> to vector<128x1xf32>
    %cst_1 = arith.constant 6.400000e+01 : f32
    %3 = vector.broadcast %cst_1 : f32 to vector<128x1xf32>
    %4 = arith.divf %2, %3 : vector<128x1xf32>
    %5 = vector.broadcast %4 : vector<128x1xf32> to vector<128x64xf32>
    %6 = arith.subf %0, %5 : vector<128x64xf32>
    %7 = arith.mulf %6, %6 : vector<128x64xf32>
    %cst_2 = arith.constant dense<0.000000e+00> : vector<128xf32>
    %8 = vector.multi_reduction <add>, %7, %cst_2 [1] : vector<128x64xf32> to vector<128xf32>
    %9 = vector.shape_cast %8 : vector<128xf32> to vector<128x1xf32>
    %cst_3 = arith.constant 6.400000e+01 : f32
    %10 = vector.broadcast %cst_3 : f32 to vector<128x1xf32>
    %11 = arith.divf %9, %10 : vector<128x1xf32>
    %cst_4 = arith.constant 9.99999974E-6 : f32
    %12 = vector.broadcast %cst_4 : f32 to vector<128x1xf32>
    %13 = arith.addf %11, %12 : vector<128x1xf32>
    %14 = math.rsqrt %13 : vector<128x1xf32>
    %15 = vector.broadcast %14 : vector<128x1xf32> to vector<128x64xf32>
    %16 = arith.mulf %6, %15 : vector<128x64xf32>
    %c0_5 = arith.constant 0 : index
    %c0_6 = arith.constant 0 : index
    %17 = vector.load %arg2[%c0_5, %c0_6] : memref<1x64xf32, #tpu.memory_space<vmem>>, vector<1x64xf32>
    %18 = vector.broadcast %17 : vector<1x64xf32> to vector<128x64xf32>
    %19 = arith.mulf %16, %18 : vector<128x64xf32>
    %c0_7 = arith.constant 0 : index
    %c0_8 = arith.constant 0 : index
    %20 = vector.load %arg3[%c0_7, %c0_8] : memref<1x64xf32, #tpu.memory_space<vmem>>, vector<1x64xf32>
    %21 = vector.broadcast %20 : vector<1x64xf32> to vector<128x64xf32>
    %22 = arith.addf %19, %21 : vector<128x64xf32>
    %cst_9 = arith.constant 0.707106769 : f32
    %23 = vector.broadcast %cst_9 : f32 to vector<128x64xf32>
    %24 = arith.mulf %22, %23 : vector<128x64xf32>
    %25 = math.absf %24 : vector<128x64xf32>
    %cst_10 = arith.constant 0.327591091 : f32
    %26 = vector.broadcast %cst_10 : f32 to vector<128x64xf32>
    %27 = arith.mulf %26, %25 : vector<128x64xf32>
    %cst_11 = arith.constant 1.000000e+00 : f32
    %28 = vector.broadcast %cst_11 : f32 to vector<128x64xf32>
    %29 = arith.addf %28, %27 : vector<128x64xf32>
    %cst_12 = arith.constant 1.000000e+00 : f32
    %30 = vector.broadcast %cst_12 : f32 to vector<128x64xf32>
    %31 = arith.divf %30, %29 : vector<128x64xf32>
    %cst_13 = arith.constant 1.06140542 : f32
    %32 = vector.broadcast %cst_13 : f32 to vector<128x64xf32>
    %33 = arith.mulf %31, %32 : vector<128x64xf32>
    %cst_14 = arith.constant -1.45315206 : f32
    %34 = vector.broadcast %cst_14 : f32 to vector<128x64xf32>
    %35 = arith.addf %34, %33 : vector<128x64xf32>
    %36 = arith.mulf %31, %35 : vector<128x64xf32>
    %cst_15 = arith.constant 1.42141378 : f32
    %37 = vector.broadcast %cst_15 : f32 to vector<128x64xf32>
    %38 = arith.addf %37, %36 : vector<128x64xf32>
    %39 = arith.mulf %31, %38 : vector<128x64xf32>
    %cst_16 = arith.constant -0.284496725 : f32
    %40 = vector.broadcast %cst_16 : f32 to vector<128x64xf32>
    %41 = arith.addf %40, %39 : vector<128x64xf32>
    %42 = arith.mulf %31, %41 : vector<128x64xf32>
    %cst_17 = arith.constant 0.254829586 : f32
    %43 = vector.broadcast %cst_17 : f32 to vector<128x64xf32>
    %44 = arith.addf %43, %42 : vector<128x64xf32>
    %45 = arith.mulf %31, %44 : vector<128x64xf32>
    %cst_18 = arith.constant 0.000000e+00 : f32
    %46 = vector.broadcast %cst_18 : f32 to vector<128x64xf32>
    %47 = arith.subf %46, %25 : vector<128x64xf32>
    %48 = arith.mulf %47, %25 : vector<128x64xf32>
    %49 = math.exp %48 : vector<128x64xf32>
    %50 = arith.mulf %45, %49 : vector<128x64xf32>
    %cst_19 = arith.constant 1.000000e+00 : f32
    %51 = vector.broadcast %cst_19 : f32 to vector<128x64xf32>
    %52 = arith.subf %51, %50 : vector<128x64xf32>
    %cst_20 = arith.constant 0.000000e+00 : f32
    %53 = vector.broadcast %cst_20 : f32 to vector<128x64xf32>
    %54 = arith.cmpf olt, %24, %53 : vector<128x64xf32>
    %cst_21 = arith.constant 0.000000e+00 : f32
    %55 = vector.broadcast %cst_21 : f32 to vector<128x64xf32>
    %56 = arith.subf %55, %52 : vector<128x64xf32>
    %57 = arith.select %54, %56, %52 : vector<128x64xi1>, vector<128x64xf32>
    %cst_22 = arith.constant 5.000000e-01 : f32
    %58 = vector.broadcast %cst_22 : f32 to vector<128x64xf32>
    %59 = arith.mulf %58, %22 : vector<128x64xf32>
    %cst_23 = arith.constant 1.000000e+00 : f32
    %60 = vector.broadcast %cst_23 : f32 to vector<128x64xf32>
    %61 = arith.addf %60, %57 : vector<128x64xf32>
    %62 = arith.mulf %59, %61 : vector<128x64xf32>
    %63 = arith.truncf %62 : vector<128x64xf32> to vector<128x64xbf16>
    %c0_24 = arith.constant 0 : index
    %c0_25 = arith.constant 0 : index
    %64 = vector.load %arg4[%c0_24, %c0_25] : memref<64x16xbf16, #tpu.memory_space<vmem>>, vector<64x16xbf16>
    %cst_26 = arith.constant dense<0.000000e+00> : vector<128x16xf32>
    %65 = tpu.matmul %63, %64, %cst_26 {dimension_numbers = #tpu.dot_dimension_numbers<[1], [0], [0], [1], [0, 0, 1, 1], [], []>} : vector<128x64xbf16>, vector<64x16xbf16>, vector<128x16xf32> -> vector<128x16xf32>
    %c0_27 = arith.constant 0 : index
    %c0_28 = arith.constant 0 : index
    %66 = vector.load %arg5[%c0_27, %c0_28] : memref<1x16xf32, #tpu.memory_space<vmem>>, vector<1x16xf32>
    %67 = vector.broadcast %66 : vector<1x16xf32> to vector<128x16xf32>
    %68 = arith.addf %65, %67 : vector<128x16xf32>
    %c0_29 = arith.constant 0 : index
    %c0_30 = arith.constant 0 : index
    %69 = vector.load %arg6[%c0_29, %c0_30] : memref<128x16xf32, #tpu.memory_space<vmem>>, vector<128x16xf32>
    %70 = arith.addf %68, %69 : vector<128x16xf32>
    %c0_31 = arith.constant 0 : index
    %c0_32 = arith.constant 0 : index
    %71 = vector.load %arg7[%c0_31, %c0_32] : memref<128x16xf32, #tpu.memory_space<vmem>>, vector<128x16xf32>
    tpu.vector_store %arg7[%c0_31, %c0_32], %70 {strides = array<i32>} : memref<128x16xf32, #tpu.memory_space<vmem>>, vector<128x16xf32>,
    return
  }
  func.func @transform_0(%arg0: i32) -> (i32, i32) {
    %c0_i32 = arith.constant 0 : i32
    %c0_i32_0 = arith.constant 0 : i32
    return %arg0, %c0_i32 : i32, i32
  }
  func.func @transform_1(%arg0: i32) -> (i32, i32) {
    %c0_i32 = arith.constant 0 : i32
    %c0_i32_0 = arith.constant 0 : i32
    %c0_i32_1 = arith.constant 0 : i32
    return %c0_i32, %c0_i32_0 : i32, i32
  }
  func.func @transform_2(%arg0: i32) -> (i32, i32) {
    %c0_i32 = arith.constant 0 : i32
    %c0_i32_0 = arith.constant 0 : i32
    %c0_i32_1 = arith.constant 0 : i32
    return %c0_i32, %c0_i32_0 : i32, i32
  }
  func.func @transform_3(%arg0: i32) -> (i32, i32) {
    %c0_i32 = arith.constant 0 : i32
    %c0_i32_0 = arith.constant 0 : i32
    %c0_i32_1 = arith.constant 0 : i32
    return %c0_i32, %c0_i32_0 : i32, i32
  }
  func.func @transform_4(%arg0: i32) -> (i32, i32) {
    %c0_i32 = arith.constant 0 : i32
    %c0_i32_0 = arith.constant 0 : i32
    %c0_i32_1 = arith.constant 0 : i32
    return %c0_i32, %c0_i32_0 : i32, i32
  }
  func.func @transform_5(%arg0: i32) -> (i32, i32) {
    %c0_i32 = arith.constant 0 : i32
    %c0_i32_0 = arith.constant 0 : i32
    return %arg0, %c0_i32 : i32, i32
  }
  func.func @transform_6(%arg0: i32) -> (i32, i32) {
    %c0_i32 = arith.constant 0 : i32
    %c0_i32_0 = arith.constant 0 : i32
    return %arg0, %c0_i32 : i32, i32
  }
}

</mosaic_0001>

<llo_original>
// kernel: sw_mixffn_block_forward.6
$region0: #{sw_mixffn_block_forward.6}
  #allocation0 [shape = 'u32[]', space=smem, size = 0x4, offset = 0x4, fixed_abs, tag = 'smem constant byte address 0x4 - core index']
  #allocation1 [shape = 'u32[144,128]{1,0:T(1,128)}', space=vmem, size = 0x12000, scoped, tag = 'internal scratch']
  %s0 = inlined_call_operand.vmem [shape: f32[2,16,64], index: 0, kind: input, shape index: {}]
  %s1 = inlined_call_operand.vmem [shape: f32[16,1], index: 1, kind: input, shape index: {}]
  %s2 = inlined_call_operand.vmem [shape: f32[16,1], index: 2, kind: input, shape index: {}]
  %s3 = inlined_call_operand.vmem [shape: f32[2,16,64], index: 3, kind: output, shape index: {}]
  %s4 = sld [smem:[#allocation0]]
  $region45: #{sw_mixffn_block_forward.6} parent=0
    _
  %s6 = ssub.s32 1, %s4
  %s7 = scalar_select 0, %s6, %s4
  loop: start=0, step=1, limit=4
  $region2: #{sw_mixffn_block_forward.6} parent=0 // loop_pre_header
    _
  $region3: #{sw_mixffn_block_forward.6} parent=0 // loop_header
    %s9 = sphi 0, %s13
    %p10 = scmp.ge.s32.totalorder %s9, 4
    %s16 = sphi 0, %s28
    %s17 = sphi 0, %s24
    %s18 = sphi 0, %s16
    %s19 = sphi 0, %s17
    %s20 = sphi 0, %s18
    %s21 = sphi 0, %s19
    %s33 = sphi 0, %s35
    %s36 = sphi 0, %s33
    %s37 = sphi 0, %s36
    %s53 = sphi 0, %s37
    %s57 = sphi 0, %s57
    %s59 = sphi 0, %s57
    %s60 = sphi 0, %s59
    %s74 = sphi 0, %s60
    %s78 = sphi 0, %s78
    %s80 = sphi 0, %s78
    %s81 = sphi 0, %s80
    %s95 = sphi 0, %s81
    %s103 = sphi 0, %s105
    %s106 = sphi 0, %s103
    %s107 = sphi 0, %s106
    %s123 = sphi 0, %s107
  $region4: #{sw_mixffn_block_forward.6} parent=0 // loop_header_branch
    %12 = sbr.rel (%p10) target = $region8
  $region5: #{sw_mixffn_block_forward.6} parent=0 // loop_body
    %s14 = ssub.s32 %s9, 1
    %s15 = ssub.s32 %s9, 2
    %s22 = sadd.s32 1, %s17
    %p23 = scmp.ge.s32.totalorder %s22, 1
    %s24 = scalar_select %p23, 0, %s22
    %s25 = sadd.s32 1, %s16
    %s26 = scalar_select %p23, %s25, %s16
    %p27 = scmp.ge.s32.totalorder %s26, 2
    %s28 = scalar_select %p27, 0, %s26
    %s29 = ssub.s32 %s16, %s28
    %s30 = ssub.s32 %s17, %s24
    %s31 = sor.u32 %s29, %s30
    %p32 = scmp.eq.s32.totalorder %s31, 0
    %s34 = sadd.s32 %s33, 1
    %s35 = scalar_select %p32, %s33, %s34
    %p38 = pneg %p32
    %p39 = scmp.eq.s32.totalorder %s9, 1
    %p40 = por %p38, %p39
    %p41 = scmp.ne.s32.totalorder %s33, %s36
    %p42 = scmp.eq.s32.totalorder %s9, 0
    %p43 = por %p41, %p42
    %p44 = scmp.ne.s32.totalorder %s33, %s36
    %p45 = scmp.eq.s32.totalorder %s14, 1
    %p46 = por %p44, %p45
    %p47 = scmp.ne.s32.totalorder %s36, %s37
    %p48 = scmp.eq.s32.totalorder %s14, 0
    %p49 = por %p47, %p48
    %p50 = scmp.ne.s32.totalorder %s36, %s37
    %p51 = scmp.eq.s32.totalorder %s15, 1
    %p52 = por %p50, %p51
    %p54 = scmp.ne.s32.totalorder %s37, %s53
    %p55 = scmp.eq.s32.totalorder %s15, 0
    %p56 = por %p54, %p55
    %s58 = sadd.s32 %s57, 1
    %p61 = scmp.eq.s32.totalorder %s9, 1
    %p62 = scmp.ne.s32.totalorder %s57, %s59
    %p63 = scmp.eq.s32.totalorder %s9, 0
    %p64 = por %p62, %p63
    %p65 = scmp.ne.s32.totalorder %s57, %s59
    %p66 = scmp.eq.s32.totalorder %s14, 1
    %p67 = por %p65, %p66
    %p68 = scmp.ne.s32.totalorder %s59, %s60
    %p69 = scmp.eq.s32.totalorder %s14, 0
    %p70 = por %p68, %p69
    %p71 = scmp.ne.s32.totalorder %s59, %s60
    %p72 = scmp.eq.s32.totalorder %s15, 1
    %p73 = por %p71, %p72
    %p75 = scmp.ne.s32.totalorder %s60, %s74
    %p76 = scmp.eq.s32.totalorder %s15, 0
    %p77 = por %p75, %p76
    %s79 = sadd.s32 %s78, 1
    %p82 = scmp.eq.s32.totalorder %s9, 1
    %p83 = scmp.ne.s32.totalorder %s78, %s80
    %p84 = scmp.eq.s32.totalorder %s9, 0
    %p85 = por %p83, %p84
    %p86 = scmp.ne.s32.totalorder %s78, %s80
    %p87 = scmp.eq.s32.totalorder %s14, 1
    %p88 = por %p86, %p87
    %p89 = scmp.ne.s32.totalorder %s80, %s81
    %p90 = scmp.eq.s32.totalorder %s14, 0
    %p91 = por %p89, %p90
    %p92 = scmp.ne.s32.totalorder %s80, %s81
    %p93 = scmp.eq.s32.totalorder %s15, 1
    %p94 = por %p92, %p93
    %p96 = scmp.ne.s32.totalorder %s81, %s95
    %p97 = scmp.eq.s32.totalorder %s15, 0
    %p98 = por %p96, %p97
    %s99 = ssub.s32 %s16, %s28
    %s100 = ssub.s32 %s17, %s24
    %s101 = sor.u32 %s99, %s100
    %p102 = scmp.eq.s32.totalorder %s101, 0
    %s104 = sadd.s32 %s103, 1
    %s105 = scalar_select %p102, %s103, %s104
    %p108 = pneg %p102
    %p109 = scmp.eq.s32.totalorder %s9, 1
    %p110 = por %p108, %p109
    %p111 = scmp.ne.s32.totalorder %s103, %s106
    %p112 = scmp.eq.s32.totalorder %s9, 0
    %p113 = por %p111, %p112
    %p114 = scmp.ne.s32.totalorder %s103, %s106
    %p115 = scmp.eq.s32.totalorder %s14, 1
    %p116 = por %p114, %p115
    %p117 = scmp.ne.s32.totalorder %s106, %s107
    %p118 = scmp.eq.s32.totalorder %s14, 0
    %p119 = por %p117, %p118
    %p120 = scmp.ne.s32.totalorder %s106, %s107
    %p121 = scmp.eq.s32.totalorder %s15, 1
    %p122 = por %p120, %p121
    %p124 = scmp.ne.s32.totalorder %s107, %s123
    %p125 = scmp.eq.s32.totalorder %s15, 0
    %p126 = por %p124, %p125
    %p127 = scmp.le.s32.totalorder 1, %s9
    %p128 = scmp.lt.s32.totalorder %s9, 3
    %p129 = pnand %p127, %p128
    %p130 = pneg %p129
    // Predicated region
    $region9: #{sw_mixffn_block_forward.6} parent=5 // pred_check
      _
    $region10: #{sw_mixffn_block_forward.6} parent=5 // pred_check_branch
      %132 = sbr.rel (%p129) target = $region12
    $region11: #{sw_mixffn_block_forward.6} parent=5 // pred_region
      %s133 = ssub.s32 %s9, 1
      // Predicated region
      $region13: #{sw_mixffn_block_forward.6} parent=11 // pred_check
        %p134 = pneg %p70
      $region14: #{sw_mixffn_block_forward.6} parent=11 // pred_check_branch
        %136 = sbr.rel (%p134) target = $region16
      $region15: #{sw_mixffn_block_forward.6} parent=11 // pred_region
        _
      $region16: #{sw_mixffn_block_forward.6} parent=11 // pred_fallthru
        _
      // Predicated region
      $region17: #{sw_mixffn_block_forward.6} parent=11 // pred_check
        %p137 = pneg %p91
      $region18: #{sw_mixffn_block_forward.6} parent=11 // pred_check_branch
        %139 = sbr.rel (%p137) target = $region20
      $region19: #{sw_mixffn_block_forward.6} parent=11 // pred_region
        _
      $region20: #{sw_mixffn_block_forward.6} parent=11 // pred_fallthru
        _
    $region12: #{sw_mixffn_block_forward.6} parent=5 // pred_fallthru
      _
    %p140 = scmp.lt.s32.totalorder %s9, 2
    // Predicated region
    $region21: #{sw_mixffn_block_forward.6} parent=5 // pred_check
      %p141 = pneg %p140
    $region22: #{sw_mixffn_block_forward.6} parent=5 // pred_check_branch
      %143 = sbr.rel (%p141) target = $region24
    $region23: #{sw_mixffn_block_forward.6} parent=5 // pred_region
      // Predicated region
      $region25: #{sw_mixffn_block_forward.6} parent=23 // pred_check
        %p144 = pneg %p43
      $region26: #{sw_mixffn_block_forward.6} parent=23 // pred_check_branch
        %146 = sbr.rel (%p144) target = $region28
      $region27: #{sw_mixffn_block_forward.6} parent=23 // pred_region
        %p147 = scmp.lt.s32.totalorder %s16, 1
        %s148 = scalar_select %p147, %s16, 1
        %p149 = scmp.lt.s32.totalorder %s17, 0
        %s150 = scalar_select %p149, %s17, 0
        %s151 = smul.addr %s148, 2
        %s152 = sadd.s32 %s150, %s151
        %s153 = smul.addr %s152, 8
        %s154 = scalar_lea.vmem %s0, %s153
      $region28: #{sw_mixffn_block_forward.6} parent=23 // pred_fallthru
        _
    $region24: #{sw_mixffn_block_forward.6} parent=5 // pred_fallthru
      _
    %p155 = scmp.le.s32.totalorder 1, %s9
    %p156 = scmp.lt.s32.totalorder %s9, 3
    %p157 = pnand %p155, %p156
    %p158 = pneg %p157
    // Predicated region
    $region29: #{sw_mixffn_block_forward.6} parent=5 // pred_check
      _
    $region30: #{sw_mixffn_block_forward.6} parent=5 // pred_check_branch
      %160 = sbr.rel (%p157) target = $region32
    $region31: #{sw_mixffn_block_forward.6} parent=5 // pred_region
      %s161 = ssub.s32 %s9, 1
      %p162 = scmp.lt.s32.totalorder %s18, 1
      %s163 = scalar_select %p162, %s18, 1
      %p164 = scmp.lt.s32.totalorder %s19, 0
      %s165 = scalar_select %p164, %s19, 0
      %s166 = smul.addr %s163, 2
      %s167 = sadd.s32 %s165, %s166
      %s168 = smul.addr %s167, 8
      %s169 = scalar_lea.vmem %s0, %s168
      %p170 = pneg %p49
      %p171 = pneg %p46
      %p172 = pneg %p70
      %p173 = pneg %p67
      %p174 = pneg %p91
      %p175 = pneg %p88
      %p176 = pneg %p119
      %p177 = pneg %p116
      %p178 = scmp.lt.s32.totalorder %s18, 1
      %s179 = scalar_select %p178, %s18, 1
      %p180 = scmp.lt.s32.totalorder %s19, 0
      %s181 = scalar_select %p180, %s19, 0
      %s182 = smul.addr %s179, 2
      %s183 = sadd.s32 %s181, %s182
      %s184 = smul.addr %s183, 8
      %s185 = scalar_lea.vmem %s3, %s184
      %p186 = scmp.lt.s32.totalorder %s18, 1
      %s187 = scalar_select %p186, %s18, 1
      %p188 = scmp.lt.s32.totalorder %s19, 0
      %s189 = scalar_select %p188, %s19, 0
      %s190 = smul.addr %s187, 2
      %s191 = sadd.s32 %s189, %s190
      %s192 = smul.addr %s191, 8
      %s193 = scalar_lea.vmem %s0, %s192
      %p194 = scmp.lt.s32.totalorder %s18, 1
      %s195 = scalar_select %p194, %s18, 1
      %p196 = scmp.lt.s32.totalorder %s19, 0
      %s197 = scalar_select %p196, %s19, 0
      %s198 = smul.addr %s195, 2
      %s199 = sadd.s32 %s197, %s198
      %s200 = smul.addr %s199, 8
      %s201 = scalar_lea.vmem %s3, %s200
      %v202 = vld [vmem:[%s193] sm:$0xff]
      %v203 = vld [vmem:[%s193 + $0x8] sm:$0xff]
      %vm204 = vcmask 523264
      %v205 = vsel %vm204, %v202, 0.0
      %v206 = vsel %vm204, %v203, 0.0
      %v207 = vadd.f32 %v205, %v206
      %v208 = vrot.slane %v207, 4
      %v209 = vadd.f32 %v207, %v208
      %v210 = vrot.slane %v209, 2
      %v211 = vadd.f32 %v209, %v210
      %v212 = vrot.slane %v211, 1
      %v213 = vadd.f32 %v211, %v212
      %v214 = vrcp.pop 16.0
      %v215 = vmul.f32 %v213, %v214
      %v216 = vsub.f32 %v202, %v215
      %v217 = vsub.f32 %v203, %v215
      %v218 = vmul.f32 %v216, %v216
      %v219 = vmul.f32 %v217, %v217
      %v220 = vsel %vm204, %v218, 0.0
      %v221 = vsel %vm204, %v219, 0.0
      %v222 = vadd.f32 %v220, %v221
      %v223 = vrot.slane %v222, 4
      %v224 = vadd.f32 %v222, %v223
      %v225 = vrot.slane %v224, 2
      %v226 = vadd.f32 %v224, %v225
      %v227 = vrot.slane %v226, 1
      %v228 = vadd.f32 %v226, %v227
      %v229 = vmul.f32 %v228, %v214
      %v230 = vadd.f32 %v229, 1e-05
      %v231 = vrsqrt.pop %v230
      %v232 = vmul.f32 %v216, %v231
      %v233 = vmul.f32 %v217, %v231
      %v234 = vld [vmem:[%s1] sm:$0xff]
      %v235 = vld [vmem:[%s1 + $0x8] sm:$0xff]
      %237 = vset.pattern.permute.xlu0 0
      %238 = vperm.xlu0 %237, %v234
      %v239 = vpop.permute.xlu0 %238
      %242 = vset.pattern.permute.xlu0 0
      %243 = vperm.xlu0 %242, %v235
      %v244 = vpop.permute.xlu0 %243
      %v246 = vmul.f32 %v232, %v239
      %v247 = vmul.f32 %v233, %v244
      %v248 = vld [vmem:[%s2] sm:$0xff]
      %v249 = vld [vmem:[%s2 + $0x8] sm:$0xff]
      %251 = vset.pattern.permute.xlu0 0
      %252 = vperm.xlu0 %251, %v248
      %v253 = vpop.permute.xlu0 %252
      %256 = vset.pattern.permute.xlu0 0
      %257 = vperm.xlu0 %256, %v249
      %v258 = vpop.permute.xlu0 %257
      %v260 = vadd.f32 %v246, %v253
      %v261 = vadd.f32 %v247, %v258
      %262 = vst.msk [vmem:[%s201] sm:$0xff] %vm204, %v260
      %263 = vst.msk [vmem:[%s201 + $0x8] sm:$0xff] %vm204, %v261
      %p264 = scmp.lt.s32.totalorder %s18, 1
      %s265 = scalar_select %p264, %s18, 1
      %p266 = scmp.lt.s32.totalorder %s19, 0
      %s267 = scalar_select %p266, %s19, 0
      %s268 = smul.addr %s265, 2
      %s269 = sadd.s32 %s267, %s268
      %s270 = smul.addr %s269, 8
      %s271 = scalar_lea.vmem %s3, %s270
      // Predicated region
      $region33: #{sw_mixffn_block_forward.6} parent=31 // pred_check
        %p272 = pneg %p116
      $region34: #{sw_mixffn_block_forward.6} parent=31 // pred_check_branch
        %274 = sbr.rel (%p272) target = $region36
      $region35: #{sw_mixffn_block_forward.6} parent=31 // pred_region
        _
      $region36: #{sw_mixffn_block_forward.6} parent=31 // pred_fallthru
        _
    $region32: #{sw_mixffn_block_forward.6} parent=5 // pred_fallthru
      _
    %p275 = scmp.le.s32.totalorder 2, %s9
    // Predicated region
    $region37: #{sw_mixffn_block_forward.6} parent=5 // pred_check
      %p276 = pneg %p275
    $region38: #{sw_mixffn_block_forward.6} parent=5 // pred_check_branch
      %278 = sbr.rel (%p276) target = $region40
    $region39: #{sw_mixffn_block_forward.6} parent=5 // pred_region
      %s279 = ssub.s32 %s9, 2
      // Predicated region
      $region41: #{sw_mixffn_block_forward.6} parent=39 // pred_check
        %p280 = pneg %p122
      $region42: #{sw_mixffn_block_forward.6} parent=39 // pred_check_branch
        %282 = sbr.rel (%p280) target = $region44
      $region43: #{sw_mixffn_block_forward.6} parent=39 // pred_region
        %p283 = scmp.lt.s32.totalorder %s20, 1
        %s284 = scalar_select %p283, %s20, 1
        %p285 = scmp.lt.s32.totalorder %s21, 0
        %s286 = scalar_select %p285, %s21, 0
        %s287 = smul.addr %s284, 2
        %s288 = sadd.s32 %s286, %s287
        %s289 = smul.addr %s288, 8
        %s290 = scalar_lea.vmem %s3, %s289
      $region44: #{sw_mixffn_block_forward.6} parent=39 // pred_fallthru
        _
    $region40: #{sw_mixffn_block_forward.6} parent=5 // pred_fallthru
      _
  $region6: #{sw_mixffn_block_forward.6} parent=0 // loop_footer
    %s13 = sadd.s32 1, %s9
  $region7: #{sw_mixffn_block_forward.6} parent=0 // loop_footer_branch
    %8 = sbr.rel target = $region3
  $region8: #{sw_mixffn_block_forward.6} parent=0 // loop_exit
    _

// kernel: sw_mixffn_block_forward.7
$region0: #{sw_mixffn_block_forward.7}
  #allocation0 [shape = 'u32[]', space=smem, size = 0x4, offset = 0x4, fixed_abs, tag = 'smem constant byte address 0x4 - core index']
  #allocation1 [shape = 'u32[144,128]{1,0:T(1,128)}', space=vmem, size = 0x12000, scoped, tag = 'internal scratch']
  %s0 = inlined_call_operand.vmem [shape: f32[128,16], index: 0, kind: input, shape index: {}]
  %s1 = inlined_call_operand.vmem [shape: bf16[16,64], index: 1, kind: input, shape index: {}]
  %s2 = inlined_call_operand.vmem [shape: f32[1,64], index: 2, kind: input, shape index: {}]
  %s3 = inlined_call_operand.vmem [shape: f32[128,64], index: 3, kind: output, shape index: {}]
  %s4 = sld [smem:[#allocation0]]
  $region22: #{sw_mixffn_block_forward.7} parent=0
    _
  %s6 = ssub.s32 1, %s4
  %s7 = scalar_select 0, %s6, %s4
  // Predicated region
  $region2: #{sw_mixffn_block_forward.7} parent=0 // pred_check
    _
  $region3: #{sw_mixffn_block_forward.7} parent=0 // pred_check_branch
    %9 = sbr.rel (0) target = $region5
  $region4: #{sw_mixffn_block_forward.7} parent=0 // pred_region
    _
  $region5: #{sw_mixffn_block_forward.7} parent=0 // pred_fallthru
    _
  // Predicated region
  $region6: #{sw_mixffn_block_forward.7} parent=0 // pred_check
    _
  $region7: #{sw_mixffn_block_forward.7} parent=0 // pred_check_branch
    %11 = sbr.rel (0) target = $region9
  $region8: #{sw_mixffn_block_forward.7} parent=0 // pred_region
    _
  $region9: #{sw_mixffn_block_forward.7} parent=0 // pred_fallthru
    _
  // Predicated region
  $region10: #{sw_mixffn_block_forward.7} parent=0 // pred_check
    _
  $region11: #{sw_mixffn_block_forward.7} parent=0 // pred_check_branch
    %13 = sbr.rel (0) target = $region13
  $region12: #{sw_mixffn_block_forward.7} parent=0 // pred_region
    _
  $region13: #{sw_mixffn_block_forward.7} parent=0 // pred_fallthru
    _
  %v15 = vld [vmem:[%s0] sm:$0xff]
  %v16 = vld [vmem:[%s0 + $0x8] sm:$0xff]
  %v17 = vld [vmem:[%s0 + $0x10] sm:$0xff]
  %v18 = vld [vmem:[%s0 + $0x18] sm:$0xff]
  %v19 = vld [vmem:[%s0 + $0x20] sm:$0xff]
  %v20 = vld [vmem:[%s0 + $0x28] sm:$0xff]
  %v21 = vld [vmem:[%s0 + $0x30] sm:$0xff]
  %v22 = vld [vmem:[%s0 + $0x38] sm:$0xff]
  %v23 = vld [vmem:[%s0 + $0x40] sm:$0xff]
  %v24 = vld [vmem:[%s0 + $0x48] sm:$0xff]
  %v25 = vld [vmem:[%s0 + $0x50] sm:$0xff]
  %v26 = vld [vmem:[%s0 + $0x58] sm:$0xff]
  %v27 = vld [vmem:[%s0 + $0x60] sm:$0xff]
  %v28 = vld [vmem:[%s0 + $0x68] sm:$0xff]
  %v29 = vld [vmem:[%s0 + $0x70] sm:$0xff]
  %v30 = vld [vmem:[%s0 + $0x78] sm:$0xff]
  %v31 = vpack.c.bf16 %v16, %v15
  %v32 = vpack.c.bf16 %v18, %v17
  %v33 = vpack.c.bf16 %v20, %v19
  %v34 = vpack.c.bf16 %v22, %v21
  %v35 = vpack.c.bf16 %v24, %v23
  %v36 = vpack.c.bf16 %v26, %v25
  %v37 = vpack.c.bf16 %v28, %v27
  %v38 = vpack.c.bf16 %v30, %v29
  %v39 = vld [vmem:[%s1] sm:$0xf]
  %v40 = vld [vmem:[%s1 + $0x4] sm:$0xf]
  %v41 = vld [vmem:[%s2] sm:$0x1]
  %v43 = vlaneseq
  %v44 = vshrl.u32 %v43, 7
  %v45 = vsub.s32 0, %v44
  %v46 = vrot.slane %v41, %v45
  %v50 = vunpack.c.l.b16 %v39
  %v51 = vunpack.c.l.b16 %v40
  %v52 = vpack.c.b16 %v51, %v50
  %vm54 = vcmask 130048
  %v56 = vsel %vm54, %v31, 0
  %v59 = vsel %vm54, %v32, 0
  %v62 = vsel %vm54, %v33, 0
  %v65 = vsel %vm54, %v34, 0
  %v68 = vsel %vm54, %v35, 0
  %v71 = vsel %vm54, %v36, 0
  %v74 = vsel %vm54, %v37, 0
  %v77 = vsel %vm54, %v38, 0
  %79 = vmatprep.subr.bf16.mxu0 0
  %80 = vmatpush1.bf16.msra.mxu0 %v52
  %81 = vmatprep.subr.bf16.mxu0 0
  %82 = vmatpush1.bf16.msra.mxu0 0
  %83 = vmatprep.subr.bf16.mxu0 0
  %84 = vmatpush1.bf16.msra.mxu0 0
  %85 = vmatprep.subr.bf16.mxu0 0
  %86 = vmatpush1.bf16.msra.mxu0 0
  %87 = vmatprep.subr.bf16.mxu0 0
  %88 = vmatpush1.bf16.msra.mxu0 0
  %89 = vmatprep.subr.bf16.mxu0 0
  %90 = vmatpush1.bf16.msra.mxu0 0
  %91 = vmatprep.subr.bf16.mxu0 0
  %92 = vmatpush1.bf16.msra.mxu0 0
  %93 = vmatprep.subr.bf16.mxu0 0
  %94 = vmatpush1.bf16.msra.mxu0 0
  %95 = vmatprep.subr.bf16.mxu0 0
  %96 = vmatpush1.bf16.msra.mxu0 0
  %97 = vmatprep.subr.bf16.mxu0 0
  %98 = vmatpush1.bf16.msra.mxu0 0
  %99 = vmatprep.subr.bf16.mxu0 0
  %100 = vmatpush1.bf16.msra.mxu0 0
  %101 = vmatprep.subr.bf16.mxu0 0
  %102 = vmatpush1.bf16.msra.mxu0 0
  %103 = vmatprep.subr.bf16.mxu0 0
  %104 = vmatpush1.bf16.msra.mxu0 0
  %105 = vmatprep.subr.bf16.mxu0 0
  %106 = vmatpush1.bf16.msra.mxu0 0
  %107 = vmatprep.subr.bf16.mxu0 0
  %108 = vmatpush1.bf16.msra.mxu0 0
  %109 = vmatprep.subr.bf16.mxu0 0
  %110 = vmatpush1.bf16.msra.mxu0 0
  %111 = vmatprep.mubr.bf16.mxu0 0
  %112 = vmatmul.mubr.bf16.gmra.mrb[0].mxu0 %v56
  %v113 = vpop.f32.mrb[0].mxu0
  %v114 = vadd.f32 %v46, %v113
  %v115 = vpop.f32.mrb[0].mxu0
  %v116 = vpop.f32.mrb[0].mxu0
  %v117 = vadd.f32 %v46, %v116
  %v118 = vpop.f32.mrb[0].mxu0
  %119 = vmatprep.mubr.bf16.mxu0 0
  %120 = vmatmul.mubr.bf16.gmra.mrb[0].mxu0 %v59
  %v121 = vpop.f32.mrb[0].mxu0
  %v122 = vadd.f32 %v46, %v121
  %v123 = vpop.f32.mrb[0].mxu0
  %v124 = vpop.f32.mrb[0].mxu0
  %v125 = vadd.f32 %v46, %v124
  %v126 = vpop.f32.mrb[0].mxu0
  %127 = vmatprep.mubr.bf16.mxu0 0
  %128 = vmatmul.mubr.bf16.gmra.mrb[0].mxu0 %v62
  %v129 = vpop.f32.mrb[0].mxu0
  %v130 = vadd.f32 %v46, %v129
  %v131 = vpop.f32.mrb[0].mxu0
  %v132 = vpop.f32.mrb[0].mxu0
  %v133 = vadd.f32 %v46, %v132
  %v134 = vpop.f32.mrb[0].mxu0
  %135 = vmatprep.mubr.bf16.mxu0 0
  %136 = vmatmul.mubr.bf16.gmra.mrb[0].mxu0 %v65
  %v137 = vpop.f32.mrb[0].mxu0
  %v138 = vadd.f32 %v46, %v137
  %v139 = vpop.f32.mrb[0].mxu0
  %v140 = vpop.f32.mrb[0].mxu0
  %v141 = vadd.f32 %v46, %v140
  %v142 = vpop.f32.mrb[0].mxu0
  %143 = vmatprep.mubr.bf16.mxu0 0
  %144 = vmatmul.mubr.bf16.gmra.mrb[0].mxu0 %v68
  %v145 = vpop.f32.mrb[0].mxu0
  %v146 = vadd.f32 %v46, %v145
  %v147 = vpop.f32.mrb[0].mxu0
  %v148 = vpop.f32.mrb[0].mxu0
  %v149 = vadd.f32 %v46, %v148
  %v150 = vpop.f32.mrb[0].mxu0
  %151 = vmatprep.mubr.bf16.mxu0 0
  %152 = vmatmul.mubr.bf16.gmra.mrb[0].mxu0 %v71
  %v153 = vpop.f32.mrb[0].mxu0
  %v154 = vadd.f32 %v46, %v153
  %v155 = vpop.f32.mrb[0].mxu0
  %v156 = vpop.f32.mrb[0].mxu0
  %v157 = vadd.f32 %v46, %v156
  %v158 = vpop.f32.mrb[0].mxu0
  %159 = vmatprep.mubr.bf16.mxu0 0
  %160 = vmatmul.mubr.bf16.gmra.mrb[0].mxu0 %v74
  %v161 = vpop.f32.mrb[0].mxu0
  %v162 = vadd.f32 %v46, %v161
  %v163 = vpop.f32.mrb[0].mxu0
  %v164 = vpop.f32.mrb[0].mxu0
  %v165 = vadd.f32 %v46, %v164
  %v166 = vpop.f32.mrb[0].mxu0
  %167 = vmatprep.mubr.bf16.mxu0 0
  %168 = vmatmul.mubr.bf16.gmra.mrb[0].mxu0 %v77
  %v169 = vpop.f32.mrb[0].mxu0
  %v170 = vadd.f32 %v46, %v169
  %v171 = vpop.f32.mrb[0].mxu0
  %v172 = vpop.f32.mrb[0].mxu0
  %v173 = vadd.f32 %v46, %v172
  %v174 = vpop.f32.mrb[0].mxu0
  %175 = vdwg.mxu0
  %vm176 = vcmask 523264
  %177 = vst.msk [vmem:[%s3] sm:$0xff] %vm176, %v114
  %178 = vst.msk [vmem:[%s3 + $0x8] sm:$0xff] %vm176, %v117
  %179 = vst.msk [vmem:[%s3 + $0x10] sm:$0xff] %vm176, %v122
  %180 = vst.msk [vmem:[%s3 + $0x18] sm:$0xff] %vm176, %v125
  %181 = vst.msk [vmem:[%s3 + $0x20] sm:$0xff] %vm176, %v130
  %182 = vst.msk [vmem:[%s3 + $0x28] sm:$0xff] %vm176, %v133
  %183 = vst.msk [vmem:[%s3 + $0x30] sm:$0xff] %vm176, %v138
  %184 = vst.msk [vmem:[%s3 + $0x38] sm:$0xff] %vm176, %v141
  %185 = vst.msk [vmem:[%s3 + $0x40] sm:$0xff] %vm176, %v146
  %186 = vst.msk [vmem:[%s3 + $0x48] sm:$0xff] %vm176, %v149
  %187 = vst.msk [vmem:[%s3 + $0x50] sm:$0xff] %vm176, %v154
  %188 = vst.msk [vmem:[%s3 + $0x58] sm:$0xff] %vm176, %v157
  %189 = vst.msk [vmem:[%s3 + $0x60] sm:$0xff] %vm176, %v162
  %190 = vst.msk [vmem:[%s3 + $0x68] sm:$0xff] %vm176, %v165
  %191 = vst.msk [vmem:[%s3 + $0x70] sm:$0xff] %vm176, %v170
  %192 = vst.msk [vmem:[%s3 + $0x78] sm:$0xff] %vm176, %v173
  // Predicated region
  $region14: #{sw_mixffn_block_forward.7} parent=0 // pred_check
    _
  $region15: #{sw_mixffn_block_forward.7} parent=0 // pred_check_branch
    %194 = sbr.rel (0) target = $region17
  $region16: #{sw_mixffn_block_forward.7} parent=0 // pred_region
    _
  $region17: #{sw_mixffn_block_forward.7} parent=0 // pred_fallthru
    _
  // Predicated region
  $region18: #{sw_mixffn_block_forward.7} parent=0 // pred_check
    _
  $region19: #{sw_mixffn_block_forward.7} parent=0 // pred_check_branch
    %196 = sbr.rel (0) target = $region21
  $region20: #{sw_mixffn_block_forward.7} parent=0 // pred_region
    _
  $region21: #{sw_mixffn_block_forward.7} parent=0 // pred_fallthru
    _

// kernel: sw_mixffn_block_forward.5
$region0: #{sw_mixffn_block_forward.5}
  #allocation0 [shape = 'u32[]', space=smem, size = 0x4, offset = 0x4, fixed_abs, tag = 'smem constant byte address 0x4 - core index']
  #allocation1 [shape = 'u32[144,128]{1,0:T(1,128)}', space=vmem, size = 0x12000, scoped, tag = 'internal scratch']
  #allocation2 [shape = 'f32[16,16]{1,0:T(8,128)}', space=vmem, size = 0x2000, scoped, tag = 'scratch operand']
  %s0 = inlined_call_operand.vmem [shape: f32[2,2,4,2,4,16], index: 0, kind: input, shape index: {}]
  %s1 = inlined_call_operand.vmem [shape: f32[1,16], index: 1, kind: input, shape index: {}]
  %s2 = inlined_call_operand.vmem [shape: f32[1,16], index: 2, kind: input, shape index: {}]
  %s3 = inlined_call_operand.vmem [shape: bf16[16,48], index: 3, kind: input, shape index: {}]
  %s4 = inlined_call_operand.vmem [shape: f32[1,48], index: 4, kind: input, shape index: {}]
  %s5 = inlined_call_operand.vmem [shape: bf16[16,16], index: 5, kind: input, shape index: {}]
  %s6 = inlined_call_operand.vmem [shape: f32[1,16], index: 6, kind: input, shape index: {}]
  %s7 = inlined_call_operand.vmem [shape: f32[2,2,4,16,16], index: 7, kind: input, shape index: {}]
  %s8 = inlined_call_operand.vmem [shape: f32[2,2,4,2,4,16], index: 8, kind: output, shape index: {}]
  %s9 = sld [smem:[#allocation0]]
  $region143: #{sw_mixffn_block_forward.5} parent=0
    _
  %s11 = ssub.s32 1, %s9
  %s12 = scalar_select 0, %s11, %s9
  $region1: #{sw_mixffn_block_forward.5} parent=0
    #allocation3 [shape = 'u8[16384]{0}', space=vmem, size = 0x4000, scoped, tag = 'input window, operand 0']
    #allocation4 [shape = 'u8[16384]{0}', space=vmem, size = 0x4000, scoped, tag = 'output window, operand 0']
    loop: start=0, step=1, limit=10
    $region2: #{sw_mixffn_block_forward.5} parent=1 // loop_pre_header
      _
    $region3: #{sw_mixffn_block_forward.5} parent=1 // loop_header
      %s14 = sphi 0, %s18
      %p15 = scmp.ge.s32.totalorder %s14, 10
      %s21 = sphi 0, %s40
      %s22 = sphi 0, %s36
      %s23 = sphi 0, %s32
      %s24 = sphi 0, %s21
      %s25 = sphi 0, %s22
      %s26 = sphi 0, %s23
      %s27 = sphi 0, %s24
      %s28 = sphi 0, %s25
      %s29 = sphi 0, %s26
      %s47 = sphi 0, %s49
      %s50 = sphi 0, %s47
      %s51 = sphi 0, %s50
      %s67 = sphi 0, %s51
      %s71 = sphi 0, %s71
      %s73 = sphi 0, %s71
      %s74 = sphi 0, %s73
      %s88 = sphi 0, %s74
      %s92 = sphi 0, %s92
      %s94 = sphi 0, %s92
      %s95 = sphi 0, %s94
      %s109 = sphi 0, %s95
      %s113 = sphi 0, %s113
      %s115 = sphi 0, %s113
      %s116 = sphi 0, %s115
      %s130 = sphi 0, %s116
      %s134 = sphi 0, %s134
      %s136 = sphi 0, %s134
      %s137 = sphi 0, %s136
      %s151 = sphi 0, %s137
      %s155 = sphi 0, %s155
      %s157 = sphi 0, %s155
      %s158 = sphi 0, %s157
      %s172 = sphi 0, %s158
      %s176 = sphi 0, %s176
      %s178 = sphi 0, %s176
      %s179 = sphi 0, %s178
      %s193 = sphi 0, %s179
      %s201 = sphi 0, %s203
      %s204 = sphi 0, %s201
      %s205 = sphi 0, %s204
      %s221 = sphi 0, %s205
      %s231 = sphi 0, %s233
      %s234 = sphi 0, %s231
      %s235 = sphi 0, %s234
      %s251 = sphi 0, %s235
    $region4: #{sw_mixffn_block_forward.5} parent=1 // loop_header_branch
      %17 = sbr.rel (%p15) target = $region8
    $region5: #{sw_mixffn_block_forward.5} parent=1 // loop_body
      %s19 = ssub.s32 %s14, 1
      %s20 = ssub.s32 %s14, 2
      %s30 = sadd.s32 1, %s23
      %p31 = scmp.ge.s32.totalorder %s30, 2
      %s32 = scalar_select %p31, 0, %s30
      %s33 = sadd.s32 1, %s22
      %s34 = scalar_select %p31, %s33, %s22
      %p35 = scmp.ge.s32.totalorder %s34, 2
      %s36 = scalar_select %p35, 0, %s34
      %s37 = sadd.s32 1, %s21
      %s38 = scalar_select %p35, %s37, %s21
      %p39 = scmp.ge.s32.totalorder %s38, 2
      %s40 = scalar_select %p39, 0, %s38
      %s41 = ssub.s32 %s21, %s40
      %s42 = ssub.s32 %s22, %s36
      %s43 = sor.u32 %s41, %s42
      %s44 = ssub.s32 %s23, %s32
      %s45 = sor.u32 %s43, %s44
      %p46 = scmp.eq.s32.totalorder %s45, 0
      %s48 = sadd.s32 %s47, 1
      %s49 = scalar_select %p46, %s47, %s48
      %p52 = pneg %p46
      %p53 = scmp.eq.s32.totalorder %s14, 7
      %p54 = por %p52, %p53
      %p55 = scmp.ne.s32.totalorder %s47, %s50
      %p56 = scmp.eq.s32.totalorder %s14, 0
      %p57 = por %p55, %p56
      %p58 = scmp.ne.s32.totalorder %s47, %s50
      %p59 = scmp.eq.s32.totalorder %s19, 7
      %p60 = por %p58, %p59
      %p61 = scmp.ne.s32.totalorder %s50, %s51
      %p62 = scmp.eq.s32.totalorder %s19, 0
      %p63 = por %p61, %p62
      %p64 = scmp.ne.s32.totalorder %s50, %s51
      %p65 = scmp.eq.s32.totalorder %s20, 7
      %p66 = por %p64, %p65
      %p68 = scmp.ne.s32.totalorder %s51, %s67
      %p69 = scmp.eq.s32.totalorder %s20, 0
      %p70 = por %p68, %p69
      %s72 = sadd.s32 %s71, 1
      %p75 = scmp.eq.s32.totalorder %s14, 7
      %p76 = scmp.ne.s32.totalorder %s71, %s73
      %p77 = scmp.eq.s32.totalorder %s14, 0
      %p78 = por %p76, %p77
      %p79 = scmp.ne.s32.totalorder %s71, %s73
      %p80 = scmp.eq.s32.totalorder %s19, 7
      %p81 = por %p79, %p80
      %p82 = scmp.ne.s32.totalorder %s73, %s74
      %p83 = scmp.eq.s32.totalorder %s19, 0
      %p84 = por %p82, %p83
      %p85 = scmp.ne.s32.totalorder %s73, %s74
      %p86 = scmp.eq.s32.totalorder %s20, 7
      %p87 = por %p85, %p86
      %p89 = scmp.ne.s32.totalorder %s74, %s88
      %p90 = scmp.eq.s32.totalorder %s20, 0
      %p91 = por %p89, %p90
      %s93 = sadd.s32 %s92, 1
      %p96 = scmp.eq.s32.totalorder %s14, 7
      %p97 = scmp.ne.s32.totalorder %s92, %s94
      %p98 = scmp.eq.s32.totalorder %s14, 0
      %p99 = por %p97, %p98
      %p100 = scmp.ne.s32.totalorder %s92, %s94
      %p101 = scmp.eq.s32.totalorder %s19, 7
      %p102 = por %p100, %p101
      %p103 = scmp.ne.s32.totalorder %s94, %s95
      %p104 = scmp.eq.s32.totalorder %s19, 0
      %p105 = por %p103, %p104
      %p106 = scmp.ne.s32.totalorder %s94, %s95
      %p107 = scmp.eq.s32.totalorder %s20, 7
      %p108 = por %p106, %p107
      %p110 = scmp.ne.s32.totalorder %s95, %s109
      %p111 = scmp.eq.s32.totalorder %s20, 0
      %p112 = por %p110, %p111
      %s114 = sadd.s32 %s113, 1
      %p117 = scmp.eq.s32.totalorder %s14, 7
      %p118 = scmp.ne.s32.totalorder %s113, %s115
      %p119 = scmp.eq.s32.totalorder %s14, 0
      %p120 = por %p118, %p119
      %p121 = scmp.ne.s32.totalorder %s113, %s115
      %p122 = scmp.eq.s32.totalorder %s19, 7
      %p123 = por %p121, %p122
      %p124 = scmp.ne.s32.totalorder %s115, %s116
      %p125 = scmp.eq.s32.totalorder %s19, 0
      %p126 = por %p124, %p125
      %p127 = scmp.ne.s32.totalorder %s115, %s116
      %p128 = scmp.eq.s32.totalorder %s20, 7
      %p129 = por %p127, %p128
      %p131 = scmp.ne.s32.totalorder %s116, %s130
      %p132 = scmp.eq.s32.totalorder %s20, 0
      %p133 = por %p131, %p132
      %s135 = sadd.s32 %s134, 1
      %p138 = scmp.eq.s32.totalorder %s14, 7
      %p139 = scmp.ne.s32.totalorder %s134, %s136
      %p140 = scmp.eq.s32.totalorder %s14, 0
      %p141 = por %p139, %p140
      %p142 = scmp.ne.s32.totalorder %s134, %s136
      %p143 = scmp.eq.s32.totalorder %s19, 7
      %p144 = por %p142, %p143
      %p145 = scmp.ne.s32.totalorder %s136, %s137
      %p146 = scmp.eq.s32.totalorder %s19, 0
      %p147 = por %p145, %p146
      %p148 = scmp.ne.s32.totalorder %s136, %s137
      %p149 = scmp.eq.s32.totalorder %s20, 7
      %p150 = por %p148, %p149
      %p152 = scmp.ne.s32.totalorder %s137, %s151
      %p153 = scmp.eq.s32.totalorder %s20, 0
      %p154 = por %p152, %p153
      %s156 = sadd.s32 %s155, 1
      %p159 = scmp.eq.s32.totalorder %s14, 7
      %p160 = scmp.ne.s32.totalorder %s155, %s157
      %p161 = scmp.eq.s32.totalorder %s14, 0
      %p162 = por %p160, %p161
      %p163 = scmp.ne.s32.totalorder %s155, %s157
      %p164 = scmp.eq.s32.totalorder %s19, 7
      %p165 = por %p163, %p164
      %p166 = scmp.ne.s32.totalorder %s157, %s158
      %p167 = scmp.eq.s32.totalorder %s19, 0
      %p168 = por %p166, %p167
      %p169 = scmp.ne.s32.totalorder %s157, %s158
      %p170 = scmp.eq.s32.totalorder %s20, 7
      %p171 = por %p169, %p170
      %p173 = scmp.ne.s32.totalorder %s158, %s172
      %p174 = scmp.eq.s32.totalorder %s20, 0
      %p175 = por %p173, %p174
      %s177 = sadd.s32 %s176, 1
      %p180 = scmp.eq.s32.totalorder %s14, 7
      %p181 = scmp.ne.s32.totalorder %s176, %s178
      %p182 = scmp.eq.s32.totalorder %s14, 0
      %p183 = por %p181, %p182
      %p184 = scmp.ne.s32.totalorder %s176, %s178
      %p185 = scmp.eq.s32.totalorder %s19, 7
      %p186 = por %p184, %p185
      %p187 = scmp.ne.s32.totalorder %s178, %s179
      %p188 = scmp.eq.s32.totalorder %s19, 0
      %p189 = por %p187, %p188
      %p190 = scmp.ne.s32.totalorder %s178, %s179
      %p191 = scmp.eq.s32.totalorder %s20, 7
      %p192 = por %p190, %p191
      %p194 = scmp.ne.s32.totalorder %s179, %s193
      %p195 = scmp.eq.s32.totalorder %s20, 0
      %p196 = por %p194, %p195
      %s197 = ssub.s32 %s22, %s36
      %s198 = ssub.s32 %s23, %s32
      %s199 = sor.u32 %s197, %s198
      %p200 = scmp.eq.s32.totalorder %s199, 0
      %s202 = sadd.s32 %s201, 1
      %s203 = scalar_select %p200, %s201, %s202
      %p206 = pneg %p200
      %p207 = scmp.eq.s32.totalorder %s14, 7
      %p208 = por %p206, %p207
      %p209 = scmp.ne.s32.totalorder %s201, %s204
      %p210 = scmp.eq.s32.totalorder %s14, 0
      %p211 = por %p209, %p210
      %p212 = scmp.ne.s32.totalorder %s201, %s204
      %p213 = scmp.eq.s32.totalorder %s19, 7
      %p214 = por %p212, %p213
      %p215 = scmp.ne.s32.totalorder %s204, %s205
      %p216 = scmp.eq.s32.totalorder %s19, 0
      %p217 = por %p215, %p216
      %p218 = scmp.ne.s32.totalorder %s204, %s205
      %p219 = scmp.eq.s32.totalorder %s20, 7
      %p220 = por %p218, %p219
      %p222 = scmp.ne.s32.totalorder %s205, %s221
      %p223 = scmp.eq.s32.totalorder %s20, 0
      %p224 = por %p222, %p223
      %s225 = ssub.s32 %s21, %s40
      %s226 = ssub.s32 %s22, %s36
      %s227 = sor.u32 %s225, %s226
      %s228 = ssub.s32 %s23, %s32
      %s229 = sor.u32 %s227, %s228
      %p230 = scmp.eq.s32.totalorder %s229, 0
      %s232 = sadd.s32 %s231, 1
      %s233 = scalar_select %p230, %s231, %s232
      %p236 = pneg %p230
      %p237 = scmp.eq.s32.totalorder %s14, 7
      %p238 = por %p236, %p237
      %p239 = scmp.ne.s32.totalorder %s231, %s234
      %p240 = scmp.eq.s32.totalorder %s14, 0
      %p241 = por %p239, %p240
      %p242 = scmp.ne.s32.totalorder %s231, %s234
      %p243 = scmp.eq.s32.totalorder %s19, 7
      %p244 = por %p242, %p243
      %p245 = scmp.ne.s32.totalorder %s234, %s235
      %p246 = scmp.eq.s32.totalorder %s19, 0
      %p247 = por %p245, %p246
      %p248 = scmp.ne.s32.totalorder %s234, %s235
      %p249 = scmp.eq.s32.totalorder %s20, 7
      %p250 = por %p248, %p249
      %p252 = scmp.ne.s32.totalorder %s235, %s251
      %p253 = scmp.eq.s32.totalorder %s20, 0
      %p254 = por %p252, %p253
      %p255 = scmp.le.s32.totalorder 1, %s14
      %p256 = scmp.lt.s32.totalorder %s14, 9
      %p257 = pnand %p255, %p256
      %p258 = pneg %p257
      // Predicated region
      $region9: #{sw_mixffn_block_forward.5} parent=5 // pred_check
        _
      $region10: #{sw_mixffn_block_forward.5} parent=5 // pred_check_branch
        %260 = sbr.rel (%p257) target = $region12
      $region11: #{sw_mixffn_block_forward.5} parent=5 // pred_region
        %s261 = ssub.s32 %s14, 1
        // Predicated region
        $region13: #{sw_mixffn_block_forward.5} parent=11 // pred_check
          %p262 = pneg %p84
        $region14: #{sw_mixffn_block_forward.5} parent=11 // pred_check_branch
          %264 = sbr.rel (%p262) target = $region16
        $region15: #{sw_mixffn_block_forward.5} parent=11 // pred_region
          _
        $region16: #{sw_mixffn_block_forward.5} parent=11 // pred_fallthru
          _
        // Predicated region
        $region17: #{sw_mixffn_block_forward.5} parent=11 // pred_check
          %p265 = pneg %p105
        $region18: #{sw_mixffn_block_forward.5} parent=11 // pred_check_branch
          %267 = sbr.rel (%p265) target = $region20
        $region19: #{sw_mixffn_block_forward.5} parent=11 // pred_region
          _
        $region20: #{sw_mixffn_block_forward.5} parent=11 // pred_fallthru
          _
        // Predicated region
        $region21: #{sw_mixffn_block_forward.5} parent=11 // pred_check
          %p268 = pneg %p126
        $region22: #{sw_mixffn_block_forward.5} parent=11 // pred_check_branch
          %270 = sbr.rel (%p268) target = $region24
        $region23: #{sw_mixffn_block_forward.5} parent=11 // pred_region
          _
        $region24: #{sw_mixffn_block_forward.5} parent=11 // pred_fallthru
          _
        // Predicated region
        $region25: #{sw_mixffn_block_forward.5} parent=11 // pred_check
          %p271 = pneg %p147
        $region26: #{sw_mixffn_block_forward.5} parent=11 // pred_check_branch
          %273 = sbr.rel (%p271) target = $region28
        $region27: #{sw_mixffn_block_forward.5} parent=11 // pred_region
          _
        $region28: #{sw_mixffn_block_forward.5} parent=11 // pred_fallthru
          _
        // Predicated region
        $region29: #{sw_mixffn_block_forward.5} parent=11 // pred_check
          %p274 = pneg %p168
        $region30: #{sw_mixffn_block_forward.5} parent=11 // pred_check_branch
          %276 = sbr.rel (%p274) target = $region32
        $region31: #{sw_mixffn_block_forward.5} parent=11 // pred_region
          _
        $region32: #{sw_mixffn_block_forward.5} parent=11 // pred_fallthru
          _
        // Predicated region
        $region33: #{sw_mixffn_block_forward.5} parent=11 // pred_check
          %p277 = pneg %p189
        $region34: #{sw_mixffn_block_forward.5} parent=11 // pred_check_branch
          %279 = sbr.rel (%p277) target = $region36
        $region35: #{sw_mixffn_block_forward.5} parent=11 // pred_region
          _
        $region36: #{sw_mixffn_block_forward.5} parent=11 // pred_fallthru
          _
      $region12: #{sw_mixffn_block_forward.5} parent=5 // pred_fallthru
        _
      %p280 = scmp.lt.s32.totalorder %s14, 8
      // Predicated region
      $region37: #{sw_mixffn_block_forward.5} parent=5 // pred_check
        %p281 = pneg %p280
      $region38: #{sw_mixffn_block_forward.5} parent=5 // pred_check_branch
        %283 = sbr.rel (%p281) target = $region40
      $region39: #{sw_mixffn_block_forward.5} parent=5 // pred_region
        // Predicated region
        $region41: #{sw_mixffn_block_forward.5} parent=39 // pred_check
          %p284 = pneg %p57
        $region42: #{sw_mixffn_block_forward.5} parent=39 // pred_check_branch
          %286 = sbr.rel (%p284) target = $region44
        $region43: #{sw_mixffn_block_forward.5} parent=39 // pred_region
          %s287 = sand.u32 %s47, 1
          %s288 = sand.u32 %s47, 1
          %s289 = smul.addr %s288, 16
          %s290 = scalar_lea.vmem [#allocation3], %s289
          %s291 = smul.addr %s22, 8
          %s292 = sadd.s32 %s23, %s291
          %s293 = smul.addr %s21, 16
          %s294 = sadd.s32 %s292, %s293
          %s295 = smul.addr %s294, 4
          %s296 = scalar_lea.vmem %s0, %s295
          // Predicated region
          $region45: #{sw_mixffn_block_forward.5} parent=43 // pred_check
            _
          $region46: #{sw_mixffn_block_forward.5} parent=43 // pred_check_branch
            %298 = sbr.rel (0) target = $region48
          $region47: #{sw_mixffn_block_forward.5} parent=43 // pred_region
            // Predicated region
            $region49: #{sw_mixffn_block_forward.5} parent=47 // pred_check
              _
            $region50: #{sw_mixffn_block_forward.5} parent=47 // pred_check_branch
              %300 = sbr.rel target = $region52
            $region51: #{sw_mixffn_block_forward.5} parent=47 // pred_region
              // Predicated region
              $region64: #{sw_mixffn_block_forward.5} parent=51 // pred_check
                _
              $region65: #{sw_mixffn_block_forward.5} parent=51 // pred_check_branch
                %321 = sbr.rel (0) target = $region67
              $region66: #{sw_mixffn_block_forward.5} parent=51 // pred_region
                loop: start=0, step=1, limit=1
                $region68: #{sw_mixffn_block_forward.5} parent=66 // loop_pre_header
                  _
                $region69: #{sw_mixffn_block_forward.5} parent=66 // loop_header
                  %s323 = sphi 0, %s327
                  %p324 = scmp.ge.s32.totalorder %s323, 1
                  %s328 = sphi %s296, %s296
                  %s329 = sphi %s290, %s290
                $region70: #{sw_mixffn_block_forward.5} parent=66 // loop_header_branch
                  %326 = sbr.rel (%p324) target = $region74
                $region71: #{sw_mixffn_block_forward.5} parent=66 // loop_body
                  _
                $region72: #{sw_mixffn_block_forward.5} parent=66 // loop_footer
                  %s327 = sadd.s32 1, %s323
                $region73: #{sw_mixffn_block_forward.5} parent=66 // loop_footer_branch
                  %322 = sbr.rel target = $region69
                $region74: #{sw_mixffn_block_forward.5} parent=66 // loop_exit
                  _
                loop: start=0, step=1, limit=1
                $region75: #{sw_mixffn_block_forward.5} parent=66 // loop_pre_header
                  _
                $region76: #{sw_mixffn_block_forward.5} parent=66 // loop_header
                  %s332 = sphi 0, %s336
                  %p333 = scmp.ge.s32.totalorder %s332, 1
                  %s337 = sphi %s296, %s296
                  %s338 = sphi %s290, %s290
                $region77: #{sw_mixffn_block_forward.5} parent=66 // loop_header_branch
                  %335 = sbr.rel (%p333) target = $region81
                $region78: #{sw_mixffn_block_forward.5} parent=66 // loop_body
                  %v339 = vld [vmem:[%s337] sm:$0xf]
                  %340 = vst [vmem:[%s338] sm:$0xf] %v339
                  %v341 = vld [vmem:[%s337 + $0x8] sm:$0xf]
                  %342 = vst [vmem:[%s338 + $0x4] sm:$0xf] %v341
                  %v343 = vld [vmem:[%s337 + $0x10] sm:$0xf]
                  %344 = vst [vmem:[%s338 + $0x8] sm:$0xf] %v343
                  %v345 = vld [vmem:[%s337 + $0x18] sm:$0xf]
                  %346 = vst [vmem:[%s338 + $0xc] sm:$0xf] %v345
                $region79: #{sw_mixffn_block_forward.5} parent=66 // loop_footer
                  %s336 = sadd.s32 1, %s332
                $region80: #{sw_mixffn_block_forward.5} parent=66 // loop_footer_branch
                  %331 = sbr.rel target = $region76
                $region81: #{sw_mixffn_block_forward.5} parent=66 // loop_exit
                  _
              $region67: #{sw_mixffn_block_forward.5} parent=51 // pred_fallthru
                _
            $region52: #{sw_mixffn_block_forward.5} parent=47 // pred_fallthru
              _
            // Predicated region
            $region53: #{sw_mixffn_block_forward.5} parent=47 // pred_check
              _
            $region54: #{sw_mixffn_block_forward.5} parent=47 // pred_check_branch
              %302 = sbr.rel (0) target = $region56
            $region55: #{sw_mixffn_block_forward.5} parent=47 // pred_region
              loop: start=0, step=1, limit=1
              $region57: #{sw_mixffn_block_forward.5} parent=55 // loop_pre_header
                _
              $region58: #{sw_mixffn_block_forward.5} parent=55 // loop_header
                %s305 = sphi 0, %s309
                %p306 = scmp.ge.s32.totalorder %s305, 1
                %s310 = sphi %s296, %s296
                %s311 = sphi %s290, %s290
              $region59: #{sw_mixffn_block_forward.5} parent=55 // loop_header_branch
                %308 = sbr.rel (%p306) target = $region63
              $region60: #{sw_mixffn_block_forward.5} parent=55 // loop_body
                %v312 = vld [vmem:[%s310] sm:$0xf]
                %313 = vst [vmem:[%s311] sm:$0xf] %v312
                %v314 = vld [vmem:[%s310 + $0x8] sm:$0xf]
                %315 = vst [vmem:[%s311 + $0x4] sm:$0xf] %v314
                %v316 = vld [vmem:[%s310 + $0x10] sm:$0xf]
                %317 = vst [vmem:[%s311 + $0x8] sm:$0xf] %v316
                %v318 = vld [vmem:[%s310 + $0x18] sm:$0xf]
                %319 = vst [vmem:[%s311 + $0xc] sm:$0xf] %v318
              $region61: #{sw_mixffn_block_forward.5} parent=55 // loop_footer
                %s309 = sadd.s32 1, %s305
              $region62: #{sw_mixffn_block_forward.5} parent=55 // loop_footer_branch
                %304 = sbr.rel target = $region58
              $region63: #{sw_mixffn_block_forward.5} parent=55 // loop_exit
                _
            $region56: #{sw_mixffn_block_forward.5} parent=47 // pred_fallthru
              _
          $region48: #{sw_mixffn_block_forward.5} parent=43 // pred_fallthru
            _
          %347 = vnop
        $region44: #{sw_mixffn_block_forward.5} parent=39 // pred_fallthru
          _
        // Predicated region
        $region82: #{sw_mixffn_block_forward.5} parent=39 // pred_check
          %p348 = pneg %p211
        $region83: #{sw_mixffn_block_forward.5} parent=39 // pred_check_branch
          %350 = sbr.rel (%p348) target = $region85
        $region84: #{sw_mixffn_block_forward.5} parent=39 // pred_region
          %p351 = scmp.lt.s32.totalorder %s22, 1
          %s352 = scalar_select %p351, %s22, 1
          %p353 = scmp.lt.s32.totalorder %s23, 1
          %s354 = scalar_select %p353, %s23, 1
          %s355 = smul.addr %s354, 8
          %s356 = smul.addr %s352, 16
          %s357 = sadd.s32 %s355, %s356
          %s358 = smul.addr %s357, 8
          %s359 = scalar_lea.vmem %s7, %s358
        $region85: #{sw_mixffn_block_forward.5} parent=39 // pred_fallthru
          _
      $region40: #{sw_mixffn_block_forward.5} parent=5 // pred_fallthru
        _
      %p360 = scmp.le.s32.totalorder 1, %s14
      %p361 = scmp.lt.s32.totalorder %s14, 9
      %p362 = pnand %p360, %p361
      %p363 = pneg %p362
      // Predicated region
      $region86: #{sw_mixffn_block_forward.5} parent=5 // pred_check
        _
      $region87: #{sw_mixffn_block_forward.5} parent=5 // pred_check_branch
        %365 = sbr.rel (%p362) target = $region89
      $region88: #{sw_mixffn_block_forward.5} parent=5 // pred_region
        %s366 = ssub.s32 %s14, 1
        %s367 = sand.u32 %s50, 1
        %s368 = sand.u32 %s50, 1
        %s369 = smul.addr %s368, 16
        %s370 = scalar_lea.vmem [#allocation3], %s369
        // Predicated region
        $region90: #{sw_mixffn_block_forward.5} parent=88 // pred_check
          %p371 = pneg %p63
        $region91: #{sw_mixffn_block_forward.5} parent=88 // pred_check_branch
          %373 = sbr.rel (%p371) target = $region93
        $region92: #{sw_mixffn_block_forward.5} parent=88 // pred_region
          _
        $region93: #{sw_mixffn_block_forward.5} parent=88 // pred_fallthru
          _
        %s374 = sand.u32 %s50, 1
        %s375 = sand.u32 %s50, 1
        %s376 = smul.addr %s375, 16
        %s377 = scalar_lea.vmem [#allocation3], %s376
        %p378 = pneg %p63
        %p379 = pneg %p60
        %p380 = pneg %p84
        %p381 = pneg %p81
        %p382 = pneg %p105
        %p383 = pneg %p102
        %p384 = pneg %p126
        %p385 = pneg %p123
        %p386 = pneg %p147
        %p387 = pneg %p144
        %p388 = pneg %p168
        %p389 = pneg %p165
        %p390 = pneg %p189
        %p391 = pneg %p186
        %p392 = scmp.lt.s32.totalorder %s25, 1
        %s393 = scalar_select %p392, %s25, 1
        %p394 = scmp.lt.s32.totalorder %s26, 1
        %s395 = scalar_select %p394, %s26, 1
        %s396 = smul.addr %s395, 8
        %s397 = smul.addr %s393, 16
        %s398 = sadd.s32 %s396, %s397
        %s399 = smul.addr %s398, 8
        %s400 = scalar_lea.vmem %s7, %s399
        %p401 = pneg %p217
        %p402 = pneg %p214
        %p403 = pneg %p247
        %p404 = pneg %p244
        %s405 = sand.u32 %s234, 1
        %s406 = sand.u32 %s234, 1
        %s407 = smul.addr %s406, 16
        %s408 = scalar_lea.vmem [#allocation4], %s407
        %p409 = scmp.lt.s32.totalorder %s25, 1
        %s410 = scalar_select %p409, %s25, 1
        %p411 = scmp.lt.s32.totalorder %s26, 1
        %s412 = scalar_select %p411, %s26, 1
        %s413 = smul.addr %s412, 8
        %s414 = smul.addr %s410, 16
        %s415 = sadd.s32 %s413, %s414
        %s416 = smul.addr %s415, 8
        %s417 = scalar_lea.vmem %s7, %s416
        %v419 = vld [vmem:[%s370] sm:$0xf]
        %s420 = scalar_lea.vmem %s370, 4 [#allocation3]
        %v421 = vld [vmem:[%s420] sm:$0xf]
        %s422 = scalar_lea.vmem %s370, 8 [#allocation3]
        %v423 = vld [vmem:[%s422] sm:$0xf]
        %s424 = scalar_lea.vmem %s370, 12 [#allocation3]
        %v425 = vld [vmem:[%s424] sm:$0xf]
        %v427 = vrot.slane %v421, 4
        %v430 = vrot.slane %v425, 4
        %vm432 = vcmask 1043456
        %v433 = vsel %vm432, %v419, %v427
        %v434 = vsel %vm432, %v423, %v430
        %vm435 = vcmask 130048
        %v436 = vsel %vm435, %v433, 0.0
        %437 = vadd.xlane.f32.xlu0 %v436
        %v438 = vpop.xlane.xlu0 %437
        %v439 = vsel %vm435, %v434, 0.0
        %440 = vadd.xlane.f32.xlu0 %v439
        %v441 = vpop.xlane.xlu0 %440
        %v442 = vrcp.pop 16.0
        %v443 = vmul.f32 %v438, %v442
        %v444 = vmul.f32 %v441, %v442
        %v445 = vsub.f32 %v433, %v443
        %v446 = vsub.f32 %v434, %v444
        %v447 = vmul.f32 %v445, %v445
        %v448 = vmul.f32 %v446, %v446
        %v449 = vsel %vm435, %v447, 0.0
        %450 = vadd.xlane.f32.xlu0 %v449
        %v451 = vpop.xlane.xlu0 %450
        %v452 = vsel %vm435, %v448, 0.0
        %453 = vadd.xlane.f32.xlu0 %v452
        %v454 = vpop.xlane.xlu0 %453
        %v455 = vmul.f32 %v451, %v442
        %v456 = vmul.f32 %v454, %v442
        %v457 = vadd.f32 %v455, 1e-05
        %v458 = vadd.f32 %v456, 1e-05
        %v459 = vrsqrt.pop %v457
        %v460 = vrsqrt.pop %v458
        %v461 = vmul.f32 %v445, %v459
        %v462 = vmul.f32 %v446, %v460
        %v463 = vld [vmem:[%s1] sm:$0x1]
        %v465 = vlaneseq
        %v466 = vshrl.u32 %v465, 7
        %v467 = vsub.s32 0, %v466
        %v468 = vrot.slane %v463, %v467
        %v470 = vmul.f32 %v461, %v468
        %v471 = vmul.f32 %v462, %v468
        %v472 = vld [vmem:[%s2] sm:$0x1]
        %v474 = vlaneseq
        %v475 = vshrl.u32 %v474, 7
        %v476 = vsub.s32 0, %v475
        %v477 = vrot.slane %v472, %v476
        %v479 = vadd.f32 %v470, %v477
        %v480 = vadd.f32 %v471, %v477
        %v481 = vpack.c.bf16 %v480, %v479
        %v482 = vld [vmem:[%s3] sm:$0xf]
        %v483 = vld [vmem:[%s3 + $0x4] sm:$0xf]
        %v484 = vld [vmem:[%s4] sm:$0x1]
        %v486 = vlaneseq
        %v487 = vshrl.u32 %v486, 7
        %v488 = vsub.s32 0, %v487
        %v489 = vrot.slane %v484, %v488
        %v493 = vunpack.c.l.b16 %v482
        %v494 = vunpack.c.l.b16 %v483
        %v495 = vpack.c.b16 %v494, %v493
        %v498 = vsel %vm435, %v481, 0
        %500 = vmatprep.subr.bf16.mxu0 0
        %501 = vmatpush1.bf16.msra.mxu0 %v495
        %502 = vmatprep.subr.bf16.mxu0 0
        %503 = vmatpush1.bf16.msra.mxu0 0
        %504 = vmatprep.subr.bf16.mxu0 0
        %505 = vmatpush1.bf16.msra.mxu0 0
        %506 = vmatprep.subr.bf16.mxu0 0
        %507 = vmatpush1.bf16.msra.mxu0 0
        %508 = vmatprep.subr.bf16.mxu0 0
        %509 = vmatpush1.bf16.msra.mxu0 0
        %510 = vmatprep.subr.bf16.mxu0 0
        %511 = vmatpush1.bf16.msra.mxu0 0
        %512 = vmatprep.subr.bf16.mxu0 0
        %513 = vmatpush1.bf16.msra.mxu0 0
        %514 = vmatprep.subr.bf16.mxu0 0
        %515 = vmatpush1.bf16.msra.mxu0 0
        %516 = vmatprep.subr.bf16.mxu0 0
        %517 = vmatpush1.bf16.msra.mxu0 0
        %518 = vmatprep.subr.bf16.mxu0 0
        %519 = vmatpush1.bf16.msra.mxu0 0
        %520 = vmatprep.subr.bf16.mxu0 0
        %521 = vmatpush1.bf16.msra.mxu0 0
        %522 = vmatprep.subr.bf16.mxu0 0
        %523 = vmatpush1.bf16.msra.mxu0 0
        %524 = vmatprep.subr.bf16.mxu0 0
        %525 = vmatpush1.bf16.msra.mxu0 0
        %526 = vmatprep.subr.bf16.mxu0 0
        %527 = vmatpush1.bf16.msra.mxu0 0
        %528 = vmatprep.subr.bf16.mxu0 0
        %529 = vmatpush1.bf16.msra.mxu0 0
        %530 = vmatprep.subr.bf16.mxu0 0
        %531 = vmatpush1.bf16.msra.mxu0 0
        %532 = vmatprep.mubr.bf16.mxu0 0
        %533 = vmatmul.mubr.bf16.gmra.mrb[0].mxu0 %v498
        %v534 = vpop.f32.mrb[0].mxu0
        %v535 = vadd.f32 %v489, %v534
        %v536 = vpop.f32.mrb[0].mxu0
        %v537 = vpop.f32.mrb[0].mxu0
        %v538 = vadd.f32 %v489, %v537
        %v539 = vpop.f32.mrb[0].mxu0
        %540 = vdwg.mxu0
        %v541 = vmul.f32 %v535, 0.5
        %v542 = vmul.f32 %v538, 0.5
        %v543 = vpack.c.bf16 %v542, %v541
        %v544 = vpack.c.bf16 %v538, %v535
        %v545 = vld [vmem:[%s417] sm:$0xff]
        %v546 = vld [vmem:[%s417 + $0x8] sm:$0xff]
        %548 = vrot.lane.b32.xlu0 %v544, 112
        %v549 = vpop.permute.xlu0 %548
        %vm550 = vcmask 31744
        %v552 = vsel %vm550, %v543, 0
        %v555 = vsel %vm550, %v549, 0
        %557 = vmatprep.subr.bf16.mxu0 0
        %558 = vmatpush1.bf16.xpose.msra.mxu0 %v555
        %559 = vmatprep.subr.bf16.mxu0 0
        %560 = vmatpush1.bf16.xpose.msra.mxu0 0
        %561 = vmatprep.subr.bf16.mxu0 0
        %562 = vmatpush1.bf16.xpose.msra.mxu0 0
        %563 = vmatprep.subr.bf16.mxu0 0
        %564 = vmatpush1.bf16.xpose.msra.mxu0 0
        %565 = vmatprep.subr.bf16.mxu0 0
        %566 = vmatpush1.bf16.xpose.msra.mxu0 0
        %567 = vmatprep.subr.bf16.mxu0 0
        %568 = vmatpush1.bf16.xpose.msra.mxu0 0
        %569 = vmatprep.subr.bf16.mxu0 0
        %570 = vmatpush1.bf16.xpose.msra.mxu0 0
        %571 = vmatprep.subr.bf16.mxu0 0
        %572 = vmatpush1.bf16.xpose.msra.mxu0 0
        %573 = vmatprep.subr.bf16.mxu0 0
        %574 = vmatpush1.bf16.xpose.msra.mxu0 0
        %575 = vmatprep.subr.bf16.mxu0 0
        %576 = vmatpush1.bf16.xpose.msra.mxu0 0
        %577 = vmatprep.subr.bf16.mxu0 0
        %578 = vmatpush1.bf16.xpose.msra.mxu0 0
        %579 = vmatprep.subr.bf16.mxu0 0
        %580 = vmatpush1.bf16.xpose.msra.mxu0 0
        %581 = vmatprep.subr.bf16.mxu0 0
        %582 = vmatpush1.bf16.xpose.msra.mxu0 0
        %583 = vmatprep.subr.bf16.mxu0 0
        %584 = vmatpush1.bf16.xpose.msra.mxu0 0
        %585 = vmatprep.subr.bf16.mxu0 0
        %586 = vmatpush1.bf16.xpose.msra.mxu0 0
        %587 = vmatprep.subr.bf16.mxu0 0
        %588 = vmatpush1.bf16.xpose.msra.mxu0 0
        %589 = vmatprep.mubr.bf16.mxu0 0
        %590 = vmatmul.mubr.bf16.gmra.mrb[0].mxu0 %v552
        %v591 = vpop.f32.mrb[0].mxu0
        %v592 = vadd.f32 %v545, %v591
        %v593 = vpop.f32.mrb[0].mxu0
        %v594 = vpop.f32.mrb[0].mxu0
        %v595 = vadd.f32 %v546, %v594
        %v596 = vpop.f32.mrb[0].mxu0
        %597 = vdwg.mxu0
        %v598 = vsel %vm435, %v592, -inf
        %599 = vmax.xlane.f32.xlu0 %v598
        %v600 = vpop.xlane.xlu0 %599
        %v601 = vsel %vm435, %v595, -inf
        %602 = vmax.xlane.f32.xlu0 %v601
        %v603 = vpop.xlane.xlu0 %602
        %v604 = vsub.f32 %v592, %v600
        %v605 = vsub.f32 %v595, %v603
        %v606 = vmul.f32 %v604, 1.442695
        %v607 = vpow.pop %v606
        %v608 = vmul.f32 %v605, 1.442695
        %v609 = vpow.pop %v608
        %v610 = vsel %vm435, %v607, 0.0
        %611 = vadd.xlane.f32.xlu0 %v610
        %v612 = vpop.xlane.xlu0 %611
        %v613 = vsel %vm435, %v609, 0.0
        %614 = vadd.xlane.f32.xlu0 %v613
        %v615 = vpop.xlane.xlu0 %614
        %v616 = vrcp.pop %v612
        %v617 = vmul.f32 %v607, %v616
        %v618 = vrcp.pop %v615
        %v619 = vmul.f32 %v609, %v618
        %v620 = vpack.c.bf16 %v619, %v617
        %621 = vrot.lane.b32.xlu0 %v544, 96
        %v622 = vpop.permute.xlu0 %621
        %v625 = vsel %vm435, %v620, 0
        %627 = vmatprep.subr.bf16.mxu0 0
        %628 = vmatpush1.bf16.msra.mxu0 %v622
        %629 = vmatprep.subr.bf16.mxu0 0
        %630 = vmatpush1.bf16.msra.mxu0 0
        %631 = vmatprep.subr.bf16.mxu0 0
        %632 = vmatpush1.bf16.msra.mxu0 0
        %633 = vmatprep.subr.bf16.mxu0 0
        %634 = vmatpush1.bf16.msra.mxu0 0
        %635 = vmatprep.subr.bf16.mxu0 0
        %636 = vmatpush1.bf16.msra.mxu0 0
        %637 = vmatprep.subr.bf16.mxu0 0
        %638 = vmatpush1.bf16.msra.mxu0 0
        %639 = vmatprep.subr.bf16.mxu0 0
        %640 = vmatpush1.bf16.msra.mxu0 0
        %641 = vmatprep.subr.bf16.mxu0 0
        %642 = vmatpush1.bf16.msra.mxu0 0
        %643 = vmatprep.subr.bf16.mxu0 0
        %644 = vmatpush1.bf16.msra.mxu0 0
        %645 = vmatprep.subr.bf16.mxu0 0
        %646 = vmatpush1.bf16.msra.mxu0 0
        %647 = vmatprep.subr.bf16.mxu0 0
        %648 = vmatpush1.bf16.msra.mxu0 0
        %649 = vmatprep.subr.bf16.mxu0 0
        %650 = vmatpush1.bf16.msra.mxu0 0
        %651 = vmatprep.subr.bf16.mxu0 0
        %652 = vmatpush1.bf16.msra.mxu0 0
        %653 = vmatprep.subr.bf16.mxu0 0
        %654 = vmatpush1.bf16.msra.mxu0 0
        %655 = vmatprep.subr.bf16.mxu0 0
        %656 = vmatpush1.bf16.msra.mxu0 0
        %657 = vmatprep.subr.bf16.mxu0 0
        %658 = vmatpush1.bf16.msra.mxu0 0
        %659 = vmatprep.mubr.bf16.mxu0 0
        %660 = vmatmul.mubr.bf16.gmra.mrb[0].mxu0 %v625
        %v661 = vpop.f32.mrb[0].mxu0
        %v662 = vadd.f32 0.0, %v661
        %v663 = vpop.f32.mrb[0].mxu0
        %v664 = vpop.f32.mrb[0].mxu0
        %v665 = vadd.f32 0.0, %v664
        %v666 = vpop.f32.mrb[0].mxu0
        %667 = vdwg.mxu0
        %668 = vst.msk [vmem:[#allocation2] sm:$0xff] %vm550, %v662
        %669 = vst.msk [vmem:[#allocation2 + $0x8] sm:$0xff] %vm550, %v665
        %s670 = scalar_lea.vmem %s417, 16
        %v671 = vld [vmem:[%s670] sm:$0xff]
        %v672 = vld [vmem:[%s670 + $0x8] sm:$0xff]
        %674 = vrot.lane.b32.xlu0 %v543, 124
        %v675 = vpop.permute.xlu0 %674
        %676 = vrot.lane.b32.xlu0 %v544, 108
        %v677 = vpop.permute.xlu0 %676
        %v679 = vsel %vm550, %v675, 0
        %v682 = vsel %vm550, %v677, 0
        %684 = vmatprep.subr.bf16.mxu0 0
        %685 = vmatpush1.bf16.xpose.msra.mxu0 %v682
        %686 = vmatprep.subr.bf16.mxu0 0
        %687 = vmatpush1.bf16.xpose.msra.mxu0 0
        %688 = vmatprep.subr.bf16.mxu0 0
        %689 = vmatpush1.bf16.xpose.msra.mxu0 0
        %690 = vmatprep.subr.bf16.mxu0 0
        %691 = vmatpush1.bf16.xpose.msra.mxu0 0
        %692 = vmatprep.subr.bf16.mxu0 0
        %693 = vmatpush1.bf16.xpose.msra.mxu0 0
        %694 = vmatprep.subr.bf16.mxu0 0
        %695 = vmatpush1.bf16.xpose.msra.mxu0 0
        %696 = vmatprep.subr.bf16.mxu0 0
        %697 = vmatpush1.bf16.xpose.msra.mxu0 0
        %698 = vmatprep.subr.bf16.mxu0 0
        %699 = vmatpush1.bf16.xpose.msra.mxu0 0
        %700 = vmatprep.subr.bf16.mxu0 0
        %701 = vmatpush1.bf16.xpose.msra.mxu0 0
        %702 = vmatprep.subr.bf16.mxu0 0
        %703 = vmatpush1.bf16.xpose.msra.mxu0 0
        %704 = vmatprep.subr.bf16.mxu0 0
        %705 = vmatpush1.bf16.xpose.msra.mxu0 0
        %706 = vmatprep.subr.bf16.mxu0 0
        %707 = vmatpush1.bf16.xpose.msra.mxu0 0
        %708 = vmatprep.subr.bf16.mxu0 0
        %709 = vmatpush1.bf16.xpose.msra.mxu0 0
        %710 = vmatprep.subr.bf16.mxu0 0
        %711 = vmatpush1.bf16.xpose.msra.mxu0 0
        %712 = vmatprep.subr.bf16.mxu0 0
        %713 = vmatpush1.bf16.xpose.msra.mxu0 0
        %714 = vmatprep.subr.bf16.mxu0 0
        %715 = vmatpush1.bf16.xpose.msra.mxu0 0
        %716 = vmatprep.mubr.bf16.mxu0 0
        %717 = vmatmul.mubr.bf16.gmra.mrb[0].mxu0 %v679
        %v718 = vpop.f32.mrb[0].mxu0
        %v719 = vadd.f32 %v671, %v718
        %v720 = vpop.f32.mrb[0].mxu0
        %v721 = vpop.f32.mrb[0].mxu0
        %v722 = vadd.f32 %v672, %v721
        %v723 = vpop.f32.mrb[0].mxu0
        %724 = vdwg.mxu0
        %v725 = vsel %vm435, %v719, -inf
        %726 = vmax.xlane.f32.xlu0 %v725
        %v727 = vpop.xlane.xlu0 %726
        %v728 = vsel %vm435, %v722, -inf
        %729 = vmax.xlane.f32.xlu0 %v728
        %v730 = vpop.xlane.xlu0 %729
        %v731 = vsub.f32 %v719, %v727
        %v732 = vsub.f32 %v722, %v730
        %v733 = vmul.f32 %v731, 1.442695
        %v734 = vpow.pop %v733
        %v735 = vmul.f32 %v732, 1.442695
        %v736 = vpow.pop %v735
        %v737 = vsel %vm435, %v734, 0.0
        %738 = vadd.xlane.f32.xlu0 %v737
        %v739 = vpop.xlane.xlu0 %738
        %v740 = vsel %vm435, %v736, 0.0
        %741 = vadd.xlane.f32.xlu0 %v740
        %v742 = vpop.xlane.xlu0 %741
        %v743 = vrcp.pop %v739
        %v744 = vmul.f32 %v734, %v743
        %v745 = vrcp.pop %v742
        %v746 = vmul.f32 %v736, %v745
        %v747 = vpack.c.bf16 %v746, %v744
        %748 = vrot.lane.b32.xlu0 %v544, 92
        %v749 = vpop.permute.xlu0 %748
        %v752 = vsel %vm435, %v747, 0
        %754 = vmatprep.subr.bf16.mxu0 0
        %755 = vmatpush1.bf16.msra.mxu0 %v749
        %756 = vmatprep.subr.bf16.mxu0 0
        %757 = vmatpush1.bf16.msra.mxu0 0
        %758 = vmatprep.subr.bf16.mxu0 0
        %759 = vmatpush1.bf16.msra.mxu0 0
        %760 = vmatprep.subr.bf16.mxu0 0
        %761 = vmatpush1.bf16.msra.mxu0 0
        %762 = vmatprep.subr.bf16.mxu0 0
        %763 = vmatpush1.bf16.msra.mxu0 0
        %764 = vmatprep.subr.bf16.mxu0 0
        %765 = vmatpush1.bf16.msra.mxu0 0
        %766 = vmatprep.subr.bf16.mxu0 0
        %767 = vmatpush1.bf16.msra.mxu0 0
        %768 = vmatprep.subr.bf16.mxu0 0
        %769 = vmatpush1.bf16.msra.mxu0 0
        %770 = vmatprep.subr.bf16.mxu0 0
        %771 = vmatpush1.bf16.msra.mxu0 0
        %772 = vmatprep.subr.bf16.mxu0 0
        %773 = vmatpush1.bf16.msra.mxu0 0
        %774 = vmatprep.subr.bf16.mxu0 0
        %775 = vmatpush1.bf16.msra.mxu0 0
        %776 = vmatprep.subr.bf16.mxu0 0
        %777 = vmatpush1.bf16.msra.mxu0 0
        %778 = vmatprep.subr.bf16.mxu0 0
        %779 = vmatpush1.bf16.msra.mxu0 0
        %780 = vmatprep.subr.bf16.mxu0 0
        %781 = vmatpush1.bf16.msra.mxu0 0
        %782 = vmatprep.subr.bf16.mxu0 0
        %783 = vmatpush1.bf16.msra.mxu0 0
        %784 = vmatprep.subr.bf16.mxu0 0
        %785 = vmatpush1.bf16.msra.mxu0 0
        %786 = vmatprep.mubr.bf16.mxu0 0
        %787 = vmatmul.mubr.bf16.gmra.mrb[0].mxu0 %v752
        %v788 = vpop.f32.mrb[0].mxu0
        %v789 = vadd.f32 0.0, %v788
        %v790 = vpop.f32.mrb[0].mxu0
        %v791 = vpop.f32.mrb[0].mxu0
        %v792 = vadd.f32 0.0, %v791
        %v793 = vpop.f32.mrb[0].mxu0
        %794 = vdwg.mxu0
        %797 = vrot.lane.b32.xlu0 %v789, 4
        %v798 = vpop.permute.xlu0 %797
        %799 = vrot.lane.b32.xlu0 %v792, 4
        %v800 = vpop.permute.xlu0 %799
        %vm803 = vcmask 64544
        %804 = vst.msk [vmem:[#allocation2] sm:$0xff] %vm803, %v798
        %805 = vst.msk [vmem:[#allocation2 + $0x8] sm:$0xff] %vm803, %v800
        %s806 = scalar_lea.vmem %s417, 32
        %v807 = vld [vmem:[%s806] sm:$0xff]
        %v808 = vld [vmem:[%s806 + $0x8] sm:$0xff]
        %809 = vrot.lane.b32.xlu0 %v543, 120
        %v810 = vpop.permute.xlu0 %809
        %811 = vrot.lane.b32.xlu0 %v544, 104
        %v812 = vpop.permute.xlu0 %811
        %v814 = vsel %vm550, %v810, 0
        %v817 = vsel %vm550, %v812, 0
        %819 = vmatprep.subr.bf16.mxu0 0
        %820 = vmatpush1.bf16.xpose.msra.mxu0 %v817
        %821 = vmatprep.subr.bf16.mxu0 0
        %822 = vmatpush1.bf16.xpose.msra.mxu0 0
        %823 = vmatprep.subr.bf16.mxu0 0
        %824 = vmatpush1.bf16.xpose.msra.mxu0 0
        %825 = vmatprep.subr.bf16.mxu0 0
        %826 = vmatpush1.bf16.xpose.msra.mxu0 0
        %827 = vmatprep.subr.bf16.mxu0 0
        %828 = vmatpush1.bf16.xpose.msra.mxu0 0
        %829 = vmatprep.subr.bf16.mxu0 0
        %830 = vmatpush1.bf16.xpose.msra.mxu0 0
        %831 = vmatprep.subr.bf16.mxu0 0
        %832 = vmatpush1.bf16.xpose.msra.mxu0 0
        %833 = vmatprep.subr.bf16.mxu0 0
        %834 = vmatpush1.bf16.xpose.msra.mxu0 0
        %835 = vmatprep.subr.bf16.mxu0 0
        %836 = vmatpush1.bf16.xpose.msra.mxu0 0
        %837 = vmatprep.subr.bf16.mxu0 0
        %838 = vmatpush1.bf16.xpose.msra.mxu0 0
        %839 = vmatprep.subr.bf16.mxu0 0
        %840 = vmatpush1.bf16.xpose.msra.mxu0 0
        %841 = vmatprep.subr.bf16.mxu0 0
        %842 = vmatpush1.bf16.xpose.msra.mxu0 0
        %843 = vmatprep.subr.bf16.mxu0 0
        %844 = vmatpush1.bf16.xpose.msra.mxu0 0
        %845 = vmatprep.subr.bf16.mxu0 0
        %846 = vmatpush1.bf16.xpose.msra.mxu0 0
        %847 = vmatprep.subr.bf16.mxu0 0
        %848 = vmatpush1.bf16.xpose.msra.mxu0 0
        %849 = vmatprep.subr.bf16.mxu0 0
        %850 = vmatpush1.bf16.xpose.msra.mxu0 0
        %851 = vmatprep.mubr.bf16.mxu0 0
        %852 = vmatmul.mubr.bf16.gmra.mrb[0].mxu0 %v814
        %v853 = vpop.f32.mrb[0].mxu0
        %v854 = vadd.f32 %v807, %v853
        %v855 = vpop.f32.mrb[0].mxu0
        %v856 = vpop.f32.mrb[0].mxu0
        %v857 = vadd.f32 %v808, %v856
        %v858 = vpop.f32.mrb[0].mxu0
        %859 = vdwg.mxu0
        %v860 = vsel %vm435, %v854, -inf
        %861 = vmax.xlane.f32.xlu0 %v860
        %v862 = vpop.xlane.xlu0 %861
        %v863 = vsel %vm435, %v857, -inf
        %864 = vmax.xlane.f32.xlu0 %v863
        %v865 = vpop.xlane.xlu0 %864
        %v866 = vsub.f32 %v854, %v862
        %v867 = vsub.f32 %v857, %v865
        %v868 = vmul.f32 %v866, 1.442695
        %v869 = vpow.pop %v868
        %v870 = vmul.f32 %v867, 1.442695
        %v871 = vpow.pop %v870
        %v872 = vsel %vm435, %v869, 0.0
        %873 = vadd.xlane.f32.xlu0 %v872
        %v874 = vpop.xlane.xlu0 %873
        %v875 = vsel %vm435, %v871, 0.0
        %876 = vadd.xlane.f32.xlu0 %v875
        %v877 = vpop.xlane.xlu0 %876
        %v878 = vrcp.pop %v874
        %v879 = vmul.f32 %v869, %v878
        %v880 = vrcp.pop %v877
        %v881 = vmul.f32 %v871, %v880
        %v882 = vpack.c.bf16 %v881, %v879
        %883 = vrot.lane.b32.xlu0 %v544, 88
        %v884 = vpop.permute.xlu0 %883
        %v887 = vsel %vm435, %v882, 0
        %889 = vmatprep.subr.bf16.mxu0 0
        %890 = vmatpush1.bf16.msra.mxu0 %v884
        %891 = vmatprep.subr.bf16.mxu0 0
        %892 = vmatpush1.bf16.msra.mxu0 0
        %893 = vmatprep.subr.bf16.mxu0 0
        %894 = vmatpush1.bf16.msra.mxu0 0
        %895 = vmatprep.subr.bf16.mxu0 0
        %896 = vmatpush1.bf16.msra.mxu0 0
        %897 = vmatprep.subr.bf16.mxu0 0
        %898 = vmatpush1.bf16.msra.mxu0 0
        %899 = vmatprep.subr.bf16.mxu0 0
        %900 = vmatpush1.bf16.msra.mxu0 0
        %901 = vmatprep.subr.bf16.mxu0 0
        %902 = vmatpush1.bf16.msra.mxu0 0
        %903 = vmatprep.subr.bf16.mxu0 0
        %904 = vmatpush1.bf16.msra.mxu0 0
        %905 = vmatprep.subr.bf16.mxu0 0
        %906 = vmatpush1.bf16.msra.mxu0 0
        %907 = vmatprep.subr.bf16.mxu0 0
        %908 = vmatpush1.bf16.msra.mxu0 0
        %909 = vmatprep.subr.bf16.mxu0 0
        %910 = vmatpush1.bf16.msra.mxu0 0
        %911 = vmatprep.subr.bf16.mxu0 0
        %912 = vmatpush1.bf16.msra.mxu0 0
        %913 = vmatprep.subr.bf16.mxu0 0
        %914 = vmatpush1.bf16.msra.mxu0 0
        %915 = vmatprep.subr.bf16.mxu0 0
        %916 = vmatpush1.bf16.msra.mxu0 0
        %917 = vmatprep.subr.bf16.mxu0 0
        %918 = vmatpush1.bf16.msra.mxu0 0
        %919 = vmatprep.subr.bf16.mxu0 0
        %920 = vmatpush1.bf16.msra.mxu0 0
        %921 = vmatprep.mubr.bf16.mxu0 0
        %922 = vmatmul.mubr.bf16.gmra.mrb[0].mxu0 %v887
        %v923 = vpop.f32.mrb[0].mxu0
        %v924 = vadd.f32 0.0, %v923
        %v925 = vpop.f32.mrb[0].mxu0
        %v926 = vpop.f32.mrb[0].mxu0
        %v927 = vadd.f32 0.0, %v926
        %v928 = vpop.f32.mrb[0].mxu0
        %929 = vdwg.mxu0
        %932 = vrot.lane.b32.xlu0 %v924, 8
        %v933 = vpop.permute.xlu0 %932
        %934 = vrot.lane.b32.xlu0 %v927, 8
        %v935 = vpop.permute.xlu0 %934
        %vm938 = vcmask 97344
        %939 = vst.msk [vmem:[#allocation2] sm:$0xff] %vm938, %v933
        %940 = vst.msk [vmem:[#allocation2 + $0x8] sm:$0xff] %vm938, %v935
        %s941 = scalar_lea.vmem %s417, 48
        %v942 = vld [vmem:[%s941] sm:$0xff]
        %v943 = vld [vmem:[%s941 + $0x8] sm:$0xff]
        %944 = vrot.lane.b32.xlu0 %v543, 116
        %v945 = vpop.permute.xlu0 %944
        %946 = vrot.lane.b32.xlu0 %v544, 100
        %v947 = vpop.permute.xlu0 %946
        %v949 = vsel %vm550, %v945, 0
        %v952 = vsel %vm550, %v947, 0
        %954 = vmatprep.subr.bf16.mxu0 0
        %955 = vmatpush1.bf16.xpose.msra.mxu0 %v952
        %956 = vmatprep.subr.bf16.mxu0 0
        %957 = vmatpush1.bf16.xpose.msra.mxu0 0
        %958 = vmatprep.subr.bf16.mxu0 0
        %959 = vmatpush1.bf16.xpose.msra.mxu0 0
        %960 = vmatprep.subr.bf16.mxu0 0
        %961 = vmatpush1.bf16.xpose.msra.mxu0 0
        %962 = vmatprep.subr.bf16.mxu0 0
        %963 = vmatpush1.bf16.xpose.msra.mxu0 0
        %964 = vmatprep.subr.bf16.mxu0 0
        %965 = vmatpush1.bf16.xpose.msra.mxu0 0
        %966 = vmatprep.subr.bf16.mxu0 0
        %967 = vmatpush1.bf16.xpose.msra.mxu0 0
        %968 = vmatprep.subr.bf16.mxu0 0
        %969 = vmatpush1.bf16.xpose.msra.mxu0 0
        %970 = vmatprep.subr.bf16.mxu0 0
        %971 = vmatpush1.bf16.xpose.msra.mxu0 0
        %972 = vmatprep.subr.bf16.mxu0 0
        %973 = vmatpush1.bf16.xpose.msra.mxu0 0
        %974 = vmatprep.subr.bf16.mxu0 0
        %975 = vmatpush1.bf16.xpose.msra.mxu0 0
        %976 = vmatprep.subr.bf16.mxu0 0
        %977 = vmatpush1.bf16.xpose.msra.mxu0 0
        %978 = vmatprep.subr.bf16.mxu0 0
        %979 = vmatpush1.bf16.xpose.msra.mxu0 0
        %980 = vmatprep.subr.bf16.mxu0 0
        %981 = vmatpush1.bf16.xpose.msra.mxu0 0
        %982 = vmatprep.subr.bf16.mxu0 0
        %983 = vmatpush1.bf16.xpose.msra.mxu0 0
        %984 = vmatprep.subr.bf16.mxu0 0
        %985 = vmatpush1.bf16.xpose.msra.mxu0 0
        %986 = vmatprep.mubr.bf16.mxu0 0
        %987 = vmatmul.mubr.bf16.gmra.mrb[0].mxu0 %v949
        %v988 = vpop.f32.mrb[0].mxu0
        %v989 = vadd.f32 %v942, %v988
        %v990 = vpop.f32.mrb[0].mxu0
        %v991 = vpop.f32.mrb[0].mxu0
        %v992 = vadd.f32 %v943, %v991
        %v993 = vpop.f32.mrb[0].mxu0
        %994 = vdwg.mxu0
        %v995 = vsel %vm435, %v989, -inf
        %996 = vmax.xlane.f32.xlu0 %v995
        %v997 = vpop.xlane.xlu0 %996
        %v998 = vsel %vm435, %v992, -inf
        %999 = vmax.xlane.f32.xlu0 %v998
        %v1000 = vpop.xlane.xlu0 %999
        %v1001 = vsub.f32 %v989, %v997
        %v1002 = vsub.f32 %v992, %v1000
        %v1003 = vmul.f32 %v1001, 1.442695
        %v1004 = vpow.pop %v1003
        %v1005 = vmul.f32 %v1002, 1.442695
        %v1006 = vpow.pop %v1005
        %v1007 = vsel %vm435, %v1004, 0.0
        %1008 = vadd.xlane.f32.xlu0 %v1007
        %v1009 = vpop.xlane.xlu0 %1008
        %v1010 = vsel %vm435, %v1006, 0.0
        %1011 = vadd.xlane.f32.xlu0 %v1010
        %v1012 = vpop.xlane.xlu0 %1011
        %v1013 = vrcp.pop %v1009
        %v1014 = vmul.f32 %v1004, %v1013
        %v1015 = vrcp.pop %v1012
        %v1016 = vmul.f32 %v1006, %v1015
        %v1017 = vpack.c.bf16 %v1016, %v1014
        %1018 = vrot.lane.b32.xlu0 %v544, 84
        %v1019 = vpop.permute.xlu0 %1018
        %v1022 = vsel %vm435, %v1017, 0
        %1024 = vmatprep.subr.bf16.mxu0 0
        %1025 = vmatpush1.bf16.msra.mxu0 %v1019
        %1026 = vmatprep.subr.bf16.mxu0 0
        %1027 = vmatpush1.bf16.msra.mxu0 0
        %1028 = vmatprep.subr.bf16.mxu0 0
        %1029 = vmatpush1.bf16.msra.mxu0 0
        %1030 = vmatprep.subr.bf16.mxu0 0
        %1031 = vmatpush1.bf16.msra.mxu0 0
        %1032 = vmatprep.subr.bf16.mxu0 0
        %1033 = vmatpush1.bf16.msra.mxu0 0
        %1034 = vmatprep.subr.bf16.mxu0 0
        %1035 = vmatpush1.bf16.msra.mxu0 0
        %1036 = vmatprep.subr.bf16.mxu0 0
        %1037 = vmatpush1.bf16.msra.mxu0 0
        %1038 = vmatprep.subr.bf16.mxu0 0
        %1039 = vmatpush1.bf16.msra.mxu0 0
        %1040 = vmatprep.subr.bf16.mxu0 0
        %1041 = vmatpush1.bf16.msra.mxu0 0
        %1042 = vmatprep.subr.bf16.mxu0 0
        %1043 = vmatpush1.bf16.msra.mxu0 0
        %1044 = vmatprep.subr.bf16.mxu0 0
        %1045 = vmatpush1.bf16.msra.mxu0 0
        %1046 = vmatprep.subr.bf16.mxu0 0
        %1047 = vmatpush1.bf16.msra.mxu0 0
        %1048 = vmatprep.subr.bf16.mxu0 0
        %1049 = vmatpush1.bf16.msra.mxu0 0
        %1050 = vmatprep.subr.bf16.mxu0 0
        %1051 = vmatpush1.bf16.msra.mxu0 0
        %1052 = vmatprep.subr.bf16.mxu0 0
        %1053 = vmatpush1.bf16.msra.mxu0 0
        %1054 = vmatprep.subr.bf16.mxu0 0
        %1055 = vmatpush1.bf16.msra.mxu0 0
        %1056 = vmatprep.mubr.bf16.mxu0 0
        %1057 = vmatmul.mubr.bf16.gmra.mrb[0].mxu0 %v1022
        %v1058 = vpop.f32.mrb[0].mxu0
        %v1059 = vadd.f32 0.0, %v1058
        %v1060 = vpop.f32.mrb[0].mxu0
        %v1061 = vpop.f32.mrb[0].mxu0
        %v1062 = vadd.f32 0.0, %v1061
        %v1063 = vpop.f32.mrb[0].mxu0
        %1064 = vdwg.mxu0
        %1067 = vrot.lane.b32.xlu0 %v1059, 12
        %v1068 = vpop.permute.xlu0 %1067
        %1069 = vrot.lane.b32.xlu0 %v1062, 12
        %v1070 = vpop.permute.xlu0 %1069
        %vm1073 = vcmask 130144
        %1074 = vst.msk [vmem:[#allocation2] sm:$0xff] %vm1073, %v1068
        %1075 = vst.msk [vmem:[#allocation2 + $0x8] sm:$0xff] %vm1073, %v1070
        %v1076 = vld [vmem:[#allocation2] sm:$0xff]
        %v1077 = vld [vmem:[#allocation2 + $0x8] sm:$0xff]
        %v1078 = vpack.c.bf16 %v1077, %v1076
        %v1079 = vld [vmem:[%s5] sm:$0xf]
        %v1080 = vld [vmem:[%s5 + $0x4] sm:$0xf]
        %v1081 = vld [vmem:[%s6] sm:$0x1]
        %v1083 = vlaneseq
        %v1084 = vshrl.u32 %v1083, 7
        %v1085 = vsub.s32 0, %v1084
        %v1086 = vrot.slane %v1081, %v1085
        %v1090 = vunpack.c.l.b16 %v1079
        %v1091 = vunpack.c.l.b16 %v1080
        %v1092 = vpack.c.b16 %v1091, %v1090
        %v1095 = vsel %vm435, %v1078, 0
        %1097 = vmatprep.subr.bf16.mxu0 0
        %1098 = vmatpush1.bf16.msra.mxu0 %v1092
        %1099 = vmatprep.subr.bf16.mxu0 0
        %1100 = vmatpush1.bf16.msra.mxu0 0
        %1101 = vmatprep.subr.bf16.mxu0 0
        %1102 = vmatpush1.bf16.msra.mxu0 0
        %1103 = vmatprep.subr.bf16.mxu0 0
        %1104 = vmatpush1.bf16.msra.mxu0 0
        %1105 = vmatprep.subr.bf16.mxu0 0
        %1106 = vmatpush1.bf16.msra.mxu0 0
        %1107 = vmatprep.subr.bf16.mxu0 0
        %1108 = vmatpush1.bf16.msra.mxu0 0
        %1109 = vmatprep.subr.bf16.mxu0 0
        %1110 = vmatpush1.bf16.msra.mxu0 0
        %1111 = vmatprep.subr.bf16.mxu0 0
        %1112 = vmatpush1.bf16.msra.mxu0 0
        %1113 = vmatprep.subr.bf16.mxu0 0
        %1114 = vmatpush1.bf16.msra.mxu0 0
        %1115 = vmatprep.subr.bf16.mxu0 0
        %1116 = vmatpush1.bf16.msra.mxu0 0
        %1117 = vmatprep.subr.bf16.mxu0 0
        %1118 = vmatpush1.bf16.msra.mxu0 0
        %1119 = vmatprep.subr.bf16.mxu0 0
        %1120 = vmatpush1.bf16.msra.mxu0 0
        %1121 = vmatprep.subr.bf16.mxu0 0
        %1122 = vmatpush1.bf16.msra.mxu0 0
        %1123 = vmatprep.subr.bf16.mxu0 0
        %1124 = vmatpush1.bf16.msra.mxu0 0
        %1125 = vmatprep.subr.bf16.mxu0 0
        %1126 = vmatpush1.bf16.msra.mxu0 0
        %1127 = vmatprep.subr.bf16.mxu0 0
        %1128 = vmatpush1.bf16.msra.mxu0 0
        %1129 = vmatprep.mubr.bf16.mxu0 0
        %1130 = vmatmul.mubr.bf16.gmra.mrb[0].mxu0 %v1095
        %v1131 = vpop.f32.mrb[0].mxu0
        %v1132 = vadd.f32 %v1086, %v1131
        %v1133 = vpop.f32.mrb[0].mxu0
        %v1134 = vpop.f32.mrb[0].mxu0
        %v1135 = vadd.f32 %v1086, %v1134
        %v1136 = vpop.f32.mrb[0].mxu0
        %1137 = vdwg.mxu0
        %vm1138 = vcmask 125952
        %1139 = vst.msk [vmem:[%s408] sm:$0xf] %vm1138, %v1132
        %s1140 = scalar_lea.vmem %s408, 4 [#allocation4]
        %vm1141 = vcmask 130052
        %1142 = vst.msk [vmem:[%s1140 - $0x4] sm:$0xf0] %vm1141, %v1132
        %s1143 = scalar_lea.vmem %s408, 8 [#allocation4]
        %1144 = vst.msk [vmem:[%s1143] sm:$0xf] %vm1138, %v1135
        %s1145 = scalar_lea.vmem %s408, 12 [#allocation4]
        %1146 = vst.msk [vmem:[%s1145 - $0x4] sm:$0xf0] %vm1141, %v1135
        %s1147 = sand.u32 %s234, 1
        %s1148 = sand.u32 %s234, 1
        %s1149 = smul.addr %s1148, 16
        %s1150 = scalar_lea.vmem [#allocation4], %s1149
        // Predicated region
        $region94: #{sw_mixffn_block_forward.5} parent=88 // pred_check
          %p1151 = pneg %p244
        $region95: #{sw_mixffn_block_forward.5} parent=88 // pred_check_branch
          %1153 = sbr.rel (%p1151) target = $region97
        $region96: #{sw_mixffn_block_forward.5} parent=88 // pred_region
          %s1154 = smul.addr %s25, 8
          %s1155 = sadd.s32 %s26, %s1154
          %s1156 = smul.addr %s24, 16
          %s1157 = sadd.s32 %s1155, %s1156
          %s1158 = smul.addr %s1157, 4
          %s1159 = scalar_lea.vmem %s8, %s1158
          // Predicated region
          $region98: #{sw_mixffn_block_forward.5} parent=96 // pred_check
            _
          $region99: #{sw_mixffn_block_forward.5} parent=96 // pred_check_branch
            %1161 = sbr.rel (0) target = $region101
          $region100: #{sw_mixffn_block_forward.5} parent=96 // pred_region
            // Predicated region
            $region102: #{sw_mixffn_block_forward.5} parent=100 // pred_check
              _
            $region103: #{sw_mixffn_block_forward.5} parent=100 // pred_check_branch
              %1163 = sbr.rel target = $region105
            $region104: #{sw_mixffn_block_forward.5} parent=100 // pred_region
              // Predicated region
              $region117: #{sw_mixffn_block_forward.5} parent=104 // pred_check
                _
              $region118: #{sw_mixffn_block_forward.5} parent=104 // pred_check_branch
                %1184 = sbr.rel (0) target = $region120
              $region119: #{sw_mixffn_block_forward.5} parent=104 // pred_region
                loop: start=0, step=1, limit=1
                $region121: #{sw_mixffn_block_forward.5} parent=119 // loop_pre_header
                  _
                $region122: #{sw_mixffn_block_forward.5} parent=119 // loop_header
                  %s1186 = sphi 0, %s1190
                  %p1187 = scmp.ge.s32.totalorder %s1186, 1
                  %s1191 = sphi %s1150, %s1150
                  %s1192 = sphi %s1159, %s1159
                $region123: #{sw_mixffn_block_forward.5} parent=119 // loop_header_branch
                  %1189 = sbr.rel (%p1187) target = $region127
                $region124: #{sw_mixffn_block_forward.5} parent=119 // loop_body
                  _
                $region125: #{sw_mixffn_block_forward.5} parent=119 // loop_footer
                  %s1190 = sadd.s32 1, %s1186
                $region126: #{sw_mixffn_block_forward.5} parent=119 // loop_footer_branch
                  %1185 = sbr.rel target = $region122
                $region127: #{sw_mixffn_block_forward.5} parent=119 // loop_exit
                  _
                loop: start=0, step=1, limit=1
                $region128: #{sw_mixffn_block_forward.5} parent=119 // loop_pre_header
                  _
                $region129: #{sw_mixffn_block_forward.5} parent=119 // loop_header
                  %s1195 = sphi 0, %s1199
                  %p1196 = scmp.ge.s32.totalorder %s1195, 1
                  %s1200 = sphi %s1150, %s1150
                  %s1201 = sphi %s1159, %s1159
                $region130: #{sw_mixffn_block_forward.5} parent=119 // loop_header_branch
                  %1198 = sbr.rel (%p1196) target = $region134
                $region131: #{sw_mixffn_block_forward.5} parent=119 // loop_body
                  %v1202 = vld [vmem:[%s1200] sm:$0xf]
                  %1203 = vst [vmem:[%s1201] sm:$0xf] %v1202
                  %v1204 = vld [vmem:[%s1200 + $0x4] sm:$0xf]
                  %1205 = vst [vmem:[%s1201 + $0x8] sm:$0xf] %v1204
                  %v1206 = vld [vmem:[%s1200 + $0x8] sm:$0xf]
                  %1207 = vst [vmem:[%s1201 + $0x10] sm:$0xf] %v1206
                  %v1208 = vld [vmem:[%s1200 + $0xc] sm:$0xf]
                  %1209 = vst [vmem:[%s1201 + $0x18] sm:$0xf] %v1208
                $region132: #{sw_mixffn_block_forward.5} parent=119 // loop_footer
                  %s1199 = sadd.s32 1, %s1195
                $region133: #{sw_mixffn_block_forward.5} parent=119 // loop_footer_branch
                  %1194 = sbr.rel target = $region129
                $region134: #{sw_mixffn_block_forward.5} parent=119 // loop_exit
                  _
              $region120: #{sw_mixffn_block_forward.5} parent=104 // pred_fallthru
                _
            $region105: #{sw_mixffn_block_forward.5} parent=100 // pred_fallthru
              _
            // Predicated region
            $region106: #{sw_mixffn_block_forward.5} parent=100 // pred_check
              _
            $region107: #{sw_mixffn_block_forward.5} parent=100 // pred_check_branch
              %1165 = sbr.rel (0) target = $region109
            $region108: #{sw_mixffn_block_forward.5} parent=100 // pred_region
              loop: start=0, step=1, limit=1
              $region110: #{sw_mixffn_block_forward.5} parent=108 // loop_pre_header
                _
              $region111: #{sw_mixffn_block_forward.5} parent=108 // loop_header
                %s1168 = sphi 0, %s1172
                %p1169 = scmp.ge.s32.totalorder %s1168, 1
                %s1173 = sphi %s1150, %s1150
                %s1174 = sphi %s1159, %s1159
              $region112: #{sw_mixffn_block_forward.5} parent=108 // loop_header_branch
                %1171 = sbr.rel (%p1169) target = $region116
              $region113: #{sw_mixffn_block_forward.5} parent=108 // loop_body
                %v1175 = vld [vmem:[%s1173] sm:$0xf]
                %1176 = vst [vmem:[%s1174] sm:$0xf] %v1175
                %v1177 = vld [vmem:[%s1173 + $0x4] sm:$0xf]
                %1178 = vst [vmem:[%s1174 + $0x8] sm:$0xf] %v1177
                %v1179 = vld [vmem:[%s1173 + $0x8] sm:$0xf]
                %1180 = vst [vmem:[%s1174 + $0x10] sm:$0xf] %v1179
                %v1181 = vld [vmem:[%s1173 + $0xc] sm:$0xf]
                %1182 = vst [vmem:[%s1174 + $0x18] sm:$0xf] %v1181
              $region114: #{sw_mixffn_block_forward.5} parent=108 // loop_footer
                %s1172 = sadd.s32 1, %s1168
              $region115: #{sw_mixffn_block_forward.5} parent=108 // loop_footer_branch
                %1167 = sbr.rel target = $region111
              $region116: #{sw_mixffn_block_forward.5} parent=108 // loop_exit
                _
            $region109: #{sw_mixffn_block_forward.5} parent=100 // pred_fallthru
              _
          $region101: #{sw_mixffn_block_forward.5} parent=96 // pred_fallthru
            _
          %1210 = vnop
        $region97: #{sw_mixffn_block_forward.5} parent=88 // pred_fallthru
          _
      $region89: #{sw_mixffn_block_forward.5} parent=5 // pred_fallthru
        _
      %p1211 = scmp.le.s32.totalorder 2, %s14
      // Predicated region
      $region135: #{sw_mixffn_block_forward.5} parent=5 // pred_check
        %p1212 = pneg %p1211
      $region136: #{sw_mixffn_block_forward.5} parent=5 // pred_check_branch
        %1214 = sbr.rel (%p1212) target = $region138
      $region137: #{sw_mixffn_block_forward.5} parent=5 // pred_region
        %s1215 = ssub.s32 %s14, 2
        // Predicated region
        $region139: #{sw_mixffn_block_forward.5} parent=137 // pred_check
          %p1216 = pneg %p250
        $region140: #{sw_mixffn_block_forward.5} parent=137 // pred_check_branch
          %1218 = sbr.rel (%p1216) target = $region142
        $region141: #{sw_mixffn_block_forward.5} parent=137 // pred_region
          %s1219 = sand.u32 %s235, 1
          %s1220 = sand.u32 %s235, 1
          %s1221 = smul.addr %s1220, 16
          %s1222 = scalar_lea.vmem [#allocation4], %s1221
        $region142: #{sw_mixffn_block_forward.5} parent=137 // pred_fallthru
          _
      $region138: #{sw_mixffn_block_forward.5} parent=5 // pred_fallthru
        _
    $region6: #{sw_mixffn_block_forward.5} parent=1 // loop_footer
      %s18 = sadd.s32 1, %s14
    $region7: #{sw_mixffn_block_forward.5} parent=1 // loop_footer_branch
      %13 = sbr.rel target = $region3
    $region8: #{sw_mixffn_block_forward.5} parent=1 // loop_exit
      _

// kernel: sw_mixffn_block_forward.8
$region0: #{sw_mixffn_block_forward.8}
  #allocation0 [shape = 'u32[]', space=smem, size = 0x4, offset = 0x4, fixed_abs, tag = 'smem constant byte address 0x4 - core index']
  #allocation1 [shape = 'u32[144,128]{1,0:T(1,128)}', space=vmem, size = 0x12000, scoped, tag = 'internal scratch']
  #allocation2 [shape = 'f32[10,10,64]{2,1,0:T(8,128)}', space=vmem, size = 0x14000, scoped, tag = 'scratch operand']
  %s0 = inlined_call_operand.vmem [shape: f32[2,8,8,64], index: 0, kind: input, shape index: {}]
  %s1 = inlined_call_operand.vmem [shape: f32[3,3,64], index: 1, kind: input, shape index: {}]
  %s2 = inlined_call_operand.vmem [shape: f32[1,64], index: 2, kind: input, shape index: {}]
  %s3 = inlined_call_operand.vmem [shape: f32[2,8,8,64], index: 3, kind: output, shape index: {}]
  %s4 = sld [smem:[#allocation0]]
  $region45: #{sw_mixffn_block_forward.8} parent=0
    _
  %s6 = ssub.s32 1, %s4
  %s7 = scalar_select 0, %s6, %s4
  loop: start=0, step=1, limit=4
  $region2: #{sw_mixffn_block_forward.8} parent=0 // loop_pre_header
    _
  $region3: #{sw_mixffn_block_forward.8} parent=0 // loop_header
    %s9 = sphi 0, %s13
    %p10 = scmp.ge.s32.totalorder %s9, 4
    %s19 = sphi 0, %s21
    %s22 = sphi 0, %s19
    %s23 = sphi 0, %s22
    %s39 = sphi 0, %s23
    %s43 = sphi 0, %s43
    %s45 = sphi 0, %s43
    %s46 = sphi 0, %s45
    %s60 = sphi 0, %s46
    %s64 = sphi 0, %s64
    %s66 = sphi 0, %s64
    %s67 = sphi 0, %s66
    %s81 = sphi 0, %s67
    %s87 = sphi 0, %s89
    %s90 = sphi 0, %s87
    %s91 = sphi 0, %s90
    %s107 = sphi 0, %s91
  $region4: #{sw_mixffn_block_forward.8} parent=0 // loop_header_branch
    %12 = sbr.rel (%p10) target = $region8
  $region5: #{sw_mixffn_block_forward.8} parent=0 // loop_body
    %s14 = ssub.s32 %s9, 1
    %s15 = ssub.s32 %s9, 2
    %s16 = sadd.s32 %s9, 1
    %s17 = ssub.s32 %s9, %s16
    %p18 = scmp.eq.s32.totalorder %s17, 0
    %s20 = sadd.s32 %s19, 1
    %s21 = scalar_select %p18, %s19, %s20
    %p24 = pneg %p18
    %p25 = scmp.eq.s32.totalorder %s9, 1
    %p26 = por %p24, %p25
    %p27 = scmp.ne.s32.totalorder %s19, %s22
    %p28 = scmp.eq.s32.totalorder %s9, 0
    %p29 = por %p27, %p28
    %p30 = scmp.ne.s32.totalorder %s19, %s22
    %p31 = scmp.eq.s32.totalorder %s14, 1
    %p32 = por %p30, %p31
    %p33 = scmp.ne.s32.totalorder %s22, %s23
    %p34 = scmp.eq.s32.totalorder %s14, 0
    %p35 = por %p33, %p34
    %p36 = scmp.ne.s32.totalorder %s22, %s23
    %p37 = scmp.eq.s32.totalorder %s15, 1
    %p38 = por %p36, %p37
    %p40 = scmp.ne.s32.totalorder %s23, %s39
    %p41 = scmp.eq.s32.totalorder %s15, 0
    %p42 = por %p40, %p41
    %s44 = sadd.s32 %s43, 1
    %p47 = scmp.eq.s32.totalorder %s9, 1
    %p48 = scmp.ne.s32.totalorder %s43, %s45
    %p49 = scmp.eq.s32.totalorder %s9, 0
    %p50 = por %p48, %p49
    %p51 = scmp.ne.s32.totalorder %s43, %s45
    %p52 = scmp.eq.s32.totalorder %s14, 1
    %p53 = por %p51, %p52
    %p54 = scmp.ne.s32.totalorder %s45, %s46
    %p55 = scmp.eq.s32.totalorder %s14, 0
    %p56 = por %p54, %p55
    %p57 = scmp.ne.s32.totalorder %s45, %s46
    %p58 = scmp.eq.s32.totalorder %s15, 1
    %p59 = por %p57, %p58
    %p61 = scmp.ne.s32.totalorder %s46, %s60
    %p62 = scmp.eq.s32.totalorder %s15, 0
    %p63 = por %p61, %p62
    %s65 = sadd.s32 %s64, 1
    %p68 = scmp.eq.s32.totalorder %s9, 1
    %p69 = scmp.ne.s32.totalorder %s64, %s66
    %p70 = scmp.eq.s32.totalorder %s9, 0
    %p71 = por %p69, %p70
    %p72 = scmp.ne.s32.totalorder %s64, %s66
    %p73 = scmp.eq.s32.totalorder %s14, 1
    %p74 = por %p72, %p73
    %p75 = scmp.ne.s32.totalorder %s66, %s67
    %p76 = scmp.eq.s32.totalorder %s14, 0
    %p77 = por %p75, %p76
    %p78 = scmp.ne.s32.totalorder %s66, %s67
    %p79 = scmp.eq.s32.totalorder %s15, 1
    %p80 = por %p78, %p79
    %p82 = scmp.ne.s32.totalorder %s67, %s81
    %p83 = scmp.eq.s32.totalorder %s15, 0
    %p84 = por %p82, %p83
    %s85 = ssub.s32 %s9, %s16
    %p86 = scmp.eq.s32.totalorder %s85, 0
    %s88 = sadd.s32 %s87, 1
    %s89 = scalar_select %p86, %s87, %s88
    %p92 = pneg %p86
    %p93 = scmp.eq.s32.totalorder %s9, 1
    %p94 = por %p92, %p93
    %p95 = scmp.ne.s32.totalorder %s87, %s90
    %p96 = scmp.eq.s32.totalorder %s9, 0
    %p97 = por %p95, %p96
    %p98 = scmp.ne.s32.totalorder %s87, %s90
    %p99 = scmp.eq.s32.totalorder %s14, 1
    %p100 = por %p98, %p99
    %p101 = scmp.ne.s32.totalorder %s90, %s91
    %p102 = scmp.eq.s32.totalorder %s14, 0
    %p103 = por %p101, %p102
    %p104 = scmp.ne.s32.totalorder %s90, %s91
    %p105 = scmp.eq.s32.totalorder %s15, 1
    %p106 = por %p104, %p105
    %p108 = scmp.ne.s32.totalorder %s91, %s107
    %p109 = scmp.eq.s32.totalorder %s15, 0
    %p110 = por %p108, %p109
    %p111 = scmp.le.s32.totalorder 1, %s9
    %p112 = scmp.lt.s32.totalorder %s9, 3
    %p113 = pnand %p111, %p112
    %p114 = pneg %p113
    // Predicated region
    $region9: #{sw_mixffn_block_forward.8} parent=5 // pred_check
      _
    $region10: #{sw_mixffn_block_forward.8} parent=5 // pred_check_branch
      %116 = sbr.rel (%p113) target = $region12
    $region11: #{sw_mixffn_block_forward.8} parent=5 // pred_region
      %s117 = ssub.s32 %s9, 1
      // Predicated region
      $region13: #{sw_mixffn_block_forward.8} parent=11 // pred_check
        %p118 = pneg %p56
      $region14: #{sw_mixffn_block_forward.8} parent=11 // pred_check_branch
        %120 = sbr.rel (%p118) target = $region16
      $region15: #{sw_mixffn_block_forward.8} parent=11 // pred_region
        _
      $region16: #{sw_mixffn_block_forward.8} parent=11 // pred_fallthru
        _
      // Predicated region
      $region17: #{sw_mixffn_block_forward.8} parent=11 // pred_check
        %p121 = pneg %p77
      $region18: #{sw_mixffn_block_forward.8} parent=11 // pred_check_branch
        %123 = sbr.rel (%p121) target = $region20
      $region19: #{sw_mixffn_block_forward.8} parent=11 // pred_region
        _
      $region20: #{sw_mixffn_block_forward.8} parent=11 // pred_fallthru
        _
    $region12: #{sw_mixffn_block_forward.8} parent=5 // pred_fallthru
      _
    %p124 = scmp.lt.s32.totalorder %s9, 2
    // Predicated region
    $region21: #{sw_mixffn_block_forward.8} parent=5 // pred_check
      %p125 = pneg %p124
    $region22: #{sw_mixffn_block_forward.8} parent=5 // pred_check_branch
      %127 = sbr.rel (%p125) target = $region24
    $region23: #{sw_mixffn_block_forward.8} parent=5 // pred_region
      // Predicated region
      $region25: #{sw_mixffn_block_forward.8} parent=23 // pred_check
        %p128 = pneg %p29
      $region26: #{sw_mixffn_block_forward.8} parent=23 // pred_check_branch
        %130 = sbr.rel (%p128) target = $region28
      $region27: #{sw_mixffn_block_forward.8} parent=23 // pred_region
        %p131 = scmp.lt.s32.totalorder %s9, 1
        %s132 = scalar_select %p131, %s9, 1
        %s133 = smul.addr %s132, 8
        %s134 = smul.addr %s133, 8
        %s135 = scalar_lea.vmem %s0, %s134
      $region28: #{sw_mixffn_block_forward.8} parent=23 // pred_fallthru
        _
    $region24: #{sw_mixffn_block_forward.8} parent=5 // pred_fallthru
      _
    %p136 = scmp.le.s32.totalorder 1, %s9
    %p137 = scmp.lt.s32.totalorder %s9, 3
    %p138 = pnand %p136, %p137
    %p139 = pneg %p138
    // Predicated region
    $region29: #{sw_mixffn_block_forward.8} parent=5 // pred_check
      _
    $region30: #{sw_mixffn_block_forward.8} parent=5 // pred_check_branch
      %141 = sbr.rel (%p138) target = $region32
    $region31: #{sw_mixffn_block_forward.8} parent=5 // pred_region
      %s142 = ssub.s32 %s9, 1
      %p143 = scmp.lt.s32.totalorder %s14, 1
      %s144 = scalar_select %p143, %s14, 1
      %s145 = smul.addr %s144, 8
      %s146 = smul.addr %s145, 8
      %s147 = scalar_lea.vmem %s0, %s146
      %p148 = pneg %p35
      %p149 = pneg %p32
      %p150 = pneg %p56
      %p151 = pneg %p53
      %p152 = pneg %p77
      %p153 = pneg %p74
      %p154 = pneg %p103
      %p155 = pneg %p100
      %p156 = scmp.lt.s32.totalorder %s14, 1
      %s157 = scalar_select %p156, %s14, 1
      %s158 = smul.addr %s157, 8
      %s159 = smul.addr %s158, 8
      %s160 = scalar_lea.vmem %s3, %s159
      %p161 = scmp.lt.s32.totalorder %s14, 1
      %s162 = scalar_select %p161, %s14, 1
      %s163 = smul.addr %s162, 8
      %s164 = smul.addr %s163, 8
      %s165 = scalar_lea.vmem %s0, %s164
      %p166 = scmp.lt.s32.totalorder %s14, 1
      %s167 = scalar_select %p166, %s14, 1
      %s168 = smul.addr %s167, 8
      %s169 = smul.addr %s168, 8
      %s170 = scalar_lea.vmem %s3, %s169
      %vm171 = vcmask 523264
      %172 = vst.msk [vmem:[#allocation2] sm:$0xff] %vm171, 0.0
      %vm173 = vcmask 517120
      %174 = vst.msk [vmem:[#allocation2 + $0x8] sm:$0x3] %vm173, 0.0
      %175 = vst.msk [vmem:[#allocation2 + $0x10] sm:$0xff] %vm171, 0.0
      %176 = vst.msk [vmem:[#allocation2 + $0x18] sm:$0x3] %vm173, 0.0
      %177 = vst.msk [vmem:[#allocation2 + $0x20] sm:$0xff] %vm171, 0.0
      %178 = vst.msk [vmem:[#allocation2 + $0x28] sm:$0x3] %vm173, 0.0
      %179 = vst.msk [vmem:[#allocation2 + $0x30] sm:$0xff] %vm171, 0.0
      %180 = vst.msk [vmem:[#allocation2 + $0x38] sm:$0x3] %vm173, 0.0
      %181 = vst.msk [vmem:[#allocation2 + $0x40] sm:$0xff] %vm171, 0.0
      %182 = vst.msk [vmem:[#allocation2 + $0x48] sm:$0x3] %vm173, 0.0
      %183 = vst.msk [vmem:[#allocation2 + $0x50] sm:$0xff] %vm171, 0.0
      %184 = vst.msk [vmem:[#allocation2 + $0x58] sm:$0x3] %vm173, 0.0
      %185 = vst.msk [vmem:[#allocation2 + $0x60] sm:$0xff] %vm171, 0.0
      %186 = vst.msk [vmem:[#allocation2 + $0x68] sm:$0x3] %vm173, 0.0
      %187 = vst.msk [vmem:[#allocation2 + $0x70] sm:$0xff] %vm171, 0.0
      %188 = vst.msk [vmem:[#allocation2 + $0x78] sm:$0x3] %vm173, 0.0
      %189 = vst.msk [vmem:[#allocation2 + $0x80] sm:$0xff] %vm171, 0.0
      %190 = vst.msk [vmem:[#allocation2 + $0x88] sm:$0x3] %vm173, 0.0
      %191 = vst.msk [vmem:[#allocation2 + $0x90] sm:$0xff] %vm171, 0.0
      %192 = vst.msk [vmem:[#allocation2 + $0x98] sm:$0x3] %vm173, 0.0
      %v193 = vld [vmem:[%s165] sm:$0xff]
      %v194 = vld [vmem:[%s165 + $0x8] sm:$0xff]
      %v195 = vld [vmem:[%s165 + $0x10] sm:$0xff]
      %v196 = vld [vmem:[%s165 + $0x18] sm:$0xff]
      %v197 = vld [vmem:[%s165 + $0x20] sm:$0xff]
      %v198 = vld [vmem:[%s165 + $0x28] sm:$0xff]
      %v199 = vld [vmem:[%s165 + $0x30] sm:$0xff]
      %v200 = vld [vmem:[%s165 + $0x38] sm:$0xff]
      %s201 = scalar_lea.vmem [#allocation2], 16
      %202 = vst.msk [vmem:[%s201 + $0x1] sm:$0xff] %vm171, %v193
      %203 = vst.msk [vmem:[%s201 + $0x11] sm:$0xff] %vm171, %v194
      %204 = vst.msk [vmem:[%s201 + $0x21] sm:$0xff] %vm171, %v195
      %205 = vst.msk [vmem:[%s201 + $0x31] sm:$0xff] %vm171, %v196
      %206 = vst.msk [vmem:[%s201 + $0x41] sm:$0xff] %vm171, %v197
      %207 = vst.msk [vmem:[%s201 + $0x51] sm:$0xff] %vm171, %v198
      %208 = vst.msk [vmem:[%s201 + $0x61] sm:$0xff] %vm171, %v199
      %209 = vst.msk [vmem:[%s201 + $0x71] sm:$0xff] %vm171, %v200
      %v210 = vld [vmem:[%s1] sm:$0x7]
      %v211 = vld [vmem:[%s1 + $0x4] sm:$0x7]
      %v212 = vld [vmem:[%s1 + $0x8] sm:$0x7]
      %v213 = vld [vmem:[%s165] sm:$0xff]
      %v214 = vld [vmem:[%s165 + $0x8] sm:$0xff]
      %v215 = vld [vmem:[%s165 + $0x10] sm:$0xff]
      %v216 = vld [vmem:[%s165 + $0x18] sm:$0xff]
      %v217 = vld [vmem:[%s165 + $0x20] sm:$0xff]
      %v218 = vld [vmem:[%s165 + $0x28] sm:$0xff]
      %v219 = vld [vmem:[%s165 + $0x30] sm:$0xff]
      %v220 = vld [vmem:[%s165 + $0x38] sm:$0xff]
      %v221 = vld [vmem:[#allocation2] sm:$0xff]
      %v222 = vld [vmem:[#allocation2 + $0x10] sm:$0xff]
      %v223 = vld [vmem:[#allocation2 + $0x20] sm:$0xff]
      %v224 = vld [vmem:[#allocation2 + $0x30] sm:$0xff]
      %v225 = vld [vmem:[#allocation2 + $0x40] sm:$0xff]
      %v226 = vld [vmem:[#allocation2 + $0x50] sm:$0xff]
      %v227 = vld [vmem:[#allocation2 + $0x60] sm:$0xff]
      %v228 = vld [vmem:[#allocation2 + $0x70] sm:$0xff]
      %v229 = vlaneseq
      %v230 = vshrl.u32 %v229, 7
      %v231 = vsub.s32 0, %v230
      %v232 = vrot.slane %v210, %v231
      %v233 = vmul.f32 %v221, %v232
      %v234 = vmul.f32 %v222, %v232
      %v235 = vmul.f32 %v223, %v232
      %v236 = vmul.f32 %v224, %v232
      %v237 = vmul.f32 %v225, %v232
      %v238 = vmul.f32 %v226, %v232
      %v239 = vmul.f32 %v227, %v232
      %v240 = vmul.f32 %v228, %v232
      %v241 = vadd.f32 %v213, %v233
      %v242 = vadd.f32 %v214, %v234
      %v243 = vadd.f32 %v215, %v235
      %v244 = vadd.f32 %v216, %v236
      %v245 = vadd.f32 %v217, %v237
      %v246 = vadd.f32 %v218, %v238
      %v247 = vadd.f32 %v219, %v239
      %v248 = vadd.f32 %v220, %v240
      %v249 = vld [vmem:[#allocation2 + $0x1] sm:$0xff]
      %v250 = vld [vmem:[#allocation2 + $0x11] sm:$0xff]
      %v251 = vld [vmem:[#allocation2 + $0x21] sm:$0xff]
      %v252 = vld [vmem:[#allocation2 + $0x31] sm:$0xff]
      %v253 = vld [vmem:[#allocation2 + $0x41] sm:$0xff]
      %v254 = vld [vmem:[#allocation2 + $0x51] sm:$0xff]
      %v255 = vld [vmem:[#allocation2 + $0x61] sm:$0xff]
      %v256 = vld [vmem:[#allocation2 + $0x71] sm:$0xff]
      %v257 = vlaneseq
      %v258 = vshrl.u32 %v257, 7
      %v259 = vsub.s32 1, %v258
      %v260 = vrot.slane %v210, %v259
      %v261 = vmul.f32 %v249, %v260
      %v262 = vmul.f32 %v250, %v260
      %v263 = vmul.f32 %v251, %v260
      %v264 = vmul.f32 %v252, %v260
      %v265 = vmul.f32 %v253, %v260
      %v266 = vmul.f32 %v254, %v260
      %v267 = vmul.f32 %v255, %v260
      %v268 = vmul.f32 %v256, %v260
      %v269 = vadd.f32 %v241, %v261
      %v270 = vadd.f32 %v242, %v262
      %v271 = vadd.f32 %v243, %v263
      %v272 = vadd.f32 %v244, %v264
      %v273 = vadd.f32 %v245, %v265
      %v274 = vadd.f32 %v246, %v266
      %v275 = vadd.f32 %v247, %v267
      %v276 = vadd.f32 %v248, %v268
      %v277 = vld [vmem:[#allocation2 + $0x2] sm:$0xff]
      %v278 = vld [vmem:[#allocation2 + $0x12] sm:$0xff]
      %v279 = vld [vmem:[#allocation2 + $0x22] sm:$0xff]
      %v280 = vld [vmem:[#allocation2 + $0x32] sm:$0xff]
      %v281 = vld [vmem:[#allocation2 + $0x42] sm:$0xff]
      %v282 = vld [vmem:[#allocation2 + $0x52] sm:$0xff]
      %v283 = vld [vmem:[#allocation2 + $0x62] sm:$0xff]
      %v284 = vld [vmem:[#allocation2 + $0x72] sm:$0xff]
      %v285 = vlaneseq
      %v286 = vshrl.u32 %v285, 7
      %v287 = vsub.s32 2, %v286
      %v288 = vrot.slane %v210, %v287
      %v289 = vmul.f32 %v277, %v288
      %v290 = vmul.f32 %v278, %v288
      %v291 = vmul.f32 %v279, %v288
      %v292 = vmul.f32 %v280, %v288
      %v293 = vmul.f32 %v281, %v288
      %v294 = vmul.f32 %v282, %v288
      %v295 = vmul.f32 %v283, %v288
      %v296 = vmul.f32 %v284, %v288
      %v297 = vadd.f32 %v269, %v289
      %v298 = vadd.f32 %v270, %v290
      %v299 = vadd.f32 %v271, %v291
      %v300 = vadd.f32 %v272, %v292
      %v301 = vadd.f32 %v273, %v293
      %v302 = vadd.f32 %v274, %v294
      %v303 = vadd.f32 %v275, %v295
      %v304 = vadd.f32 %v276, %v296
      %v305 = vld [vmem:[%s201] sm:$0xff]
      %v306 = vld [vmem:[%s201 + $0x10] sm:$0xff]
      %v307 = vld [vmem:[%s201 + $0x20] sm:$0xff]
      %v308 = vld [vmem:[%s201 + $0x30] sm:$0xff]
      %v309 = vld [vmem:[%s201 + $0x40] sm:$0xff]
      %v310 = vld [vmem:[%s201 + $0x50] sm:$0xff]
      %v311 = vld [vmem:[%s201 + $0x60] sm:$0xff]
      %v312 = vld [vmem:[%s201 + $0x70] sm:$0xff]
      %v313 = vlaneseq
      %v314 = vshrl.u32 %v313, 7
      %v315 = vsub.s32 0, %v314
      %v316 = vrot.slane %v211, %v315
      %v317 = vmul.f32 %v305, %v316
      %v318 = vmul.f32 %v306, %v316
      %v319 = vmul.f32 %v307, %v316
      %v320 = vmul.f32 %v308, %v316
      %v321 = vmul.f32 %v309, %v316
      %v322 = vmul.f32 %v310, %v316
      %v323 = vmul.f32 %v311, %v316
      %v324 = vmul.f32 %v312, %v316
      %v325 = vadd.f32 %v297, %v317
      %v326 = vadd.f32 %v298, %v318
      %v327 = vadd.f32 %v299, %v319
      %v328 = vadd.f32 %v300, %v320
      %v329 = vadd.f32 %v301, %v321
      %v330 = vadd.f32 %v302, %v322
      %v331 = vadd.f32 %v303, %v323
      %v332 = vadd.f32 %v304, %v324
      %v333 = vld [vmem:[%s201 + $0x1] sm:$0xff]
      %v334 = vld [vmem:[%s201 + $0x11] sm:$0xff]
      %v335 = vld [vmem:[%s201 + $0x21] sm:$0xff]
      %v336 = vld [vmem:[%s201 + $0x31] sm:$0xff]
      %v337 = vld [vmem:[%s201 + $0x41] sm:$0xff]
      %v338 = vld [vmem:[%s201 + $0x51] sm:$0xff]
      %v339 = vld [vmem:[%s201 + $0x61] sm:$0xff]
      %v340 = vld [vmem:[%s201 + $0x71] sm:$0xff]
      %v341 = vlaneseq
      %v342 = vshrl.u32 %v341, 7
      %v343 = vsub.s32 1, %v342
      %v344 = vrot.slane %v211, %v343
      %v345 = vmul.f32 %v333, %v344
      %v346 = vmul.f32 %v334, %v344
      %v347 = vmul.f32 %v335, %v344
      %v348 = vmul.f32 %v336, %v344
      %v349 = vmul.f32 %v337, %v344
      %v350 = vmul.f32 %v338, %v344
      %v351 = vmul.f32 %v339, %v344
      %v352 = vmul.f32 %v340, %v344
      %v353 = vadd.f32 %v325, %v345
      %v354 = vadd.f32 %v326, %v346
      %v355 = vadd.f32 %v327, %v347
      %v356 = vadd.f32 %v328, %v348
      %v357 = vadd.f32 %v329, %v349
      %v358 = vadd.f32 %v330, %v350
      %v359 = vadd.f32 %v331, %v351
      %v360 = vadd.f32 %v332, %v352
      %v361 = vld [vmem:[%s201 + $0x2] sm:$0xff]
      %v362 = vld [vmem:[%s201 + $0x12] sm:$0xff]
      %v363 = vld [vmem:[%s201 + $0x22] sm:$0xff]
      %v364 = vld [vmem:[%s201 + $0x32] sm:$0xff]
      %v365 = vld [vmem:[%s201 + $0x42] sm:$0xff]
      %v366 = vld [vmem:[%s201 + $0x52] sm:$0xff]
      %v367 = vld [vmem:[%s201 + $0x62] sm:$0xff]
      %v368 = vld [vmem:[%s201 + $0x72] sm:$0xff]
      %v369 = vlaneseq
      %v370 = vshrl.u32 %v369, 7
      %v371 = vsub.s32 2, %v370
      %v372 = vrot.slane %v211, %v371
      %v373 = vmul.f32 %v361, %v372
      %v374 = vmul.f32 %v362, %v372
      %v375 = vmul.f32 %v363, %v372
      %v376 = vmul.f32 %v364, %v372
      %v377 = vmul.f32 %v365, %v372
      %v378 = vmul.f32 %v366, %v372
      %v379 = vmul.f32 %v367, %v372
      %v380 = vmul.f32 %v368, %v372
      %v381 = vadd.f32 %v353, %v373
      %v382 = vadd.f32 %v354, %v374
      %v383 = vadd.f32 %v355, %v375
      %v384 = vadd.f32 %v356, %v376
      %v385 = vadd.f32 %v357, %v377
      %v386 = vadd.f32 %v358, %v378
      %v387 = vadd.f32 %v359, %v379
      %v388 = vadd.f32 %v360, %v380
      %s389 = scalar_lea.vmem [#allocation2], 32
      %v390 = vld [vmem:[%s389] sm:$0xff]
      %v391 = vld [vmem:[%s389 + $0x10] sm:$0xff]
      %v392 = vld [vmem:[%s389 + $0x20] sm:$0xff]
      %v393 = vld [vmem:[%s389 + $0x30] sm:$0xff]
      %v394 = vld [vmem:[%s389 + $0x40] sm:$0xff]
      %v395 = vld [vmem:[%s389 + $0x50] sm:$0xff]
      %v396 = vld [vmem:[%s389 + $0x60] sm:$0xff]
      %v397 = vld [vmem:[%s389 + $0x70] sm:$0xff]
      %v398 = vlaneseq
      %v399 = vshrl.u32 %v398, 7
      %v400 = vsub.s32 0, %v399
      %v401 = vrot.slane %v212, %v400
      %v402 = vmul.f32 %v390, %v401
      %v403 = vmul.f32 %v391, %v401
      %v404 = vmul.f32 %v392, %v401
      %v405 = vmul.f32 %v393, %v401
      %v406 = vmul.f32 %v394, %v401
      %v407 = vmul.f32 %v395, %v401
      %v408 = vmul.f32 %v396, %v401
      %v409 = vmul.f32 %v397, %v401
      %v410 = vadd.f32 %v381, %v402
      %v411 = vadd.f32 %v382, %v403
      %v412 = vadd.f32 %v383, %v404
      %v413 = vadd.f32 %v384, %v405
      %v414 = vadd.f32 %v385, %v406
      %v415 = vadd.f32 %v386, %v407
      %v416 = vadd.f32 %v387, %v408
      %v417 = vadd.f32 %v388, %v409
      %v418 = vld [vmem:[%s389 + $0x1] sm:$0xff]
      %v419 = vld [vmem:[%s389 + $0x11] sm:$0xff]
      %v420 = vld [vmem:[%s389 + $0x21] sm:$0xff]
      %v421 = vld [vmem:[%s389 + $0x31] sm:$0xff]
      %v422 = vld [vmem:[%s389 + $0x41] sm:$0xff]
      %v423 = vld [vmem:[%s389 + $0x51] sm:$0xff]
      %v424 = vld [vmem:[%s389 + $0x61] sm:$0xff]
      %v425 = vld [vmem:[%s389 + $0x71] sm:$0xff]
      %v426 = vlaneseq
      %v427 = vshrl.u32 %v426, 7
      %v428 = vsub.s32 1, %v427
      %v429 = vrot.slane %v212, %v428
      %v430 = vmul.f32 %v418, %v429
      %v431 = vmul.f32 %v419, %v429
      %v432 = vmul.f32 %v420, %v429
      %v433 = vmul.f32 %v421, %v429
      %v434 = vmul.f32 %v422, %v429
      %v435 = vmul.f32 %v423, %v429
      %v436 = vmul.f32 %v424, %v429
      %v437 = vmul.f32 %v425, %v429
      %v438 = vadd.f32 %v410, %v430
      %v439 = vadd.f32 %v411, %v431
      %v440 = vadd.f32 %v412, %v432
      %v441 = vadd.f32 %v413, %v433
      %v442 = vadd.f32 %v414, %v434
      %v443 = vadd.f32 %v415, %v435
      %v444 = vadd.f32 %v416, %v436
      %v445 = vadd.f32 %v417, %v437
      %v446 = vld [vmem:[%s389 + $0x2] sm:$0xff]
      %v447 = vld [vmem:[%s389 + $0x12] sm:$0xff]
      %v448 = vld [vmem:[%s389 + $0x22] sm:$0xff]
      %v449 = vld [vmem:[%s389 + $0x32] sm:$0xff]
      %v450 = vld [vmem:[%s389 + $0x42] sm:$0xff]
      %v451 = vld [vmem:[%s389 + $0x52] sm:$0xff]
      %v452 = vld [vmem:[%s389 + $0x62] sm:$0xff]
      %v453 = vld [vmem:[%s389 + $0x72] sm:$0xff]
      %v454 = vlaneseq
      %v455 = vshrl.u32 %v454, 7
      %v456 = vsub.s32 2, %v455
      %v457 = vrot.slane %v212, %v456
      %v458 = vmul.f32 %v446, %v457
      %v459 = vmul.f32 %v447, %v457
      %v460 = vmul.f32 %v448, %v457
      %v461 = vmul.f32 %v449, %v457
      %v462 = vmul.f32 %v450, %v457
      %v463 = vmul.f32 %v451, %v457
      %v464 = vmul.f32 %v452, %v457
      %v465 = vmul.f32 %v453, %v457
      %v466 = vadd.f32 %v438, %v458
      %v467 = vadd.f32 %v439, %v459
      %v468 = vadd.f32 %v440, %v460
      %v469 = vadd.f32 %v441, %v461
      %v470 = vadd.f32 %v442, %v462
      %v471 = vadd.f32 %v443, %v463
      %v472 = vadd.f32 %v444, %v464
      %v473 = vadd.f32 %v445, %v465
      %v474 = vld [vmem:[%s2] sm:$0x1]
      %v476 = vlaneseq
      %v477 = vshrl.u32 %v476, 7
      %v478 = vsub.s32 0, %v477
      %v479 = vrot.slane %v474, %v478
      %v481 = vadd.f32 %v466, %v479
      %v482 = vadd.f32 %v467, %v479
      %v483 = vadd.f32 %v468, %v479
      %v484 = vadd.f32 %v469, %v479
      %v485 = vadd.f32 %v470, %v479
      %v486 = vadd.f32 %v471, %v479
      %v487 = vadd.f32 %v472, %v479
      %v488 = vadd.f32 %v473, %v479
      %489 = vst.msk [vmem:[%s170] sm:$0xff] %vm171, %v481
      %490 = vst.msk [vmem:[%s170 + $0x8] sm:$0xff] %vm171, %v482
      %491 = vst.msk [vmem:[%s170 + $0x10] sm:$0xff] %vm171, %v483
      %492 = vst.msk [vmem:[%s170 + $0x18] sm:$0xff] %vm171, %v484
      %493 = vst.msk [vmem:[%s170 + $0x20] sm:$0xff] %vm171, %v485
      %494 = vst.msk [vmem:[%s170 + $0x28] sm:$0xff] %vm171, %v486
      %495 = vst.msk [vmem:[%s170 + $0x30] sm:$0xff] %vm171, %v487
      %496 = vst.msk [vmem:[%s170 + $0x38] sm:$0xff] %vm171, %v488
      %p497 = scmp.lt.s32.totalorder %s14, 1
      %s498 = scalar_select %p497, %s14, 1
      %s499 = smul.addr %s498, 8
      %s500 = smul.addr %s499, 8
      %s501 = scalar_lea.vmem %s3, %s500
      // Predicated region
      $region33: #{sw_mixffn_block_forward.8} parent=31 // pred_check
        %p502 = pneg %p100
      $region34: #{sw_mixffn_block_forward.8} parent=31 // pred_check_branch
        %504 = sbr.rel (%p502) target = $region36
      $region35: #{sw_mixffn_block_forward.8} parent=31 // pred_region
        _
      $region36: #{sw_mixffn_block_forward.8} parent=31 // pred_fallthru
        _
    $region32: #{sw_mixffn_block_forward.8} parent=5 // pred_fallthru
      _
    %p505 = scmp.le.s32.totalorder 2, %s9
    // Predicated region
    $region37: #{sw_mixffn_block_forward.8} parent=5 // pred_check
      %p506 = pneg %p505
    $region38: #{sw_mixffn_block_forward.8} parent=5 // pred_check_branch
      %508 = sbr.rel (%p506) target = $region40
    $region39: #{sw_mixffn_block_forward.8} parent=5 // pred_region
      %s509 = ssub.s32 %s9, 2
      // Predicated region
      $region41: #{sw_mixffn_block_forward.8} parent=39 // pred_check
        %p510 = pneg %p106
      $region42: #{sw_mixffn_block_forward.8} parent=39 // pred_check_branch
        %512 = sbr.rel (%p510) target = $region44
      $region43: #{sw_mixffn_block_forward.8} parent=39 // pred_region
        %p513 = scmp.lt.s32.totalorder %s15, 1
        %s514 = scalar_select %p513, %s15, 1
        %s515 = smul.addr %s514, 8
        %s516 = smul.addr %s515, 8
        %s517 = scalar_lea.vmem %s3, %s516
      $region44: #{sw_mixffn_block_forward.8} parent=39 // pred_fallthru
        _
    $region40: #{sw_mixffn_block_forward.8} parent=5 // pred_fallthru
      _
  $region6: #{sw_mixffn_block_forward.8} parent=0 // loop_footer
    %s13 = sadd.s32 1, %s9
  $region7: #{sw_mixffn_block_forward.8} parent=0 // loop_footer_branch
    %8 = sbr.rel target = $region3
  $region8: #{sw_mixffn_block_forward.8} parent=0 // loop_exit
    _

// kernel: sw_mixffn_block_forward.9
$region0: #{sw_mixffn_block_forward.9}
  #allocation0 [shape = 'u32[]', space=smem, size = 0x4, offset = 0x4, fixed_abs, tag = 'smem constant byte address 0x4 - core index']
  #allocation1 [shape = 'u32[144,128]{1,0:T(1,128)}', space=vmem, size = 0x12000, scoped, tag = 'internal scratch']
  %s0 = inlined_call_operand.vmem [shape: f32[128,64], index: 0, kind: input, shape index: {}]
  %s1 = inlined_call_operand.vmem [shape: f32[1,64], index: 1, kind: input, shape index: {}]
  %s2 = inlined_call_operand.vmem [shape: f32[1,64], index: 2, kind: input, shape index: {}]
  %s3 = inlined_call_operand.vmem [shape: bf16[64,16], index: 3, kind: input, shape index: {}]
  %s4 = inlined_call_operand.vmem [shape: f32[1,16], index: 4, kind: input, shape index: {}]
  %s5 = inlined_call_operand.vmem [shape: f32[128,16], index: 5, kind: input, shape index: {}]
  %s6 = inlined_call_operand.vmem [shape: f32[128,16], index: 6, kind: output, shape index: {}]
  %s7 = sld [smem:[#allocation0]]
  $region34: #{sw_mixffn_block_forward.9} parent=0
    _
  %s9 = ssub.s32 1, %s7
  %s10 = scalar_select 0, %s9, %s7
  // Predicated region
  $region2: #{sw_mixffn_block_forward.9} parent=0 // pred_check
    _
  $region3: #{sw_mixffn_block_forward.9} parent=0 // pred_check_branch
    %12 = sbr.rel (0) target = $region5
  $region4: #{sw_mixffn_block_forward.9} parent=0 // pred_region
    _
  $region5: #{sw_mixffn_block_forward.9} parent=0 // pred_fallthru
    _
  // Predicated region
  $region6: #{sw_mixffn_block_forward.9} parent=0 // pred_check
    _
  $region7: #{sw_mixffn_block_forward.9} parent=0 // pred_check_branch
    %14 = sbr.rel (0) target = $region9
  $region8: #{sw_mixffn_block_forward.9} parent=0 // pred_region
    _
  $region9: #{sw_mixffn_block_forward.9} parent=0 // pred_fallthru
    _
  // Predicated region
  $region10: #{sw_mixffn_block_forward.9} parent=0 // pred_check
    _
  $region11: #{sw_mixffn_block_forward.9} parent=0 // pred_check_branch
    %16 = sbr.rel (0) target = $region13
  $region12: #{sw_mixffn_block_forward.9} parent=0 // pred_region
    _
  $region13: #{sw_mixffn_block_forward.9} parent=0 // pred_fallthru
    _
  // Predicated region
  $region14: #{sw_mixffn_block_forward.9} parent=0 // pred_check
    _
  $region15: #{sw_mixffn_block_forward.9} parent=0 // pred_check_branch
    %18 = sbr.rel (0) target = $region17
  $region16: #{sw_mixffn_block_forward.9} parent=0 // pred_region
    _
  $region17: #{sw_mixffn_block_forward.9} parent=0 // pred_fallthru
    _
  // Predicated region
  $region18: #{sw_mixffn_block_forward.9} parent=0 // pred_check
    _
  $region19: #{sw_mixffn_block_forward.9} parent=0 // pred_check_branch
    %20 = sbr.rel (0) target = $region21
  $region20: #{sw_mixffn_block_forward.9} parent=0 // pred_region
    _
  $region21: #{sw_mixffn_block_forward.9} parent=0 // pred_fallthru
    _
  // Predicated region
  $region22: #{sw_mixffn_block_forward.9} parent=0 // pred_check
    _
  $region23: #{sw_mixffn_block_forward.9} parent=0 // pred_check_branch
    %22 = sbr.rel (0) target = $region25
  $region24: #{sw_mixffn_block_forward.9} parent=0 // pred_region
    _
  $region25: #{sw_mixffn_block_forward.9} parent=0 // pred_fallthru
    _
  %v24 = vld [vmem:[%s0] sm:$0xff]
  %v25 = vld [vmem:[%s0 + $0x8] sm:$0xff]
  %v26 = vld [vmem:[%s0 + $0x10] sm:$0xff]
  %v27 = vld [vmem:[%s0 + $0x18] sm:$0xff]
  %v28 = vld [vmem:[%s0 + $0x20] sm:$0xff]
  %v29 = vld [vmem:[%s0 + $0x28] sm:$0xff]
  %v30 = vld [vmem:[%s0 + $0x30] sm:$0xff]
  %v31 = vld [vmem:[%s0 + $0x38] sm:$0xff]
  %v32 = vld [vmem:[%s0 + $0x40] sm:$0xff]
  %v33 = vld [vmem:[%s0 + $0x48] sm:$0xff]
  %v34 = vld [vmem:[%s0 + $0x50] sm:$0xff]
  %v35 = vld [vmem:[%s0 + $0x58] sm:$0xff]
  %v36 = vld [vmem:[%s0 + $0x60] sm:$0xff]
  %v37 = vld [vmem:[%s0 + $0x68] sm:$0xff]
  %v38 = vld [vmem:[%s0 + $0x70] sm:$0xff]
  %v39 = vld [vmem:[%s0 + $0x78] sm:$0xff]
  %vm40 = vcmask 523264
  %v41 = vsel %vm40, %v24, 0.0
  %42 = vadd.xlane.f32.xlu0 %v41
  %v43 = vpop.xlane.xlu0 %42
  %v44 = vsel %vm40, %v25, 0.0
  %45 = vadd.xlane.f32.xlu0 %v44
  %v46 = vpop.xlane.xlu0 %45
  %v47 = vsel %vm40, %v26, 0.0
  %48 = vadd.xlane.f32.xlu0 %v47
  %v49 = vpop.xlane.xlu0 %48
  %v50 = vsel %vm40, %v27, 0.0
  %51 = vadd.xlane.f32.xlu0 %v50
  %v52 = vpop.xlane.xlu0 %51
  %v53 = vsel %vm40, %v28, 0.0
  %54 = vadd.xlane.f32.xlu0 %v53
  %v55 = vpop.xlane.xlu0 %54
  %v56 = vsel %vm40, %v29, 0.0
  %57 = vadd.xlane.f32.xlu0 %v56
  %v58 = vpop.xlane.xlu0 %57
  %v59 = vsel %vm40, %v30, 0.0
  %60 = vadd.xlane.f32.xlu0 %v59
  %v61 = vpop.xlane.xlu0 %60
  %v62 = vsel %vm40, %v31, 0.0
  %63 = vadd.xlane.f32.xlu0 %v62
  %v64 = vpop.xlane.xlu0 %63
  %v65 = vsel %vm40, %v32, 0.0
  %66 = vadd.xlane.f32.xlu0 %v65
  %v67 = vpop.xlane.xlu0 %66
  %v68 = vsel %vm40, %v33, 0.0
  %69 = vadd.xlane.f32.xlu0 %v68
  %v70 = vpop.xlane.xlu0 %69
  %v71 = vsel %vm40, %v34, 0.0
  %72 = vadd.xlane.f32.xlu0 %v71
  %v73 = vpop.xlane.xlu0 %72
  %v74 = vsel %vm40, %v35, 0.0
  %75 = vadd.xlane.f32.xlu0 %v74
  %v76 = vpop.xlane.xlu0 %75
  %v77 = vsel %vm40, %v36, 0.0
  %78 = vadd.xlane.f32.xlu0 %v77
  %v79 = vpop.xlane.xlu0 %78
  %v80 = vsel %vm40, %v37, 0.0
  %81 = vadd.xlane.f32.xlu0 %v80
  %v82 = vpop.xlane.xlu0 %81
  %v83 = vsel %vm40, %v38, 0.0
  %84 = vadd.xlane.f32.xlu0 %v83
  %v85 = vpop.xlane.xlu0 %84
  %v86 = vsel %vm40, %v39, 0.0
  %87 = vadd.xlane.f32.xlu0 %v86
  %v88 = vpop.xlane.xlu0 %87
  %v89 = vrcp.pop 64.0
  %v90 = vmul.f32 %v43, %v89
  %v91 = vmul.f32 %v46, %v89
  %v92 = vmul.f32 %v49, %v89
  %v93 = vmul.f32 %v52, %v89
  %v94 = vmul.f32 %v55, %v89
  %v95 = vmul.f32 %v58, %v89
  %v96 = vmul.f32 %v61, %v89
  %v97 = vmul.f32 %v64, %v89
  %v98 = vmul.f32 %v67, %v89
  %v99 = vmul.f32 %v70, %v89
  %v100 = vmul.f32 %v73, %v89
  %v101 = vmul.f32 %v76, %v89
  %v102 = vmul.f32 %v79, %v89
  %v103 = vmul.f32 %v82, %v89
  %v104 = vmul.f32 %v85, %v89
  %v105 = vmul.f32 %v88, %v89
  %v106 = vsub.f32 %v24, %v90
  %v107 = vsub.f32 %v25, %v91
  %v108 = vsub.f32 %v26, %v92
  %v109 = vsub.f32 %v27, %v93
  %v110 = vsub.f32 %v28, %v94
  %v111 = vsub.f32 %v29, %v95
  %v112 = vsub.f32 %v30, %v96
  %v113 = vsub.f32 %v31, %v97
  %v114 = vsub.f32 %v32, %v98
  %v115 = vsub.f32 %v33, %v99
  %v116 = vsub.f32 %v34, %v100
  %v117 = vsub.f32 %v35, %v101
  %v118 = vsub.f32 %v36, %v102
  %v119 = vsub.f32 %v37, %v103
  %v120 = vsub.f32 %v38, %v104
  %v121 = vsub.f32 %v39, %v105
  %v122 = vmul.f32 %v106, %v106
  %v123 = vmul.f32 %v107, %v107
  %v124 = vmul.f32 %v108, %v108
  %v125 = vmul.f32 %v109, %v109
  %v126 = vmul.f32 %v110, %v110
  %v127 = vmul.f32 %v111, %v111
  %v128 = vmul.f32 %v112, %v112
  %v129 = vmul.f32 %v113, %v113
  %v130 = vmul.f32 %v114, %v114
  %v131 = vmul.f32 %v115, %v115
  %v132 = vmul.f32 %v116, %v116
  %v133 = vmul.f32 %v117, %v117
  %v134 = vmul.f32 %v118, %v118
  %v135 = vmul.f32 %v119, %v119
  %v136 = vmul.f32 %v120, %v120
  %v137 = vmul.f32 %v121, %v121
  %v138 = vsel %vm40, %v122, 0.0
  %139 = vadd.xlane.f32.xlu0 %v138
  %v140 = vpop.xlane.xlu0 %139
  %v141 = vsel %vm40, %v123, 0.0
  %142 = vadd.xlane.f32.xlu0 %v141
  %v143 = vpop.xlane.xlu0 %142
  %v144 = vsel %vm40, %v124, 0.0
  %145 = vadd.xlane.f32.xlu0 %v144
  %v146 = vpop.xlane.xlu0 %145
  %v147 = vsel %vm40, %v125, 0.0
  %148 = vadd.xlane.f32.xlu0 %v147
  %v149 = vpop.xlane.xlu0 %148
  %v150 = vsel %vm40, %v126, 0.0
  %151 = vadd.xlane.f32.xlu0 %v150
  %v152 = vpop.xlane.xlu0 %151
  %v153 = vsel %vm40, %v127, 0.0
  %154 = vadd.xlane.f32.xlu0 %v153
  %v155 = vpop.xlane.xlu0 %154
  %v156 = vsel %vm40, %v128, 0.0
  %157 = vadd.xlane.f32.xlu0 %v156
  %v158 = vpop.xlane.xlu0 %157
  %v159 = vsel %vm40, %v129, 0.0
  %160 = vadd.xlane.f32.xlu0 %v159
  %v161 = vpop.xlane.xlu0 %160
  %v162 = vsel %vm40, %v130, 0.0
  %163 = vadd.xlane.f32.xlu0 %v162
  %v164 = vpop.xlane.xlu0 %163
  %v165 = vsel %vm40, %v131, 0.0
  %166 = vadd.xlane.f32.xlu0 %v165
  %v167 = vpop.xlane.xlu0 %166
  %v168 = vsel %vm40, %v132, 0.0
  %169 = vadd.xlane.f32.xlu0 %v168
  %v170 = vpop.xlane.xlu0 %169
  %v171 = vsel %vm40, %v133, 0.0
  %172 = vadd.xlane.f32.xlu0 %v171
  %v173 = vpop.xlane.xlu0 %172
  %v174 = vsel %vm40, %v134, 0.0
  %175 = vadd.xlane.f32.xlu0 %v174
  %v176 = vpop.xlane.xlu0 %175
  %v177 = vsel %vm40, %v135, 0.0
  %178 = vadd.xlane.f32.xlu0 %v177
  %v179 = vpop.xlane.xlu0 %178
  %v180 = vsel %vm40, %v136, 0.0
  %181 = vadd.xlane.f32.xlu0 %v180
  %v182 = vpop.xlane.xlu0 %181
  %v183 = vsel %vm40, %v137, 0.0
  %184 = vadd.xlane.f32.xlu0 %v183
  %v185 = vpop.xlane.xlu0 %184
  %v186 = vmul.f32 %v140, %v89
  %v187 = vmul.f32 %v143, %v89
  %v188 = vmul.f32 %v146, %v89
  %v189 = vmul.f32 %v149, %v89
  %v190 = vmul.f32 %v152, %v89
  %v191 = vmul.f32 %v155, %v89
  %v192 = vmul.f32 %v158, %v89
  %v193 = vmul.f32 %v161, %v89
  %v194 = vmul.f32 %v164, %v89
  %v195 = vmul.f32 %v167, %v89
  %v196 = vmul.f32 %v170, %v89
  %v197 = vmul.f32 %v173, %v89
  %v198 = vmul.f32 %v176, %v89
  %v199 = vmul.f32 %v179, %v89
  %v200 = vmul.f32 %v182, %v89
  %v201 = vmul.f32 %v185, %v89
  %v202 = vadd.f32 %v186, 1e-05
  %v203 = vadd.f32 %v187, 1e-05
  %v204 = vadd.f32 %v188, 1e-05
  %v205 = vadd.f32 %v189, 1e-05
  %v206 = vadd.f32 %v190, 1e-05
  %v207 = vadd.f32 %v191, 1e-05
  %v208 = vadd.f32 %v192, 1e-05
  %v209 = vadd.f32 %v193, 1e-05
  %v210 = vadd.f32 %v194, 1e-05
  %v211 = vadd.f32 %v195, 1e-05
  %v212 = vadd.f32 %v196, 1e-05
  %v213 = vadd.f32 %v197, 1e-05
  %v214 = vadd.f32 %v198, 1e-05
  %v215 = vadd.f32 %v199, 1e-05
  %v216 = vadd.f32 %v200, 1e-05
  %v217 = vadd.f32 %v201, 1e-05
  %v218 = vrsqrt.pop %v202
  %v219 = vrsqrt.pop %v203
  %v220 = vrsqrt.pop %v204
  %v221 = vrsqrt.pop %v205
  %v222 = vrsqrt.pop %v206
  %v223 = vrsqrt.pop %v207
  %v224 = vrsqrt.pop %v208
  %v225 = vrsqrt.pop %v209
  %v226 = vrsqrt.pop %v210
  %v227 = vrsqrt.pop %v211
  %v228 = vrsqrt.pop %v212
  %v229 = vrsqrt.pop %v213
  %v230 = vrsqrt.pop %v214
  %v231 = vrsqrt.pop %v215
  %v232 = vrsqrt.pop %v216
  %v233 = vrsqrt.pop %v217
  %v234 = vmul.f32 %v106, %v218
  %v235 = vmul.f32 %v107, %v219
  %v236 = vmul.f32 %v108, %v220
  %v237 = vmul.f32 %v109, %v221
  %v238 = vmul.f32 %v110, %v222
  %v239 = vmul.f32 %v111, %v223
  %v240 = vmul.f32 %v112, %v224
  %v241 = vmul.f32 %v113, %v225
  %v242 = vmul.f32 %v114, %v226
  %v243 = vmul.f32 %v115, %v227
  %v244 = vmul.f32 %v116, %v228
  %v245 = vmul.f32 %v117, %v229
  %v246 = vmul.f32 %v118, %v230
  %v247 = vmul.f32 %v119, %v231
  %v248 = vmul.f32 %v120, %v232
  %v249 = vmul.f32 %v121, %v233
  %v250 = vld [vmem:[%s1] sm:$0x1]
  %v252 = vlaneseq
  %v253 = vshrl.u32 %v252, 7
  %v254 = vsub.s32 0, %v253
  %v255 = vrot.slane %v250, %v254
  %v257 = vmul.f32 %v234, %v255
  %v258 = vmul.f32 %v235, %v255
  %v259 = vmul.f32 %v236, %v255
  %v260 = vmul.f32 %v237, %v255
  %v261 = vmul.f32 %v238, %v255
  %v262 = vmul.f32 %v239, %v255
  %v263 = vmul.f32 %v240, %v255
  %v264 = vmul.f32 %v241, %v255
  %v265 = vmul.f32 %v242, %v255
  %v266 = vmul.f32 %v243, %v255
  %v267 = vmul.f32 %v244, %v255
  %v268 = vmul.f32 %v245, %v255
  %v269 = vmul.f32 %v246, %v255
  %v270 = vmul.f32 %v247, %v255
  %v271 = vmul.f32 %v248, %v255
  %v272 = vmul.f32 %v249, %v255
  %v273 = vld [vmem:[%s2] sm:$0x1]
  %v275 = vlaneseq
  %v276 = vshrl.u32 %v275, 7
  %v277 = vsub.s32 0, %v276
  %v278 = vrot.slane %v273, %v277
  %v280 = vadd.f32 %v257, %v278
  %v281 = vadd.f32 %v258, %v278
  %v282 = vadd.f32 %v259, %v278
  %v283 = vadd.f32 %v260, %v278
  %v284 = vadd.f32 %v261, %v278
  %v285 = vadd.f32 %v262, %v278
  %v286 = vadd.f32 %v263, %v278
  %v287 = vadd.f32 %v264, %v278
  %v288 = vadd.f32 %v265, %v278
  %v289 = vadd.f32 %v266, %v278
  %v290 = vadd.f32 %v267, %v278
  %v291 = vadd.f32 %v268, %v278
  %v292 = vadd.f32 %v269, %v278
  %v293 = vadd.f32 %v270, %v278
  %v294 = vadd.f32 %v271, %v278
  %v295 = vadd.f32 %v272, %v278
  %v296 = vmul.f32 %v280, 0.70710677
  %v297 = vmul.f32 %v281, 0.70710677
  %v298 = vmul.f32 %v282, 0.70710677
  %v299 = vmul.f32 %v283, 0.70710677
  %v300 = vmul.f32 %v284, 0.70710677
  %v301 = vmul.f32 %v285, 0.70710677
  %v302 = vmul.f32 %v286, 0.70710677
  %v303 = vmul.f32 %v287, 0.70710677
  %v304 = vmul.f32 %v288, 0.70710677
  %v305 = vmul.f32 %v289, 0.70710677
  %v306 = vmul.f32 %v290, 0.70710677
  %v307 = vmul.f32 %v291, 0.70710677
  %v308 = vmul.f32 %v292, 0.70710677
  %v309 = vmul.f32 %v293, 0.70710677
  %v310 = vmul.f32 %v294, 0.70710677
  %v311 = vmul.f32 %v295, 0.70710677
  %v312 = vand.u32 2147483647, %v296
  %v313 = vand.u32 2147483647, %v297
  %v314 = vand.u32 2147483647, %v298
  %v315 = vand.u32 2147483647, %v299
  %v316 = vand.u32 2147483647, %v300
  %v317 = vand.u32 2147483647, %v301
  %v318 = vand.u32 2147483647, %v302
  %v319 = vand.u32 2147483647, %v303
  %v320 = vand.u32 2147483647, %v304
  %v321 = vand.u32 2147483647, %v305
  %v322 = vand.u32 2147483647, %v306
  %v323 = vand.u32 2147483647, %v307
  %v324 = vand.u32 2147483647, %v308
  %v325 = vand.u32 2147483647, %v309
  %v326 = vand.u32 2147483647, %v310
  %v327 = vand.u32 2147483647, %v311
  %v328 = vmul.f32 %v312, 0.3275911
  %v329 = vmul.f32 %v313, 0.3275911
  %v330 = vmul.f32 %v314, 0.3275911
  %v331 = vmul.f32 %v315, 0.3275911
  %v332 = vmul.f32 %v316, 0.3275911
  %v333 = vmul.f32 %v317, 0.3275911
  %v334 = vmul.f32 %v318, 0.3275911
  %v335 = vmul.f32 %v319, 0.3275911
  %v336 = vmul.f32 %v320, 0.3275911
  %v337 = vmul.f32 %v321, 0.3275911
  %v338 = vmul.f32 %v322, 0.3275911
  %v339 = vmul.f32 %v323, 0.3275911
  %v340 = vmul.f32 %v324, 0.3275911
  %v341 = vmul.f32 %v325, 0.3275911
  %v342 = vmul.f32 %v326, 0.3275911
  %v343 = vmul.f32 %v327, 0.3275911
  %v344 = vadd.f32 %v328, 1.0
  %v345 = vadd.f32 %v329, 1.0
  %v346 = vadd.f32 %v330, 1.0
  %v347 = vadd.f32 %v331, 1.0
  %v348 = vadd.f32 %v332, 1.0
  %v349 = vadd.f32 %v333, 1.0
  %v350 = vadd.f32 %v334, 1.0
  %v351 = vadd.f32 %v335, 1.0
  %v352 = vadd.f32 %v336, 1.0
  %v353 = vadd.f32 %v337, 1.0
  %v354 = vadd.f32 %v338, 1.0
  %v355 = vadd.f32 %v339, 1.0
  %v356 = vadd.f32 %v340, 1.0
  %v357 = vadd.f32 %v341, 1.0
  %v358 = vadd.f32 %v342, 1.0
  %v359 = vadd.f32 %v343, 1.0
  %v360 = vrcp.pop %v344
  %v361 = vmul.f32 1.0, %v360
  %v362 = vrcp.pop %v345
  %v363 = vmul.f32 1.0, %v362
  %v364 = vrcp.pop %v346
  %v365 = vmul.f32 1.0, %v364
  %v366 = vrcp.pop %v347
  %v367 = vmul.f32 1.0, %v366
  %v368 = vrcp.pop %v348
  %v369 = vmul.f32 1.0, %v368
  %v370 = vrcp.pop %v349
  %v371 = vmul.f32 1.0, %v370
  %v372 = vrcp.pop %v350
  %v373 = vmul.f32 1.0, %v372
  %v374 = vrcp.pop %v351
  %v375 = vmul.f32 1.0, %v374
  %v376 = vrcp.pop %v352
  %v377 = vmul.f32 1.0, %v376
  %v378 = vrcp.pop %v353
  %v379 = vmul.f32 1.0, %v378
  %v380 = vrcp.pop %v354
  %v381 = vmul.f32 1.0, %v380
  %v382 = vrcp.pop %v355
  %v383 = vmul.f32 1.0, %v382
  %v384 = vrcp.pop %v356
  %v385 = vmul.f32 1.0, %v384
  %v386 = vrcp.pop %v357
  %v387 = vmul.f32 1.0, %v386
  %v388 = vrcp.pop %v358
  %v389 = vmul.f32 1.0, %v388
  %v390 = vrcp.pop %v359
  %v391 = vmul.f32 1.0, %v390
  %v392 = vmul.f32 %v361, 1.0614054
  %v393 = vmul.f32 %v363, 1.0614054
  %v394 = vmul.f32 %v365, 1.0614054
  %v395 = vmul.f32 %v367, 1.0614054
  %v396 = vmul.f32 %v369, 1.0614054
  %v397 = vmul.f32 %v371, 1.0614054
  %v398 = vmul.f32 %v373, 1.0614054
  %v399 = vmul.f32 %v375, 1.0614054
  %v400 = vmul.f32 %v377, 1.0614054
  %v401 = vmul.f32 %v379, 1.0614054
  %v402 = vmul.f32 %v381, 1.0614054
  %v403 = vmul.f32 %v383, 1.0614054
  %v404 = vmul.f32 %v385, 1.0614054
  %v405 = vmul.f32 %v387, 1.0614054
  %v406 = vmul.f32 %v389, 1.0614054
  %v407 = vmul.f32 %v391, 1.0614054
  %v408 = vadd.f32 %v392, -1.4531521
  %v409 = vadd.f32 %v393, -1.4531521
  %v410 = vadd.f32 %v394, -1.4531521
  %v411 = vadd.f32 %v395, -1.4531521
  %v412 = vadd.f32 %v396, -1.4531521
  %v413 = vadd.f32 %v397, -1.4531521
  %v414 = vadd.f32 %v398, -1.4531521
  %v415 = vadd.f32 %v399, -1.4531521
  %v416 = vadd.f32 %v400, -1.4531521
  %v417 = vadd.f32 %v401, -1.4531521
  %v418 = vadd.f32 %v402, -1.4531521
  %v419 = vadd.f32 %v403, -1.4531521
  %v420 = vadd.f32 %v404, -1.4531521
  %v421 = vadd.f32 %v405, -1.4531521
  %v422 = vadd.f32 %v406, -1.4531521
  %v423 = vadd.f32 %v407, -1.4531521
  %v424 = vmul.f32 %v361, %v408
  %v425 = vmul.f32 %v363, %v409
  %v426 = vmul.f32 %v365, %v410
  %v427 = vmul.f32 %v367, %v411
  %v428 = vmul.f32 %v369, %v412
  %v429 = vmul.f32 %v371, %v413
  %v430 = vmul.f32 %v373, %v414
  %v431 = vmul.f32 %v375, %v415
  %v432 = vmul.f32 %v377, %v416
  %v433 = vmul.f32 %v379, %v417
  %v434 = vmul.f32 %v381, %v418
  %v435 = vmul.f32 %v383, %v419
  %v436 = vmul.f32 %v385, %v420
  %v437 = vmul.f32 %v387, %v421
  %v438 = vmul.f32 %v389, %v422
  %v439 = vmul.f32 %v391, %v423
  %v440 = vadd.f32 %v424, 1.4214138
  %v441 = vadd.f32 %v425, 1.4214138
  %v442 = vadd.f32 %v426, 1.4214138
  %v443 = vadd.f32 %v427, 1.4214138
  %v444 = vadd.f32 %v428, 1.4214138
  %v445 = vadd.f32 %v429, 1.4214138
  %v446 = vadd.f32 %v430, 1.4214138
  %v447 = vadd.f32 %v431, 1.4214138
  %v448 = vadd.f32 %v432, 1.4214138
  %v449 = vadd.f32 %v433, 1.4214138
  %v450 = vadd.f32 %v434, 1.4214138
  %v451 = vadd.f32 %v435, 1.4214138
  %v452 = vadd.f32 %v436, 1.4214138
  %v453 = vadd.f32 %v437, 1.4214138
  %v454 = vadd.f32 %v438, 1.4214138
  %v455 = vadd.f32 %v439, 1.4214138
  %v456 = vmul.f32 %v361, %v440
  %v457 = vmul.f32 %v363, %v441
  %v458 = vmul.f32 %v365, %v442
  %v459 = vmul.f32 %v367, %v443
  %v460 = vmul.f32 %v369, %v444
  %v461 = vmul.f32 %v371, %v445
  %v462 = vmul.f32 %v373, %v446
  %v463 = vmul.f32 %v375, %v447
  %v464 = vmul.f32 %v377, %v448
  %v465 = vmul.f32 %v379, %v449
  %v466 = vmul.f32 %v381, %v450
  %v467 = vmul.f32 %v383, %v451
  %v468 = vmul.f32 %v385, %v452
  %v469 = vmul.f32 %v387, %v453
  %v470 = vmul.f32 %v389, %v454
  %v471 = vmul.f32 %v391, %v455
  %v472 = vadd.f32 %v456, -0.28449672
  %v473 = vadd.f32 %v457, -0.28449672
  %v474 = vadd.f32 %v458, -0.28449672
  %v475 = vadd.f32 %v459, -0.28449672
  %v476 = vadd.f32 %v460, -0.28449672
  %v477 = vadd.f32 %v461, -0.28449672
  %v478 = vadd.f32 %v462, -0.28449672
  %v479 = vadd.f32 %v463, -0.28449672
  %v480 = vadd.f32 %v464, -0.28449672
  %v481 = vadd.f32 %v465, -0.28449672
  %v482 = vadd.f32 %v466, -0.28449672
  %v483 = vadd.f32 %v467, -0.28449672
  %v484 = vadd.f32 %v468, -0.28449672
  %v485 = vadd.f32 %v469, -0.28449672
  %v486 = vadd.f32 %v470, -0.28449672
  %v487 = vadd.f32 %v471, -0.28449672
  %v488 = vmul.f32 %v361, %v472
  %v489 = vmul.f32 %v363, %v473
  %v490 = vmul.f32 %v365, %v474
  %v491 = vmul.f32 %v367, %v475
  %v492 = vmul.f32 %v369, %v476
  %v493 = vmul.f32 %v371, %v477
  %v494 = vmul.f32 %v373, %v478
  %v495 = vmul.f32 %v375, %v479
  %v496 = vmul.f32 %v377, %v480
  %v497 = vmul.f32 %v379, %v481
  %v498 = vmul.f32 %v381, %v482
  %v499 = vmul.f32 %v383, %v483
  %v500 = vmul.f32 %v385, %v484
  %v501 = vmul.f32 %v387, %v485
  %v502 = vmul.f32 %v389, %v486
  %v503 = vmul.f32 %v391, %v487
  %v504 = vadd.f32 %v488, 0.2548296
  %v505 = vadd.f32 %v489, 0.2548296
  %v506 = vadd.f32 %v490, 0.2548296
  %v507 = vadd.f32 %v491, 0.2548296
  %v508 = vadd.f32 %v492, 0.2548296
  %v509 = vadd.f32 %v493, 0.2548296
  %v510 = vadd.f32 %v494, 0.2548296
  %v511 = vadd.f32 %v495, 0.2548296
  %v512 = vadd.f32 %v496, 0.2548296
  %v513 = vadd.f32 %v497, 0.2548296
  %v514 = vadd.f32 %v498, 0.2548296
  %v515 = vadd.f32 %v499, 0.2548296
  %v516 = vadd.f32 %v500, 0.2548296
  %v517 = vadd.f32 %v501, 0.2548296
  %v518 = vadd.f32 %v502, 0.2548296
  %v519 = vadd.f32 %v503, 0.2548296
  %v520 = vmul.f32 %v361, %v504
  %v521 = vmul.f32 %v363, %v505
  %v522 = vmul.f32 %v365, %v506
  %v523 = vmul.f32 %v367, %v507
  %v524 = vmul.f32 %v369, %v508
  %v525 = vmul.f32 %v371, %v509
  %v526 = vmul.f32 %v373, %v510
  %v527 = vmul.f32 %v375, %v511
  %v528 = vmul.f32 %v377, %v512
  %v529 = vmul.f32 %v379, %v513
  %v530 = vmul.f32 %v381, %v514
  %v531 = vmul.f32 %v383, %v515
  %v532 = vmul.f32 %v385, %v516
  %v533 = vmul.f32 %v387, %v517
  %v534 = vmul.f32 %v389, %v518
  %v535 = vmul.f32 %v391, %v519
  %v536 = vsub.f32 0.0, %v312
  %v537 = vsub.f32 0.0, %v313
  %v538 = vsub.f32 0.0, %v314
  %v539 = vsub.f32 0.0, %v315
  %v540 = vsub.f32 0.0, %v316
  %v541 = vsub.f32 0.0, %v317
  %v542 = vsub.f32 0.0, %v318
  %v543 = vsub.f32 0.0, %v319
  %v544 = vsub.f32 0.0, %v320
  %v545 = vsub.f32 0.0, %v321
  %v546 = vsub.f32 0.0, %v322
  %v547 = vsub.f32 0.0, %v323
  %v548 = vsub.f32 0.0, %v324
  %v549 = vsub.f32 0.0, %v325
  %v550 = vsub.f32 0.0, %v326
  %v551 = vsub.f32 0.0, %v327
  %v552 = vmul.f32 %v536, %v312
  %v553 = vmul.f32 %v537, %v313
  %v554 = vmul.f32 %v538, %v314
  %v555 = vmul.f32 %v539, %v315
  %v556 = vmul.f32 %v540, %v316
  %v557 = vmul.f32 %v541, %v317
  %v558 = vmul.f32 %v542, %v318
  %v559 = vmul.f32 %v543, %v319
  %v560 = vmul.f32 %v544, %v320
  %v561 = vmul.f32 %v545, %v321
  %v562 = vmul.f32 %v546, %v322
  %v563 = vmul.f32 %v547, %v323
  %v564 = vmul.f32 %v548, %v324
  %v565 = vmul.f32 %v549, %v325
  %v566 = vmul.f32 %v550, %v326
  %v567 = vmul.f32 %v551, %v327
  %v568 = vmul.f32 %v552, 1.442695
  %v569 = vpow.pop %v568
  %v570 = vmul.f32 %v553, 1.442695
  %v571 = vpow.pop %v570
  %v572 = vmul.f32 %v554, 1.442695
  %v573 = vpow.pop %v572
  %v574 = vmul.f32 %v555, 1.442695
  %v575 = vpow.pop %v574
  %v576 = vmul.f32 %v556, 1.442695
  %v577 = vpow.pop %v576
  %v578 = vmul.f32 %v557, 1.442695
  %v579 = vpow.pop %v578
  %v580 = vmul.f32 %v558, 1.442695
  %v581 = vpow.pop %v580
  %v582 = vmul.f32 %v559, 1.442695
  %v583 = vpow.pop %v582
  %v584 = vmul.f32 %v560, 1.442695
  %v585 = vpow.pop %v584
  %v586 = vmul.f32 %v561, 1.442695
  %v587 = vpow.pop %v586
  %v588 = vmul.f32 %v562, 1.442695
  %v589 = vpow.pop %v588
  %v590 = vmul.f32 %v563, 1.442695
  %v591 = vpow.pop %v590
  %v592 = vmul.f32 %v564, 1.442695
  %v593 = vpow.pop %v592
  %v594 = vmul.f32 %v565, 1.442695
  %v595 = vpow.pop %v594
  %v596 = vmul.f32 %v566, 1.442695
  %v597 = vpow.pop %v596
  %v598 = vmul.f32 %v567, 1.442695
  %v599 = vpow.pop %v598
  %v600 = vmul.f32 %v520, %v569
  %v601 = vmul.f32 %v521, %v571
  %v602 = vmul.f32 %v522, %v573
  %v603 = vmul.f32 %v523, %v575
  %v604 = vmul.f32 %v524, %v577
  %v605 = vmul.f32 %v525, %v579
  %v606 = vmul.f32 %v526, %v581
  %v607 = vmul.f32 %v527, %v583
  %v608 = vmul.f32 %v528, %v585
  %v609 = vmul.f32 %v529, %v587
  %v610 = vmul.f32 %v530, %v589
  %v611 = vmul.f32 %v531, %v591
  %v612 = vmul.f32 %v532, %v593
  %v613 = vmul.f32 %v533, %v595
  %v614 = vmul.f32 %v534, %v597
  %v615 = vmul.f32 %v535, %v599
  %v616 = vsub.f32 1.0, %v600
  %v617 = vsub.f32 1.0, %v601
  %v618 = vsub.f32 1.0, %v602
  %v619 = vsub.f32 1.0, %v603
  %v620 = vsub.f32 1.0, %v604
  %v621 = vsub.f32 1.0, %v605
  %v622 = vsub.f32 1.0, %v606
  %v623 = vsub.f32 1.0, %v607
  %v624 = vsub.f32 1.0, %v608
  %v625 = vsub.f32 1.0, %v609
  %v626 = vsub.f32 1.0, %v610
  %v627 = vsub.f32 1.0, %v611
  %v628 = vsub.f32 1.0, %v612
  %v629 = vsub.f32 1.0, %v613
  %v630 = vsub.f32 1.0, %v614
  %v631 = vsub.f32 1.0, %v615
  %vm632 = vcmp.lt.f32.partialorder %v296, 0.0
  %vm633 = vcmp.lt.f32.partialorder %v297, 0.0
  %vm634 = vcmp.lt.f32.partialorder %v298, 0.0
  %vm635 = vcmp.lt.f32.partialorder %v299, 0.0
  %vm636 = vcmp.lt.f32.partialorder %v300, 0.0
  %vm637 = vcmp.lt.f32.partialorder %v301, 0.0
  %vm638 = vcmp.lt.f32.partialorder %v302, 0.0
  %vm639 = vcmp.lt.f32.partialorder %v303, 0.0
  %vm640 = vcmp.lt.f32.partialorder %v304, 0.0
  %vm641 = vcmp.lt.f32.partialorder %v305, 0.0
  %vm642 = vcmp.lt.f32.partialorder %v306, 0.0
  %vm643 = vcmp.lt.f32.partialorder %v307, 0.0
  %vm644 = vcmp.lt.f32.partialorder %v308, 0.0
  %vm645 = vcmp.lt.f32.partialorder %v309, 0.0
  %vm646 = vcmp.lt.f32.partialorder %v310, 0.0
  %vm647 = vcmp.lt.f32.partialorder %v311, 0.0
  %v648 = vsub.f32 0.0, %v616
  %v649 = vsub.f32 0.0, %v617
  %v650 = vsub.f32 0.0, %v618
  %v651 = vsub.f32 0.0, %v619
  %v652 = vsub.f32 0.0, %v620
  %v653 = vsub.f32 0.0, %v621
  %v654 = vsub.f32 0.0, %v622
  %v655 = vsub.f32 0.0, %v623
  %v656 = vsub.f32 0.0, %v624
  %v657 = vsub.f32 0.0, %v625
  %v658 = vsub.f32 0.0, %v626
  %v659 = vsub.f32 0.0, %v627
  %v660 = vsub.f32 0.0, %v628
  %v661 = vsub.f32 0.0, %v629
  %v662 = vsub.f32 0.0, %v630
  %v663 = vsub.f32 0.0, %v631
  %v664 = vsel %vm632, %v648, %v616
  %v665 = vsel %vm633, %v649, %v617
  %v666 = vsel %vm634, %v650, %v618
  %v667 = vsel %vm635, %v651, %v619
  %v668 = vsel %vm636, %v652, %v620
  %v669 = vsel %vm637, %v653, %v621
  %v670 = vsel %vm638, %v654, %v622
  %v671 = vsel %vm639, %v655, %v623
  %v672 = vsel %vm640, %v656, %v624
  %v673 = vsel %vm641, %v657, %v625
  %v674 = vsel %vm642, %v658, %v626
  %v675 = vsel %vm643, %v659, %v627
  %v676 = vsel %vm644, %v660, %v628
  %v677 = vsel %vm645, %v661, %v629
  %v678 = vsel %vm646, %v662, %v630
  %v679 = vsel %vm647, %v663, %v631
  %v680 = vmul.f32 %v280, 0.5
  %v681 = vmul.f32 %v281, 0.5
  %v682 = vmul.f32 %v282, 0.5
  %v683 = vmul.f32 %v283, 0.5
  %v684 = vmul.f32 %v284, 0.5
  %v685 = vmul.f32 %v285, 0.5
  %v686 = vmul.f32 %v286, 0.5
  %v687 = vmul.f32 %v287, 0.5
  %v688 = vmul.f32 %v288, 0.5
  %v689 = vmul.f32 %v289, 0.5
  %v690 = vmul.f32 %v290, 0.5
  %v691 = vmul.f32 %v291, 0.5
  %v692 = vmul.f32 %v292, 0.5
  %v693 = vmul.f32 %v293, 0.5
  %v694 = vmul.f32 %v294, 0.5
  %v695 = vmul.f32 %v295, 0.5
  %v696 = vadd.f32 %v664, 1.0
  %v697 = vadd.f32 %v665, 1.0
  %v698 = vadd.f32 %v666, 1.0
  %v699 = vadd.f32 %v667, 1.0
  %v700 = vadd.f32 %v668, 1.0
  %v701 = vadd.f32 %v669, 1.0
  %v702 = vadd.f32 %v670, 1.0
  %v703 = vadd.f32 %v671, 1.0
  %v704 = vadd.f32 %v672, 1.0
  %v705 = vadd.f32 %v673, 1.0
  %v706 = vadd.f32 %v674, 1.0
  %v707 = vadd.f32 %v675, 1.0
  %v708 = vadd.f32 %v676, 1.0
  %v709 = vadd.f32 %v677, 1.0
  %v710 = vadd.f32 %v678, 1.0
  %v711 = vadd.f32 %v679, 1.0
  %v712 = vmul.f32 %v680, %v696
  %v713 = vmul.f32 %v681, %v697
  %v714 = vmul.f32 %v682, %v698
  %v715 = vmul.f32 %v683, %v699
  %v716 = vmul.f32 %v684, %v700
  %v717 = vmul.f32 %v685, %v701
  %v718 = vmul.f32 %v686, %v702
  %v719 = vmul.f32 %v687, %v703
  %v720 = vmul.f32 %v688, %v704
  %v721 = vmul.f32 %v689, %v705
  %v722 = vmul.f32 %v690, %v706
  %v723 = vmul.f32 %v691, %v707
  %v724 = vmul.f32 %v692, %v708
  %v725 = vmul.f32 %v693, %v709
  %v726 = vmul.f32 %v694, %v710
  %v727 = vmul.f32 %v695, %v711
  %v728 = vpack.c.bf16 %v713, %v712
  %v729 = vpack.c.bf16 %v715, %v714
  %v730 = vpack.c.bf16 %v717, %v716
  %v731 = vpack.c.bf16 %v719, %v718
  %v732 = vpack.c.bf16 %v721, %v720
  %v733 = vpack.c.bf16 %v723, %v722
  %v734 = vpack.c.bf16 %v725, %v724
  %v735 = vpack.c.bf16 %v727, %v726
  %v736 = vld [vmem:[%s3] sm:$0xf]
  %v737 = vld [vmem:[%s3 + $0x4] sm:$0xf]
  %v738 = vld [vmem:[%s3 + $0x8] sm:$0xf]
  %v739 = vld [vmem:[%s3 + $0xc] sm:$0xf]
  %v740 = vld [vmem:[%s3 + $0x10] sm:$0xf]
  %v741 = vld [vmem:[%s3 + $0x14] sm:$0xf]
  %v742 = vld [vmem:[%s3 + $0x18] sm:$0xf]
  %v743 = vld [vmem:[%s3 + $0x1c] sm:$0xf]
  %v744 = vld [vmem:[%s4] sm:$0x1]
  %v746 = vlaneseq
  %v747 = vshrl.u32 %v746, 7
  %v748 = vsub.s32 0, %v747
  %v749 = vrot.slane %v744, %v748
  %v759 = vunpack.c.l.b16 %v736
  %v760 = vunpack.c.l.b16 %v737
  %v761 = vunpack.c.l.b16 %v738
  %v762 = vunpack.c.l.b16 %v739
  %v763 = vunpack.c.l.b16 %v740
  %v764 = vunpack.c.l.b16 %v741
  %v765 = vunpack.c.l.b16 %v742
  %v766 = vunpack.c.l.b16 %v743
  %v767 = vpack.c.b16 %v760, %v759
  %v768 = vpack.c.b16 %v762, %v761
  %v769 = vpack.c.b16 %v764, %v763
  %v770 = vpack.c.b16 %v766, %v765
  %v776 = vsel %vm40, %v728, 0
  %v779 = vsel %vm40, %v729, 0
  %v782 = vsel %vm40, %v730, 0
  %v785 = vsel %vm40, %v731, 0
  %v788 = vsel %vm40, %v732, 0
  %v791 = vsel %vm40, %v733, 0
  %v794 = vsel %vm40, %v734, 0
  %v797 = vsel %vm40, %v735, 0
  %799 = vmatprep.subr.bf16.mxu0 0
  %800 = vmatpush1.bf16.msra.mxu0 %v767
  %801 = vmatprep.subr.bf16.mxu0 0
  %802 = vmatpush1.bf16.msra.mxu0 %v768
  %803 = vmatprep.subr.bf16.mxu0 0
  %804 = vmatpush1.bf16.msra.mxu0 %v769
  %805 = vmatprep.subr.bf16.mxu0 0
  %806 = vmatpush1.bf16.msra.mxu0 %v770
  %807 = vmatprep.subr.bf16.mxu0 0
  %808 = vmatpush1.bf16.msra.mxu0 0
  %809 = vmatprep.subr.bf16.mxu0 0
  %810 = vmatpush1.bf16.msra.mxu0 0
  %811 = vmatprep.subr.bf16.mxu0 0
  %812 = vmatpush1.bf16.msra.mxu0 0
  %813 = vmatprep.subr.bf16.mxu0 0
  %814 = vmatpush1.bf16.msra.mxu0 0
  %815 = vmatprep.subr.bf16.mxu0 0
  %816 = vmatpush1.bf16.msra.mxu0 0
  %817 = vmatprep.subr.bf16.mxu0 0
  %818 = vmatpush1.bf16.msra.mxu0 0
  %819 = vmatprep.subr.bf16.mxu0 0
  %820 = vmatpush1.bf16.msra.mxu0 0
  %821 = vmatprep.subr.bf16.mxu0 0
  %822 = vmatpush1.bf16.msra.mxu0 0
  %823 = vmatprep.subr.bf16.mxu0 0
  %824 = vmatpush1.bf16.msra.mxu0 0
  %825 = vmatprep.subr.bf16.mxu0 0
  %826 = vmatpush1.bf16.msra.mxu0 0
  %827 = vmatprep.subr.bf16.mxu0 0
  %828 = vmatpush1.bf16.msra.mxu0 0
  %829 = vmatprep.subr.bf16.mxu0 0
  %830 = vmatpush1.bf16.msra.mxu0 0
  %831 = vmatprep.mubr.bf16.mxu0 0
  %832 = vmatmul.mubr.bf16.gmra.mrb[0].mxu0 %v776
  %v833 = vpop.f32.mrb[0].mxu0
  %v834 = vadd.f32 %v749, %v833
  %v835 = vpop.f32.mrb[0].mxu0
  %v836 = vpop.f32.mrb[0].mxu0
  %v837 = vadd.f32 %v749, %v836
  %v838 = vpop.f32.mrb[0].mxu0
  %839 = vmatprep.mubr.bf16.mxu0 0
  %840 = vmatmul.mubr.bf16.gmra.mrb[0].mxu0 %v779
  %v841 = vpop.f32.mrb[0].mxu0
  %v842 = vadd.f32 %v749, %v841
  %v843 = vpop.f32.mrb[0].mxu0
  %v844 = vpop.f32.mrb[0].mxu0
  %v845 = vadd.f32 %v749, %v844
  %v846 = vpop.f32.mrb[0].mxu0
  %847 = vmatprep.mubr.bf16.mxu0 0
  %848 = vmatmul.mubr.bf16.gmra.mrb[0].mxu0 %v782
  %v849 = vpop.f32.mrb[0].mxu0
  %v850 = vadd.f32 %v749, %v849
  %v851 = vpop.f32.mrb[0].mxu0
  %v852 = vpop.f32.mrb[0].mxu0
  %v853 = vadd.f32 %v749, %v852
  %v854 = vpop.f32.mrb[0].mxu0
  %855 = vmatprep.mubr.bf16.mxu0 0
  %856 = vmatmul.mubr.bf16.gmra.mrb[0].mxu0 %v785
  %v857 = vpop.f32.mrb[0].mxu0
  %v858 = vadd.f32 %v749, %v857
  %v859 = vpop.f32.mrb[0].mxu0
  %v860 = vpop.f32.mrb[0].mxu0
  %v861 = vadd.f32 %v749, %v860
  %v862 = vpop.f32.mrb[0].mxu0
  %863 = vmatprep.mubr.bf16.mxu0 0
  %864 = vmatmul.mubr.bf16.gmra.mrb[0].mxu0 %v788
  %v865 = vpop.f32.mrb[0].mxu0
  %v866 = vadd.f32 %v749, %v865
  %v867 = vpop.f32.mrb[0].mxu0
  %v868 = vpop.f32.mrb[0].mxu0
  %v869 = vadd.f32 %v749, %v868
  %v870 = vpop.f32.mrb[0].mxu0
  %871 = vmatprep.mubr.bf16.mxu0 0
  %872 = vmatmul.mubr.bf16.gmra.mrb[0].mxu0 %v791
  %v873 = vpop.f32.mrb[0].mxu0
  %v874 = vadd.f32 %v749, %v873
  %v875 = vpop.f32.mrb[0].mxu0
  %v876 = vpop.f32.mrb[0].mxu0
  %v877 = vadd.f32 %v749, %v876
  %v878 = vpop.f32.mrb[0].mxu0
  %879 = vmatprep.mubr.bf16.mxu0 0
  %880 = vmatmul.mubr.bf16.gmra.mrb[0].mxu0 %v794
  %v881 = vpop.f32.mrb[0].mxu0
  %v882 = vadd.f32 %v749, %v881
  %v883 = vpop.f32.mrb[0].mxu0
  %v884 = vpop.f32.mrb[0].mxu0
  %v885 = vadd.f32 %v749, %v884
  %v886 = vpop.f32.mrb[0].mxu0
  %887 = vmatprep.mubr.bf16.mxu0 0
  %888 = vmatmul.mubr.bf16.gmra.mrb[0].mxu0 %v797
  %v889 = vpop.f32.mrb[0].mxu0
  %v890 = vadd.f32 %v749, %v889
  %v891 = vpop.f32.mrb[0].mxu0
  %v892 = vpop.f32.mrb[0].mxu0
  %v893 = vadd.f32 %v749, %v892
  %v894 = vpop.f32.mrb[0].mxu0
  %895 = vdwg.mxu0
  %v896 = vld [vmem:[%s5] sm:$0xff]
  %v897 = vld [vmem:[%s5 + $0x8] sm:$0xff]
  %v898 = vld [vmem:[%s5 + $0x10] sm:$0xff]
  %v899 = vld [vmem:[%s5 + $0x18] sm:$0xff]
  %v900 = vld [vmem:[%s5 + $0x20] sm:$0xff]
  %v901 = vld [vmem:[%s5 + $0x28] sm:$0xff]
  %v902 = vld [vmem:[%s5 + $0x30] sm:$0xff]
  %v903 = vld [vmem:[%s5 + $0x38] sm:$0xff]
  %v904 = vld [vmem:[%s5 + $0x40] sm:$0xff]
  %v905 = vld [vmem:[%s5 + $0x48] sm:$0xff]
  %v906 = vld [vmem:[%s5 + $0x50] sm:$0xff]
  %v907 = vld [vmem:[%s5 + $0x58] sm:$0xff]
  %v908 = vld [vmem:[%s5 + $0x60] sm:$0xff]
  %v909 = vld [vmem:[%s5 + $0x68] sm:$0xff]
  %v910 = vld [vmem:[%s5 + $0x70] sm:$0xff]
  %v911 = vld [vmem:[%s5 + $0x78] sm:$0xff]
  %v912 = vadd.f32 %v834, %v896
  %v913 = vadd.f32 %v837, %v897
  %v914 = vadd.f32 %v842, %v898
  %v915 = vadd.f32 %v845, %v899
  %v916 = vadd.f32 %v850, %v900
  %v917 = vadd.f32 %v853, %v901
  %v918 = vadd.f32 %v858, %v902
  %v919 = vadd.f32 %v861, %v903
  %v920 = vadd.f32 %v866, %v904
  %v921 = vadd.f32 %v869, %v905
  %v922 = vadd.f32 %v874, %v906
  %v923 = vadd.f32 %v877, %v907
  %v924 = vadd.f32 %v882, %v908
  %v925 = vadd.f32 %v885, %v909
  %v926 = vadd.f32 %v890, %v910
  %v927 = vadd.f32 %v893, %v911
  %vm928 = vcmask 130048
  %929 = vst.msk [vmem:[%s6] sm:$0xff] %vm928, %v912
  %930 = vst.msk [vmem:[%s6 + $0x8] sm:$0xff] %vm928, %v913
  %931 = vst.msk [vmem:[%s6 + $0x10] sm:$0xff] %vm928, %v914
  %932 = vst.msk [vmem:[%s6 + $0x18] sm:$0xff] %vm928, %v915
  %933 = vst.msk [vmem:[%s6 + $0x20] sm:$0xff] %vm928, %v916
  %934 = vst.msk [vmem:[%s6 + $0x28] sm:$0xff] %vm928, %v917
  %935 = vst.msk [vmem:[%s6 + $0x30] sm:$0xff] %vm928, %v918
  %936 = vst.msk [vmem:[%s6 + $0x38] sm:$0xff] %vm928, %v919
  %937 = vst.msk [vmem:[%s6 + $0x40] sm:$0xff] %vm928, %v920
  %938 = vst.msk [vmem:[%s6 + $0x48] sm:$0xff] %vm928, %v921
  %939 = vst.msk [vmem:[%s6 + $0x50] sm:$0xff] %vm928, %v922
  %940 = vst.msk [vmem:[%s6 + $0x58] sm:$0xff] %vm928, %v923
  %941 = vst.msk [vmem:[%s6 + $0x60] sm:$0xff] %vm928, %v924
  %942 = vst.msk [vmem:[%s6 + $0x68] sm:$0xff] %vm928, %v925
  %943 = vst.msk [vmem:[%s6 + $0x70] sm:$0xff] %vm928, %v926
  %944 = vst.msk [vmem:[%s6 + $0x78] sm:$0xff] %vm928, %v927
  // Predicated region
  $region26: #{sw_mixffn_block_forward.9} parent=0 // pred_check
    _
  $region27: #{sw_mixffn_block_forward.9} parent=0 // pred_check_branch
    %946 = sbr.rel (0) target = $region29
  $region28: #{sw_mixffn_block_forward.9} parent=0 // pred_region
    _
  $region29: #{sw_mixffn_block_forward.9} parent=0 // pred_fallthru
    _
  // Predicated region
  $region30: #{sw_mixffn_block_forward.9} parent=0 // pred_check
    _
  $region31: #{sw_mixffn_block_forward.9} parent=0 // pred_check_branch
    %948 = sbr.rel (0) target = $region33
  $region32: #{sw_mixffn_block_forward.9} parent=0 // pred_region
    _
  $region33: #{sw_mixffn_block_forward.9} parent=0 // pred_fallthru
    _

</llo_original>
